<compile_context>
chip_gen: v5e
topology: v5e:2x2
jax: 0.10.0
libtpu: 0.0.40
codegen_flags: <defaults>
</compile_context>

<pallas_src>
import jax
import jax.numpy as jnp
import numpy as np
from jax import lax
from jax.experimental import pallas as pl
from jax.experimental.pallas import tpu as pltpu


# ----------------------------------------------------------------------------
# Fused Pallas kernel: 5x (conv3x3 s2 p1 + ReLU)  ->  spatial mean  ->  Linear
# ----------------------------------------------------------------------------
def _value_net_kernel(x_ref, *args):
    """One grid step = B_TILE images.

    x_ref : (B_TILE*H1, C1*W1)  lane-dense input slab (channel-major lanes).
    args  : [R1, M1, b1, ..., R5, M5, b5, S, head_col, head_bias, out_ref]
      R_l : (3, B*Ho, B*Hi)   0/1 block-diag stride-2 row select (pad rows get
                              no coefficient -> contribute exactly zero)
      M_l : (3, Ci*Wi, Co*Wo) folded kw taps + stride-2 along W + Ci->Co mix
      b_l : (1, Co*Wo)        bias row, broadcast over all output rows
      S   : (B, B*H5)         per-image row sum (H part of the spatial mean)
      head_col  : (C5*W5, 1)  linear weight / (H5*W5), channel-major lanes
      head_bias : (1, 1)
      out_ref   : (1, B, 1)
    """
    out_ref = args[-1]
    hb_ref, hc_ref, s_ref = args[-2], args[-3], args[-4]
    layer_refs = args[:-4]
    n_layers = len(layer_refs) // 3

    x = x_ref[...]  # stays in VMEM/vregs for all 5 layers (no HBM round trips)
    for l in range(n_layers):
        r_ref, m_ref, b_ref = layer_refs[3 * l], layer_refs[3 * l + 1], layer_refs[3 * l + 2]
        z = None
        for di in range(3):  # three kernel-row taps
            rx = jnp.dot(r_ref[di], x, preferred_element_type=jnp.float32)
            rx = rx.astype(m_ref.dtype)  # exact: R is a 0/1 row selection
            d = jnp.dot(rx, m_ref[di], preferred_element_type=jnp.float32)
            z = d if z is None else z + d
        z = z + b_ref[...]                              # (1, Ko) broadcast bias
        x = jnp.maximum(z, 0.0).astype(x_ref.dtype)     # next layer's slab

    # Head on the MXU: per-image row sum, then dot with folded linear weights.
    xs = jnp.dot(s_ref[...], x, preferred_element_type=jnp.float32)   # (B, K5)
    xs = xs.astype(hc_ref.dtype)
    v = jnp.dot(xs, hc_ref[...], preferred_element_type=jnp.float32)  # (B, 1)
    out_ref[0] = v + hb_ref[...]


# ----------------------------------------------------------------------------
# Parameters (torch layout) + one-time host-side folding into kernel operands
# ----------------------------------------------------------------------------
def init_params(key):
    """Deterministic parameters with the same shapes as the torch module."""
    chans = [3, 8, 16, 32, 64, 128]
    params = {"conv_w": [], "conv_b": []}
    keys = jax.random.split(key, 2 * len(chans))
    for i in range(5):
        cin, cout = chans[i], chans[i + 1]
        scale = 1.0 / jnp.sqrt(cin * 9.0)
        params["conv_w"].append(
            jax.random.normal(keys[2 * i], (cout, cin, 3, 3), jnp.float32) * scale
        )
        params["conv_b"].append(
            jax.random.normal(keys[2 * i + 1], (cout,), jnp.float32) * 0.01
        )
    params["lin_w"] = jax.random.normal(keys[10], (1, 128), jnp.float32) * (
        1.0 / jnp.sqrt(128.0)
    )
    params["lin_b"] = jax.random.normal(keys[11], (1,), jnp.float32) * 0.01
    return params


def _prepare_operands(params, height, width, batch_tile, compute_dtype):
    """Fold conv/linear weights into the dense matmul operands used by the
    fused kernel.  Runs once on the host; nothing is re-laid-out per forward."""
    chans = [3, 8, 16, 32, 64, 128]
    bt = int(batch_tile)
    cdt = np.dtype(compute_dtype)
    operands = []
    h, w = height, width
    for l in range(5):
        cin, cout = chans[l], chans[l + 1]
        ho, wo = (h - 1) // 2 + 1, (w - 1) // 2 + 1
        ki, ko = cin * w, cout * wo
        wt = np.asarray(params["conv_w"][l], np.float32)   # (cout, cin, 3, 3)
        bs = np.asarray(params["conv_b"][l], np.float32)   # (cout,)

        # R: stride-2 selection along H (pad=1 boundary rows get no coefficient),
        # replicated block-diagonally across the batch tile.
        r1 = np.zeros((3, ho, h), np.float32)
        for di in range(3):
            for oh in range(ho):
                ih = 2 * oh + di - 1
                if 0 <= ih < h:
                    r1[di, oh, ih] = 1.0
        r = np.zeros((3, bt * ho, bt * h), np.float32)
        for b in range(bt):
            r[:, b * ho:(b + 1) * ho, b * h:(b + 1) * h] = r1

        # M: kw taps + stride-2 along W + Cin->Cout mixing in one dense matmul.
        m = np.zeros((3, ki, ko), np.float32)
        ci, co = np.arange(cin), np.arange(cout)
        for di in range(3):
            for dj in range(3):
                for ow in range(wo):
                    iw = 2 * ow + dj - 1
                    if 0 <= iw < w:
                        m[di, (ci * w + iw)[:, None], (co * wo + ow)[None, :]] = (
                            wt[:, :, di, dj].T
                        )

        brow = np.repeat(bs, wo)[None, :]                  # (1, ko), col = co*wo+ow

        operands += [jnp.asarray(r, cdt), jnp.asarray(m, cdt),
                     jnp.asarray(brow, np.float32)]
        h, w = ho, wo

    # Head: spatial mean + Linear(128, 1) folded into a row-sum matrix and a
    # scaled channel-major column vector.
    s = np.zeros((bt, bt * h), np.float32)
    for b in range(bt):
        s[b, b * h:(b + 1) * h] = 1.0
    lin_w = np.asarray(params["lin_w"], np.float32).reshape(-1)            # (128,)
    head_col = (np.repeat(lin_w, w) / float(h * w))[:, None]               # (128*w, 1)
    head_bias = np.asarray(params["lin_b"], np.float32).reshape(1, 1)

    operands += [jnp.asarray(s, cdt), jnp.asarray(head_col, cdt),
                 jnp.asarray(head_bias, np.float32)]
    return operands


def pick_batch_tile(n, max_tile=8):
    """Images per grid step: fill MXU sublanes on the late (2-4 row) layers,
    but keep >= 2 grid steps so v7x's two TensorCores both get work."""
    if n <= 1:
        return 1
    return max(1, min(max_tile, n // 2))


# ----------------------------------------------------------------------------
# Forward factory
# ----------------------------------------------------------------------------
def make_value_network(params, height, width, batch_tile=2,
                       compute_dtype=jnp.float32):
    """Returns a jitted forward(x) for (N, 3, height, width) or (3, H, W)."""
    bt = int(batch_tile)
    c_in = 3
    weights = _prepare_operands(params, height, width, bt, compute_dtype)
    weight_specs = [
        pl.BlockSpec(wgt.shape, lambda i, nd=wgt.ndim: (0,) * nd) for wgt in weights
    ]

    # VMEM budget derived from the actual operands: double-buffered weights +
    # input blocks, plus headroom for activations/accumulators.
    weight_bytes = sum(int(wgt.size) * wgt.dtype.itemsize for wgt in weights)
    in_block_bytes = bt * height * c_in * width * np.dtype(compute_dtype).itemsize
    vmem_limit = int(min(64 << 20,
                         max(16 << 20, 2 * weight_bytes + 4 * in_block_bytes + (8 << 20))))

    def forward(x):
        if x.ndim == 3:
            x = x[None]
        n = x.shape[0]
        n_pad = pl.cdiv(n, bt) * bt
        if n_pad != n:  # pad the batch to a multiple of the tile (zeros, sliced off)
            x = jnp.concatenate(
                [x, jnp.zeros((n_pad - n,) + x.shape[1:], x.dtype)], axis=0)
        steps = n_pad // bt

        # NCHW -> lane-dense (N*H, C*W) slab, channel-major on the lane axis.
        a = jnp.transpose(x, (0, 2, 1, 3)).reshape(n_pad * height, c_in * width)
        a = a.astype(compute_dtype)

        out = pl.pallas_call(
            _value_net_kernel,
            out_shape=jax.ShapeDtypeStruct((steps, bt, 1), jnp.float32),
            grid=(steps,),
            in_specs=[pl.BlockSpec((bt * height, c_in * width), lambda i: (i, 0))]
            + weight_specs,
            out_specs=pl.BlockSpec((1, bt, 1), lambda i: (i, 0, 0)),
            compiler_params=pltpu.CompilerParams(
                dimension_semantics=("parallel",),  # grid steps split across TCs (v7x)
                vmem_limit_bytes=vmem_limit,
            ),
        )(a, *weights)
        return out.reshape(n_pad, 1)[:n]

    return jax.jit(forward)


# ----------------------------------------------------------------------------
# Pure-JAX reference (for correctness check only)
# ----------------------------------------------------------------------------
def _reference_forward(params, x_nchw):
    if x_nchw.ndim == 3:
        x_nchw = x_nchw[None]
    x = x_nchw
    for w, b in zip(params["conv_w"], params["conv_b"]):
        x = lax.conv_general_dilated(
            x, w, window_strides=(2, 2), padding=((1, 1), (1, 1)),
            dimension_numbers=("NCHW", "OIHW", "NCHW"),
        )
        x = jnp.maximum(x + b[None, :, None, None], 0.0)
    x = x.mean(axis=(2, 3))  # (N, 128)
    return x @ params["lin_w"].T + params["lin_b"]


if __name__ == "__main__":
    key = jax.random.PRNGKey(0)
    pkey, xkey = jax.random.split(key)
    params = init_params(pkey)

    # batch=4, channels=3, spatial=64 (-> 32,16,8,4,2 through the stride-2 convs)
    N, H, W = 4, 64, 64
    x = jax.random.normal(xkey, (N, 3, H, W), jnp.float32)
    bt = pick_batch_tile(N)  # 2 images per step -> 2 grid steps (v7x: both TCs busy)

    ref = jax.block_until_ready(_reference_forward(params, x))

    # f32 operands: exact match to the reference (default / v5e path).
    fwd_f32 = make_value_network(params, H, W, batch_tile=bt,
                                 compute_dtype=jnp.float32)
    out = jax.block_until_ready(fwd_f32(x))
    assert out.shape == (N, 1), out.shape
    assert jnp.allclose(out, ref, atol=1e-4, rtol=1e-4), (out, ref)

    # bf16 operands with f32 accumulation: MXU-native fast path for v6e/v7x
    # (bf16 keeps ~3 significant digits, hence the relaxed tolerance).
    fwd_bf16 = make_value_network(params, H, W, batch_tile=bt,
                                  compute_dtype=jnp.bfloat16)
    out_bf16 = jax.block_until_ready(fwd_bf16(x))
    assert out_bf16.shape == (N, 1), out_bf16.shape
    assert jnp.allclose(out_bf16, ref, atol=1e-1, rtol=1e-1), (out_bf16, ref)

    print("KERNEL_OK")
</pallas_src>

<mosaic_0001>
module attributes {stable_mosaic.version = 11 : i64} {
  func.func @_value_net_kernel(%arg0: i32, %arg1: memref<128x192xf32, #tpu.memory_space<vmem>>, %arg2: memref<3x64x128xf32, #tpu.memory_space<vmem>>, %arg3: memref<3x192x256xf32, #tpu.memory_space<vmem>>, %arg4: memref<1x256xf32, #tpu.memory_space<vmem>>, %arg5: memref<3x32x64xf32, #tpu.memory_space<vmem>>, %arg6: memref<3x256x256xf32, #tpu.memory_space<vmem>>, %arg7: memref<1x256xf32, #tpu.memory_space<vmem>>, %arg8: memref<3x16x32xf32, #tpu.memory_space<vmem>>, %arg9: memref<3x256x256xf32, #tpu.memory_space<vmem>>, %arg10: memref<1x256xf32, #tpu.memory_space<vmem>>, %arg11: memref<3x8x16xf32, #tpu.memory_space<vmem>>, %arg12: memref<3x256x256xf32, #tpu.memory_space<vmem>>, %arg13: memref<1x256xf32, #tpu.memory_space<vmem>>, %arg14: memref<3x4x8xf32, #tpu.memory_space<vmem>>, %arg15: memref<3x256x256xf32, #tpu.memory_space<vmem>>, %arg16: memref<1x256xf32, #tpu.memory_space<vmem>>, %arg17: memref<2x4xf32, #tpu.memory_space<vmem>>, %arg18: memref<256x1xf32, #tpu.memory_space<vmem>>, %arg19: memref<1x1xf32, #tpu.memory_space<vmem>>, %arg20: memref<1x2x1xf32, #tpu.memory_space<vmem>>) attributes {dimension_semantics = [#tpu.dimension_semantics<parallel>], iteration_bounds = array<i64: 2>, scalar_prefetch = 0 : i64, scratch_operands = 0 : i64, tpu.core_type = #tpu.core_type<tc>, window_params = [{transform_indices = @transform_0, window_bounds = array<i64: 128, 192>}, {pipeline_mode = #tpu.pipeline_mode<synchronous>, transform_indices = @transform_1, window_bounds = array<i64: 3, 64, 128>}, {pipeline_mode = #tpu.pipeline_mode<synchronous>, transform_indices = @transform_2, window_bounds = array<i64: 3, 192, 256>}, {pipeline_mode = #tpu.pipeline_mode<synchronous>, transform_indices = @transform_3, window_bounds = array<i64: 1, 256>}, {pipeline_mode = #tpu.pipeline_mode<synchronous>, transform_indices = @transform_4, window_bounds = array<i64: 3, 32, 64>}, {pipeline_mode = #tpu.pipeline_mode<synchronous>, transform_indices = @transform_5, window_bounds = array<i64: 3, 256, 256>}, {pipeline_mode = #tpu.pipeline_mode<synchronous>, transform_indices = @transform_6, window_bounds = array<i64: 1, 256>}, {pipeline_mode = #tpu.pipeline_mode<synchronous>, transform_indices = @transform_7, window_bounds = array<i64: 3, 16, 32>}, {pipeline_mode = #tpu.pipeline_mode<synchronous>, transform_indices = @transform_8, window_bounds = array<i64: 3, 256, 256>}, {pipeline_mode = #tpu.pipeline_mode<synchronous>, transform_indices = @transform_9, window_bounds = array<i64: 1, 256>}, {pipeline_mode = #tpu.pipeline_mode<synchronous>, transform_indices = @transform_10, window_bounds = array<i64: 3, 8, 16>}, {pipeline_mode = #tpu.pipeline_mode<synchronous>, transform_indices = @transform_11, window_bounds = array<i64: 3, 256, 256>}, {pipeline_mode = #tpu.pipeline_mode<synchronous>, transform_indices = @transform_12, window_bounds = array<i64: 1, 256>}, {pipeline_mode = #tpu.pipeline_mode<synchronous>, transform_indices = @transform_13, window_bounds = array<i64: 3, 4, 8>}, {pipeline_mode = #tpu.pipeline_mode<synchronous>, transform_indices = @transform_14, window_bounds = array<i64: 3, 256, 256>}, {pipeline_mode = #tpu.pipeline_mode<synchronous>, transform_indices = @transform_15, window_bounds = array<i64: 1, 256>}, {pipeline_mode = #tpu.pipeline_mode<synchronous>, transform_indices = @transform_16, window_bounds = array<i64: 2, 4>}, {pipeline_mode = #tpu.pipeline_mode<synchronous>, transform_indices = @transform_17, window_bounds = array<i64: 256, 1>}, {pipeline_mode = #tpu.pipeline_mode<synchronous>, transform_indices = @transform_18, window_bounds = array<i64: 1, 1>}, {transform_indices = @transform_19, window_bounds = array<i64: 1, 2, 1>}]} {
    %c0 = arith.constant 0 : index
    %c0_0 = arith.constant 0 : index
    %0 = vector.load %arg1[%c0, %c0_0] : memref<128x192xf32, #tpu.memory_space<vmem>>, vector<128x192xf32>
    %c0_1 = arith.constant 0 : index
    %c0_2 = arith.constant 0 : index
    %c0_3 = arith.constant 0 : index
    %1 = vector.load %arg2[%c0_1, %c0_2, %c0_3] : memref<3x64x128xf32, #tpu.memory_space<vmem>>, vector<1x64x128xf32>
    %2 = vector.shape_cast %1 : vector<1x64x128xf32> to vector<64x128xf32>
    %cst = arith.constant dense<0.000000e+00> : vector<64x192xf32>
    %3 = tpu.matmul %2, %0, %cst {dimension_numbers = #tpu.dot_dimension_numbers<[1], [0], [0], [1], [0, 0, 1, 1], [], []>} : vector<64x128xf32>, vector<128x192xf32>, vector<64x192xf32> -> vector<64x192xf32>
    %c0_4 = arith.constant 0 : index
    %c0_5 = arith.constant 0 : index
    %c0_6 = arith.constant 0 : index
    %4 = vector.load %arg3[%c0_4, %c0_5, %c0_6] : memref<3x192x256xf32, #tpu.memory_space<vmem>>, vector<1x192x256xf32>
    %5 = vector.shape_cast %4 : vector<1x192x256xf32> to vector<192x256xf32>
    %cst_7 = arith.constant dense<0.000000e+00> : vector<64x256xf32>
    %6 = tpu.matmul %3, %5, %cst_7 {dimension_numbers = #tpu.dot_dimension_numbers<[1], [0], [0], [1], [0, 0, 1, 1], [], []>} : vector<64x192xf32>, vector<192x256xf32>, vector<64x256xf32> -> vector<64x256xf32>
    %c1 = arith.constant 1 : index
    %c0_8 = arith.constant 0 : index
    %c0_9 = arith.constant 0 : index
    %7 = vector.load %arg2[%c1, %c0_8, %c0_9] : memref<3x64x128xf32, #tpu.memory_space<vmem>>, vector<1x64x128xf32>
    %8 = vector.shape_cast %7 : vector<1x64x128xf32> to vector<64x128xf32>
    %cst_10 = arith.constant dense<0.000000e+00> : vector<64x192xf32>
    %9 = tpu.matmul %8, %0, %cst_10 {dimension_numbers = #tpu.dot_dimension_numbers<[1], [0], [0], [1], [0, 0, 1, 1], [], []>} : vector<64x128xf32>, vector<128x192xf32>, vector<64x192xf32> -> vector<64x192xf32>
    %c1_11 = arith.constant 1 : index
    %c0_12 = arith.constant 0 : index
    %c0_13 = arith.constant 0 : index
    %10 = vector.load %arg3[%c1_11, %c0_12, %c0_13] : memref<3x192x256xf32, #tpu.memory_space<vmem>>, vector<1x192x256xf32>
    %11 = vector.shape_cast %10 : vector<1x192x256xf32> to vector<192x256xf32>
    %cst_14 = arith.constant dense<0.000000e+00> : vector<64x256xf32>
    %12 = tpu.matmul %9, %11, %cst_14 {dimension_numbers = #tpu.dot_dimension_numbers<[1], [0], [0], [1], [0, 0, 1, 1], [], []>} : vector<64x192xf32>, vector<192x256xf32>, vector<64x256xf32> -> vector<64x256xf32>
    %13 = arith.addf %6, %12 : vector<64x256xf32>
    %c2 = arith.constant 2 : index
    %c0_15 = arith.constant 0 : index
    %c0_16 = arith.constant 0 : index
    %14 = vector.load %arg2[%c2, %c0_15, %c0_16] : memref<3x64x128xf32, #tpu.memory_space<vmem>>, vector<1x64x128xf32>
    %15 = vector.shape_cast %14 : vector<1x64x128xf32> to vector<64x128xf32>
    %cst_17 = arith.constant dense<0.000000e+00> : vector<64x192xf32>
    %16 = tpu.matmul %15, %0, %cst_17 {dimension_numbers = #tpu.dot_dimension_numbers<[1], [0], [0], [1], [0, 0, 1, 1], [], []>} : vector<64x128xf32>, vector<128x192xf32>, vector<64x192xf32> -> vector<64x192xf32>
    %c2_18 = arith.constant 2 : index
    %c0_19 = arith.constant 0 : index
    %c0_20 = arith.constant 0 : index
    %17 = vector.load %arg3[%c2_18, %c0_19, %c0_20] : memref<3x192x256xf32, #tpu.memory_space<vmem>>, vector<1x192x256xf32>
    %18 = vector.shape_cast %17 : vector<1x192x256xf32> to vector<192x256xf32>
    %cst_21 = arith.constant dense<0.000000e+00> : vector<64x256xf32>
    %19 = tpu.matmul %16, %18, %cst_21 {dimension_numbers = #tpu.dot_dimension_numbers<[1], [0], [0], [1], [0, 0, 1, 1], [], []>} : vector<64x192xf32>, vector<192x256xf32>, vector<64x256xf32> -> vector<64x256xf32>
    %20 = arith.addf %13, %19 : vector<64x256xf32>
    %c0_22 = arith.constant 0 : index
    %c0_23 = arith.constant 0 : index
    %21 = vector.load %arg4[%c0_22, %c0_23] : memref<1x256xf32, #tpu.memory_space<vmem>>, vector<1x256xf32>
    %22 = vector.broadcast %21 : vector<1x256xf32> to vector<64x256xf32>
    %23 = arith.addf %20, %22 : vector<64x256xf32>
    %cst_24 = arith.constant 0.000000e+00 : f32
    %24 = vector.broadcast %cst_24 : f32 to vector<64x256xf32>
    %25 = arith.maximumf %23, %24 : vector<64x256xf32>
    %c0_25 = arith.constant 0 : index
    %c0_26 = arith.constant 0 : index
    %c0_27 = arith.constant 0 : index
    %26 = vector.load %arg5[%c0_25, %c0_26, %c0_27] : memref<3x32x64xf32, #tpu.memory_space<vmem>>, vector<1x32x64xf32>
    %27 = vector.shape_cast %26 : vector<1x32x64xf32> to vector<32x64xf32>
    %cst_28 = arith.constant dense<0.000000e+00> : vector<32x256xf32>
    %28 = tpu.matmul %27, %25, %cst_28 {dimension_numbers = #tpu.dot_dimension_numbers<[1], [0], [0], [1], [0, 0, 1, 1], [], []>} : vector<32x64xf32>, vector<64x256xf32>, vector<32x256xf32> -> vector<32x256xf32>
    %c0_29 = arith.constant 0 : index
    %c0_30 = arith.constant 0 : index
    %c0_31 = arith.constant 0 : index
    %29 = vector.load %arg6[%c0_29, %c0_30, %c0_31] : memref<3x256x256xf32, #tpu.memory_space<vmem>>, vector<1x256x256xf32>
    %30 = vector.shape_cast %29 : vector<1x256x256xf32> to vector<256x256xf32>
    %cst_32 = arith.constant dense<0.000000e+00> : vector<32x256xf32>
    %31 = tpu.matmul %28, %30, %cst_32 {dimension_numbers = #tpu.dot_dimension_numbers<[1], [0], [0], [1], [0, 0, 1, 1], [], []>} : vector<32x256xf32>, vector<256x256xf32>, vector<32x256xf32> -> vector<32x256xf32>
    %c1_33 = arith.constant 1 : index
    %c0_34 = arith.constant 0 : index
    %c0_35 = arith.constant 0 : index
    %32 = vector.load %arg5[%c1_33, %c0_34, %c0_35] : memref<3x32x64xf32, #tpu.memory_space<vmem>>, vector<1x32x64xf32>
    %33 = vector.shape_cast %32 : vector<1x32x64xf32> to vector<32x64xf32>
    %cst_36 = arith.constant dense<0.000000e+00> : vector<32x256xf32>
    %34 = tpu.matmul %33, %25, %cst_36 {dimension_numbers = #tpu.dot_dimension_numbers<[1], [0], [0], [1], [0, 0, 1, 1], [], []>} : vector<32x64xf32>, vector<64x256xf32>, vector<32x256xf32> -> vector<32x256xf32>
    %c1_37 = arith.constant 1 : index
    %c0_38 = arith.constant 0 : index
    %c0_39 = arith.constant 0 : index
    %35 = vector.load %arg6[%c1_37, %c0_38, %c0_39] : memref<3x256x256xf32, #tpu.memory_space<vmem>>, vector<1x256x256xf32>
    %36 = vector.shape_cast %35 : vector<1x256x256xf32> to vector<256x256xf32>
    %cst_40 = arith.constant dense<0.000000e+00> : vector<32x256xf32>
    %37 = tpu.matmul %34, %36, %cst_40 {dimension_numbers = #tpu.dot_dimension_numbers<[1], [0], [0], [1], [0, 0, 1, 1], [], []>} : vector<32x256xf32>, vector<256x256xf32>, vector<32x256xf32> -> vector<32x256xf32>
    %38 = arith.addf %31, %37 : vector<32x256xf32>
    %c2_41 = arith.constant 2 : index
    %c0_42 = arith.constant 0 : index
    %c0_43 = arith.constant 0 : index
    %39 = vector.load %arg5[%c2_41, %c0_42, %c0_43] : memref<3x32x64xf32, #tpu.memory_space<vmem>>, vector<1x32x64xf32>
    %40 = vector.shape_cast %39 : vector<1x32x64xf32> to vector<32x64xf32>
    %cst_44 = arith.constant dense<0.000000e+00> : vector<32x256xf32>
    %41 = tpu.matmul %40, %25, %cst_44 {dimension_numbers = #tpu.dot_dimension_numbers<[1], [0], [0], [1], [0, 0, 1, 1], [], []>} : vector<32x64xf32>, vector<64x256xf32>, vector<32x256xf32> -> vector<32x256xf32>
    %c2_45 = arith.constant 2 : index
    %c0_46 = arith.constant 0 : index
    %c0_47 = arith.constant 0 : index
    %42 = vector.load %arg6[%c2_45, %c0_46, %c0_47] : memref<3x256x256xf32, #tpu.memory_space<vmem>>, vector<1x256x256xf32>
    %43 = vector.shape_cast %42 : vector<1x256x256xf32> to vector<256x256xf32>
    %cst_48 = arith.constant dense<0.000000e+00> : vector<32x256xf32>
    %44 = tpu.matmul %41, %43, %cst_48 {dimension_numbers = #tpu.dot_dimension_numbers<[1], [0], [0], [1], [0, 0, 1, 1], [], []>} : vector<32x256xf32>, vector<256x256xf32>, vector<32x256xf32> -> vector<32x256xf32>
    %45 = arith.addf %38, %44 : vector<32x256xf32>
    %c0_49 = arith.constant 0 : index
    %c0_50 = arith.constant 0 : index
    %46 = vector.load %arg7[%c0_49, %c0_50] : memref<1x256xf32, #tpu.memory_space<vmem>>, vector<1x256xf32>
    %47 = vector.broadcast %46 : vector<1x256xf32> to vector<32x256xf32>
    %48 = arith.addf %45, %47 : vector<32x256xf32>
    %cst_51 = arith.constant 0.000000e+00 : f32
    %49 = vector.broadcast %cst_51 : f32 to vector<32x256xf32>
    %50 = arith.maximumf %48, %49 : vector<32x256xf32>
    %c0_52 = arith.constant 0 : index
    %c0_53 = arith.constant 0 : index
    %c0_54 = arith.constant 0 : index
    %51 = vector.load %arg8[%c0_52, %c0_53, %c0_54] : memref<3x16x32xf32, #tpu.memory_space<vmem>>, vector<1x16x32xf32>
    %52 = vector.shape_cast %51 : vector<1x16x32xf32> to vector<16x32xf32>
    %cst_55 = arith.constant dense<0.000000e+00> : vector<16x256xf32>
    %53 = tpu.matmul %52, %50, %cst_55 {dimension_numbers = #tpu.dot_dimension_numbers<[1], [0], [0], [1], [0, 0, 1, 1], [], []>} : vector<16x32xf32>, vector<32x256xf32>, vector<16x256xf32> -> vector<16x256xf32>
    %c0_56 = arith.constant 0 : index
    %c0_57 = arith.constant 0 : index
    %c0_58 = arith.constant 0 : index
    %54 = vector.load %arg9[%c0_56, %c0_57, %c0_58] : memref<3x256x256xf32, #tpu.memory_space<vmem>>, vector<1x256x256xf32>
    %55 = vector.shape_cast %54 : vector<1x256x256xf32> to vector<256x256xf32>
    %cst_59 = arith.constant dense<0.000000e+00> : vector<16x256xf32>
    %56 = tpu.matmul %53, %55, %cst_59 {dimension_numbers = #tpu.dot_dimension_numbers<[1], [0], [0], [1], [0, 0, 1, 1], [], []>} : vector<16x256xf32>, vector<256x256xf32>, vector<16x256xf32> -> vector<16x256xf32>
    %c1_60 = arith.constant 1 : index
    %c0_61 = arith.constant 0 : index
    %c0_62 = arith.constant 0 : index
    %57 = vector.load %arg8[%c1_60, %c0_61, %c0_62] : memref<3x16x32xf32, #tpu.memory_space<vmem>>, vector<1x16x32xf32>
    %58 = vector.shape_cast %57 : vector<1x16x32xf32> to vector<16x32xf32>
    %cst_63 = arith.constant dense<0.000000e+00> : vector<16x256xf32>
    %59 = tpu.matmul %58, %50, %cst_63 {dimension_numbers = #tpu.dot_dimension_numbers<[1], [0], [0], [1], [0, 0, 1, 1], [], []>} : vector<16x32xf32>, vector<32x256xf32>, vector<16x256xf32> -> vector<16x256xf32>
    %c1_64 = arith.constant 1 : index
    %c0_65 = arith.constant 0 : index
    %c0_66 = arith.constant 0 : index
    %60 = vector.load %arg9[%c1_64, %c0_65, %c0_66] : memref<3x256x256xf32, #tpu.memory_space<vmem>>, vector<1x256x256xf32>
    %61 = vector.shape_cast %60 : vector<1x256x256xf32> to vector<256x256xf32>
    %cst_67 = arith.constant dense<0.000000e+00> : vector<16x256xf32>
    %62 = tpu.matmul %59, %61, %cst_67 {dimension_numbers = #tpu.dot_dimension_numbers<[1], [0], [0], [1], [0, 0, 1, 1], [], []>} : vector<16x256xf32>, vector<256x256xf32>, vector<16x256xf32> -> vector<16x256xf32>
    %63 = arith.addf %56, %62 : vector<16x256xf32>
    %c2_68 = arith.constant 2 : index
    %c0_69 = arith.constant 0 : index
    %c0_70 = arith.constant 0 : index
    %64 = vector.load %arg8[%c2_68, %c0_69, %c0_70] : memref<3x16x32xf32, #tpu.memory_space<vmem>>, vector<1x16x32xf32>
    %65 = vector.shape_cast %64 : vector<1x16x32xf32> to vector<16x32xf32>
    %cst_71 = arith.constant dense<0.000000e+00> : vector<16x256xf32>
    %66 = tpu.matmul %65, %50, %cst_71 {dimension_numbers = #tpu.dot_dimension_numbers<[1], [0], [0], [1], [0, 0, 1, 1], [], []>} : vector<16x32xf32>, vector<32x256xf32>, vector<16x256xf32> -> vector<16x256xf32>
    %c2_72 = arith.constant 2 : index
    %c0_73 = arith.constant 0 : index
    %c0_74 = arith.constant 0 : index
    %67 = vector.load %arg9[%c2_72, %c0_73, %c0_74] : memref<3x256x256xf32, #tpu.memory_space<vmem>>, vector<1x256x256xf32>
    %68 = vector.shape_cast %67 : vector<1x256x256xf32> to vector<256x256xf32>
    %cst_75 = arith.constant dense<0.000000e+00> : vector<16x256xf32>
    %69 = tpu.matmul %66, %68, %cst_75 {dimension_numbers = #tpu.dot_dimension_numbers<[1], [0], [0], [1], [0, 0, 1, 1], [], []>} : vector<16x256xf32>, vector<256x256xf32>, vector<16x256xf32> -> vector<16x256xf32>
    %70 = arith.addf %63, %69 : vector<16x256xf32>
    %c0_76 = arith.constant 0 : index
    %c0_77 = arith.constant 0 : index
    %71 = vector.load %arg10[%c0_76, %c0_77] : memref<1x256xf32, #tpu.memory_space<vmem>>, vector<1x256xf32>
    %72 = vector.broadcast %71 : vector<1x256xf32> to vector<16x256xf32>
    %73 = arith.addf %70, %72 : vector<16x256xf32>
    %cst_78 = arith.constant 0.000000e+00 : f32
    %74 = vector.broadcast %cst_78 : f32 to vector<16x256xf32>
    %75 = arith.maximumf %73, %74 : vector<16x256xf32>
    %c0_79 = arith.constant 0 : index
    %c0_80 = arith.constant 0 : index
    %c0_81 = arith.constant 0 : index
    %76 = vector.load %arg11[%c0_79, %c0_80, %c0_81] : memref<3x8x16xf32, #tpu.memory_space<vmem>>, vector<1x8x16xf32>
    %77 = vector.shape_cast %76 : vector<1x8x16xf32> to vector<8x16xf32>
    %cst_82 = arith.constant dense<0.000000e+00> : vector<8x256xf32>
    %78 = tpu.matmul %77, %75, %cst_82 {dimension_numbers = #tpu.dot_dimension_numbers<[1], [0], [0], [1], [0, 0, 1, 1], [], []>} : vector<8x16xf32>, vector<16x256xf32>, vector<8x256xf32> -> vector<8x256xf32>
    %c0_83 = arith.constant 0 : index
    %c0_84 = arith.constant 0 : index
    %c0_85 = arith.constant 0 : index
    %79 = vector.load %arg12[%c0_83, %c0_84, %c0_85] : memref<3x256x256xf32, #tpu.memory_space<vmem>>, vector<1x256x256xf32>
    %80 = vector.shape_cast %79 : vector<1x256x256xf32> to vector<256x256xf32>
    %cst_86 = arith.constant dense<0.000000e+00> : vector<8x256xf32>
    %81 = tpu.matmul %78, %80, %cst_86 {dimension_numbers = #tpu.dot_dimension_numbers<[1], [0], [0], [1], [0, 0, 1, 1], [], []>} : vector<8x256xf32>, vector<256x256xf32>, vector<8x256xf32> -> vector<8x256xf32>
    %c1_87 = arith.constant 1 : index
    %c0_88 = arith.constant 0 : index
    %c0_89 = arith.constant 0 : index
    %82 = vector.load %arg11[%c1_87, %c0_88, %c0_89] : memref<3x8x16xf32, #tpu.memory_space<vmem>>, vector<1x8x16xf32>
    %83 = vector.shape_cast %82 : vector<1x8x16xf32> to vector<8x16xf32>
    %cst_90 = arith.constant dense<0.000000e+00> : vector<8x256xf32>
    %84 = tpu.matmul %83, %75, %cst_90 {dimension_numbers = #tpu.dot_dimension_numbers<[1], [0], [0], [1], [0, 0, 1, 1], [], []>} : vector<8x16xf32>, vector<16x256xf32>, vector<8x256xf32> -> vector<8x256xf32>
    %c1_91 = arith.constant 1 : index
    %c0_92 = arith.constant 0 : index
    %c0_93 = arith.constant 0 : index
    %85 = vector.load %arg12[%c1_91, %c0_92, %c0_93] : memref<3x256x256xf32, #tpu.memory_space<vmem>>, vector<1x256x256xf32>
    %86 = vector.shape_cast %85 : vector<1x256x256xf32> to vector<256x256xf32>
    %cst_94 = arith.constant dense<0.000000e+00> : vector<8x256xf32>
    %87 = tpu.matmul %84, %86, %cst_94 {dimension_numbers = #tpu.dot_dimension_numbers<[1], [0], [0], [1], [0, 0, 1, 1], [], []>} : vector<8x256xf32>, vector<256x256xf32>, vector<8x256xf32> -> vector<8x256xf32>
    %88 = arith.addf %81, %87 : vector<8x256xf32>
    %c2_95 = arith.constant 2 : index
    %c0_96 = arith.constant 0 : index
    %c0_97 = arith.constant 0 : index
    %89 = vector.load %arg11[%c2_95, %c0_96, %c0_97] : memref<3x8x16xf32, #tpu.memory_space<vmem>>, vector<1x8x16xf32>
    %90 = vector.shape_cast %89 : vector<1x8x16xf32> to vector<8x16xf32>
    %cst_98 = arith.constant dense<0.000000e+00> : vector<8x256xf32>
    %91 = tpu.matmul %90, %75, %cst_98 {dimension_numbers = #tpu.dot_dimension_numbers<[1], [0], [0], [1], [0, 0, 1, 1], [], []>} : vector<8x16xf32>, vector<16x256xf32>, vector<8x256xf32> -> vector<8x256xf32>
    %c2_99 = arith.constant 2 : index
    %c0_100 = arith.constant 0 : index
    %c0_101 = arith.constant 0 : index
    %92 = vector.load %arg12[%c2_99, %c0_100, %c0_101] : memref<3x256x256xf32, #tpu.memory_space<vmem>>, vector<1x256x256xf32>
    %93 = vector.shape_cast %92 : vector<1x256x256xf32> to vector<256x256xf32>
    %cst_102 = arith.constant dense<0.000000e+00> : vector<8x256xf32>
    %94 = tpu.matmul %91, %93, %cst_102 {dimension_numbers = #tpu.dot_dimension_numbers<[1], [0], [0], [1], [0, 0, 1, 1], [], []>} : vector<8x256xf32>, vector<256x256xf32>, vector<8x256xf32> -> vector<8x256xf32>
    %95 = arith.addf %88, %94 : vector<8x256xf32>
    %c0_103 = arith.constant 0 : index
    %c0_104 = arith.constant 0 : index
    %96 = vector.load %arg13[%c0_103, %c0_104] : memref<1x256xf32, #tpu.memory_space<vmem>>, vector<1x256xf32>
    %97 = vector.broadcast %96 : vector<1x256xf32> to vector<8x256xf32>
    %98 = arith.addf %95, %97 : vector<8x256xf32>
    %cst_105 = arith.constant 0.000000e+00 : f32
    %99 = vector.broadcast %cst_105 : f32 to vector<8x256xf32>
    %100 = arith.maximumf %98, %99 : vector<8x256xf32>
    %c0_106 = arith.constant 0 : index
    %c0_107 = arith.constant 0 : index
    %c0_108 = arith.constant 0 : index
    %101 = vector.load %arg14[%c0_106, %c0_107, %c0_108] : memref<3x4x8xf32, #tpu.memory_space<vmem>>, vector<1x4x8xf32>
    %102 = vector.shape_cast %101 : vector<1x4x8xf32> to vector<4x8xf32>
    %cst_109 = arith.constant dense<0.000000e+00> : vector<4x256xf32>
    %103 = tpu.matmul %102, %100, %cst_109 {dimension_numbers = #tpu.dot_dimension_numbers<[1], [0], [0], [1], [0, 0, 1, 1], [], []>} : vector<4x8xf32>, vector<8x256xf32>, vector<4x256xf32> -> vector<4x256xf32>
    %c0_110 = arith.constant 0 : index
    %c0_111 = arith.constant 0 : index
    %c0_112 = arith.constant 0 : index
    %104 = vector.load %arg15[%c0_110, %c0_111, %c0_112] : memref<3x256x256xf32, #tpu.memory_space<vmem>>, vector<1x256x256xf32>
    %105 = vector.shape_cast %104 : vector<1x256x256xf32> to vector<256x256xf32>
    %cst_113 = arith.constant dense<0.000000e+00> : vector<4x256xf32>
    %106 = tpu.matmul %103, %105, %cst_113 {dimension_numbers = #tpu.dot_dimension_numbers<[1], [0], [0], [1], [0, 0, 1, 1], [], []>} : vector<4x256xf32>, vector<256x256xf32>, vector<4x256xf32> -> vector<4x256xf32>
    %c1_114 = arith.constant 1 : index
    %c0_115 = arith.constant 0 : index
    %c0_116 = arith.constant 0 : index
    %107 = vector.load %arg14[%c1_114, %c0_115, %c0_116] : memref<3x4x8xf32, #tpu.memory_space<vmem>>, vector<1x4x8xf32>
    %108 = vector.shape_cast %107 : vector<1x4x8xf32> to vector<4x8xf32>
    %cst_117 = arith.constant dense<0.000000e+00> : vector<4x256xf32>
    %109 = tpu.matmul %108, %100, %cst_117 {dimension_numbers = #tpu.dot_dimension_numbers<[1], [0], [0], [1], [0, 0, 1, 1], [], []>} : vector<4x8xf32>, vector<8x256xf32>, vector<4x256xf32> -> vector<4x256xf32>
    %c1_118 = arith.constant 1 : index
    %c0_119 = arith.constant 0 : index
    %c0_120 = arith.constant 0 : index
    %110 = vector.load %arg15[%c1_118, %c0_119, %c0_120] : memref<3x256x256xf32, #tpu.memory_space<vmem>>, vector<1x256x256xf32>
    %111 = vector.shape_cast %110 : vector<1x256x256xf32> to vector<256x256xf32>
    %cst_121 = arith.constant dense<0.000000e+00> : vector<4x256xf32>
    %112 = tpu.matmul %109, %111, %cst_121 {dimension_numbers = #tpu.dot_dimension_numbers<[1], [0], [0], [1], [0, 0, 1, 1], [], []>} : vector<4x256xf32>, vector<256x256xf32>, vector<4x256xf32> -> vector<4x256xf32>
    %113 = arith.addf %106, %112 : vector<4x256xf32>
    %c2_122 = arith.constant 2 : index
    %c0_123 = arith.constant 0 : index
    %c0_124 = arith.constant 0 : index
    %114 = vector.load %arg14[%c2_122, %c0_123, %c0_124] : memref<3x4x8xf32, #tpu.memory_space<vmem>>, vector<1x4x8xf32>
    %115 = vector.shape_cast %114 : vector<1x4x8xf32> to vector<4x8xf32>
    %cst_125 = arith.constant dense<0.000000e+00> : vector<4x256xf32>
    %116 = tpu.matmul %115, %100, %cst_125 {dimension_numbers = #tpu.dot_dimension_numbers<[1], [0], [0], [1], [0, 0, 1, 1], [], []>} : vector<4x8xf32>, vector<8x256xf32>, vector<4x256xf32> -> vector<4x256xf32>
    %c2_126 = arith.constant 2 : index
    %c0_127 = arith.constant 0 : index
    %c0_128 = arith.constant 0 : index
    %117 = vector.load %arg15[%c2_126, %c0_127, %c0_128] : memref<3x256x256xf32, #tpu.memory_space<vmem>>, vector<1x256x256xf32>
    %118 = vector.shape_cast %117 : vector<1x256x256xf32> to vector<256x256xf32>
    %cst_129 = arith.constant dense<0.000000e+00> : vector<4x256xf32>
    %119 = tpu.matmul %116, %118, %cst_129 {dimension_numbers = #tpu.dot_dimension_numbers<[1], [0], [0], [1], [0, 0, 1, 1], [], []>} : vector<4x256xf32>, vector<256x256xf32>, vector<4x256xf32> -> vector<4x256xf32>
    %120 = arith.addf %113, %119 : vector<4x256xf32>
    %c0_130 = arith.constant 0 : index
    %c0_131 = arith.constant 0 : index
    %121 = vector.load %arg16[%c0_130, %c0_131] : memref<1x256xf32, #tpu.memory_space<vmem>>, vector<1x256xf32>
    %122 = vector.broadcast %121 : vector<1x256xf32> to vector<4x256xf32>
    %123 = arith.addf %120, %122 : vector<4x256xf32>
    %cst_132 = arith.constant 0.000000e+00 : f32
    %124 = vector.broadcast %cst_132 : f32 to vector<4x256xf32>
    %125 = arith.maximumf %123, %124 : vector<4x256xf32>
    %c0_133 = arith.constant 0 : index
    %c0_134 = arith.constant 0 : index
    %126 = vector.load %arg17[%c0_133, %c0_134] : memref<2x4xf32, #tpu.memory_space<vmem>>, vector<2x4xf32>
    %cst_135 = arith.constant dense<0.000000e+00> : vector<2x256xf32>
    %127 = tpu.matmul %126, %125, %cst_135 {dimension_numbers = #tpu.dot_dimension_numbers<[1], [0], [0], [1], [0, 0, 1, 1], [], []>} : vector<2x4xf32>, vector<4x256xf32>, vector<2x256xf32> -> vector<2x256xf32>
    %c0_136 = arith.constant 0 : index
    %c0_137 = arith.constant 0 : index
    %128 = vector.load %arg18[%c0_136, %c0_137] : memref<256x1xf32, #tpu.memory_space<vmem>>, vector<256x1xf32>
    %cst_138 = arith.constant dense<0.000000e+00> : vector<2x1xf32>
    %129 = tpu.matmul %127, %128, %cst_138 {dimension_numbers = #tpu.dot_dimension_numbers<[1], [0], [0], [1], [0, 0, 1, 1], [], []>} : vector<2x256xf32>, vector<256x1xf32>, vector<2x1xf32> -> vector<2x1xf32>
    %c0_139 = arith.constant 0 : index
    %c0_140 = arith.constant 0 : index
    %130 = vector.load %arg19[%c0_139, %c0_140] : memref<1x1xf32, #tpu.memory_space<vmem>>, vector<1x1xf32>
    %131 = vector.broadcast %130 : vector<1x1xf32> to vector<2x1xf32>
    %132 = arith.addf %129, %131 : vector<2x1xf32>
    %c0_141 = arith.constant 0 : index
    %c0_142 = arith.constant 0 : index
    %c0_143 = arith.constant 0 : index
    %133 = vector.load %arg20[%c0_141, %c0_142, %c0_143] : memref<1x2x1xf32, #tpu.memory_space<vmem>>, vector<1x2x1xf32>
    %134 = vector.shape_cast %133 : vector<1x2x1xf32> to vector<2x1xf32>
    %135 = vector.shape_cast %132 : vector<2x1xf32> to vector<1x2x1xf32>
    tpu.vector_store %arg20[%c0_141, %c0_142, %c0_143], %135 {strides = array<i32>} : memref<1x2x1xf32, #tpu.memory_space<vmem>>, vector<1x2x1xf32>,
    return
  }
  func.func @transform_0(%arg0: i32) -> (i32, i32) {
    %c0_i32 = arith.constant 0 : i32
    %c0_i32_0 = arith.constant 0 : i32
    return %arg0, %c0_i32 : i32, i32
  }
  func.func @transform_1(%arg0: i32) -> (i32, i32, i32) {
    %c0_i32 = arith.constant 0 : i32
    %c0_i32_0 = arith.constant 0 : i32
    %c0_i32_1 = arith.constant 0 : i32
    %c0_i32_2 = arith.constant 0 : i32
    return %c0_i32, %c0_i32_0, %c0_i32_1 : i32, i32, i32
  }
  func.func @transform_2(%arg0: i32) -> (i32, i32, i32) {
    %c0_i32 = arith.constant 0 : i32
    %c0_i32_0 = arith.constant 0 : i32
    %c0_i32_1 = arith.constant 0 : i32
    %c0_i32_2 = arith.constant 0 : i32
    return %c0_i32, %c0_i32_0, %c0_i32_1 : i32, i32, i32
  }
  func.func @transform_3(%arg0: i32) -> (i32, i32) {
    %c0_i32 = arith.constant 0 : i32
    %c0_i32_0 = arith.constant 0 : i32
    %c0_i32_1 = arith.constant 0 : i32
    return %c0_i32, %c0_i32_0 : i32, i32
  }
  func.func @transform_4(%arg0: i32) -> (i32, i32, i32) {
    %c0_i32 = arith.constant 0 : i32
    %c0_i32_0 = arith.constant 0 : i32
    %c0_i32_1 = arith.constant 0 : i32
    %c0_i32_2 = arith.constant 0 : i32
    return %c0_i32, %c0_i32_0, %c0_i32_1 : i32, i32, i32
  }
  func.func @transform_5(%arg0: i32) -> (i32, i32, i32) {
    %c0_i32 = arith.constant 0 : i32
    %c0_i32_0 = arith.constant 0 : i32
    %c0_i32_1 = arith.constant 0 : i32
    %c0_i32_2 = arith.constant 0 : i32
    return %c0_i32, %c0_i32_0, %c0_i32_1 : i32, i32, i32
  }
  func.func @transform_6(%arg0: i32) -> (i32, i32) {
    %c0_i32 = arith.constant 0 : i32
    %c0_i32_0 = arith.constant 0 : i32
    %c0_i32_1 = arith.constant 0 : i32
    return %c0_i32, %c0_i32_0 : i32, i32
  }
  func.func @transform_7(%arg0: i32) -> (i32, i32, i32) {
    %c0_i32 = arith.constant 0 : i32
    %c0_i32_0 = arith.constant 0 : i32
    %c0_i32_1 = arith.constant 0 : i32
    %c0_i32_2 = arith.constant 0 : i32
    return %c0_i32, %c0_i32_0, %c0_i32_1 : i32, i32, i32
  }
  func.func @transform_8(%arg0: i32) -> (i32, i32, i32) {
    %c0_i32 = arith.constant 0 : i32
    %c0_i32_0 = arith.constant 0 : i32
    %c0_i32_1 = arith.constant 0 : i32
    %c0_i32_2 = arith.constant 0 : i32
    return %c0_i32, %c0_i32_0, %c0_i32_1 : i32, i32, i32
  }
  func.func @transform_9(%arg0: i32) -> (i32, i32) {
    %c0_i32 = arith.constant 0 : i32
    %c0_i32_0 = arith.constant 0 : i32
    %c0_i32_1 = arith.constant 0 : i32
    return %c0_i32, %c0_i32_0 : i32, i32
  }
  func.func @transform_10(%arg0: i32) -> (i32, i32, i32) {
    %c0_i32 = arith.constant 0 : i32
    %c0_i32_0 = arith.constant 0 : i32
    %c0_i32_1 = arith.constant 0 : i32
    %c0_i32_2 = arith.constant 0 : i32
    return %c0_i32, %c0_i32_0, %c0_i32_1 : i32, i32, i32
  }
  func.func @transform_11(%arg0: i32) -> (i32, i32, i32) {
    %c0_i32 = arith.constant 0 : i32
    %c0_i32_0 = arith.constant 0 : i32
    %c0_i32_1 = arith.constant 0 : i32
    %c0_i32_2 = arith.constant 0 : i32
    return %c0_i32, %c0_i32_0, %c0_i32_1 : i32, i32, i32
  }
  func.func @transform_12(%arg0: i32) -> (i32, i32) {
    %c0_i32 = arith.constant 0 : i32
    %c0_i32_0 = arith.constant 0 : i32
    %c0_i32_1 = arith.constant 0 : i32
    return %c0_i32, %c0_i32_0 : i32, i32
  }
  func.func @transform_13(%arg0: i32) -> (i32, i32, i32) {
    %c0_i32 = arith.constant 0 : i32
    %c0_i32_0 = arith.constant 0 : i32
    %c0_i32_1 = arith.constant 0 : i32
    %c0_i32_2 = arith.constant 0 : i32
    return %c0_i32, %c0_i32_0, %c0_i32_1 : i32, i32, i32
  }
  func.func @transform_14(%arg0: i32) -> (i32, i32, i32) {
    %c0_i32 = arith.constant 0 : i32
    %c0_i32_0 = arith.constant 0 : i32
    %c0_i32_1 = arith.constant 0 : i32
    %c0_i32_2 = arith.constant 0 : i32
    return %c0_i32, %c0_i32_0, %c0_i32_1 : i32, i32, i32
  }
  func.func @transform_15(%arg0: i32) -> (i32, i32) {
    %c0_i32 = arith.constant 0 : i32
    %c0_i32_0 = arith.constant 0 : i32
    %c0_i32_1 = arith.constant 0 : i32
    return %c0_i32, %c0_i32_0 : i32, i32
  }
  func.func @transform_16(%arg0: i32) -> (i32, i32) {
    %c0_i32 = arith.constant 0 : i32
    %c0_i32_0 = arith.constant 0 : i32
    %c0_i32_1 = arith.constant 0 : i32
    return %c0_i32, %c0_i32_0 : i32, i32
  }
  func.func @transform_17(%arg0: i32) -> (i32, i32) {
    %c0_i32 = arith.constant 0 : i32
    %c0_i32_0 = arith.constant 0 : i32
    %c0_i32_1 = arith.constant 0 : i32
    return %c0_i32, %c0_i32_0 : i32, i32
  }
  func.func @transform_18(%arg0: i32) -> (i32, i32) {
    %c0_i32 = arith.constant 0 : i32
    %c0_i32_0 = arith.constant 0 : i32
    %c0_i32_1 = arith.constant 0 : i32
    return %c0_i32, %c0_i32_0 : i32, i32
  }
  func.func @transform_19(%arg0: i32) -> (i32, i32, i32) {
    %c0_i32 = arith.constant 0 : i32
    %c0_i32_0 = arith.constant 0 : i32
    %c0_i32_1 = arith.constant 0 : i32
    return %arg0, %c0_i32, %c0_i32_0 : i32, i32, i32
  }
}

</mosaic_0001>

<llo_original>
// kernel: forward.1
$region0: #{forward.1}
  #allocation0 [shape = 'u32[]', space=smem, size = 0x4, offset = 0x4, fixed_abs, tag = 'smem constant byte address 0x4 - core index']
  #allocation1 [shape = 'u32[72,128]{1,0:T(1,128)}', space=vmem, size = 0x9000, scoped, tag = 'internal scratch']
  #allocation2 [shape = 'f32[1,1]{1,0:T(1,128)S(1)}', space=vmem, size = 0x200, scoped, tag = 'scoped memory for forward.1']
  %s0 = inlined_call_operand.vmem [shape: f32[256,192], index: 0, kind: input, shape index: {}]
  %s1 = inlined_call_operand.hbm [shape: f32[3,64,128], index: 1, kind: input, shape index: {}]
  %s2 = inlined_call_operand.hbm [shape: f32[3,192,256], index: 2, kind: input, shape index: {}]
  %s3 = inlined_call_operand.hbm [shape: f32[1,256], index: 3, kind: input, shape index: {}]
  %s4 = inlined_call_operand.hbm [shape: f32[3,32,64], index: 4, kind: input, shape index: {}]
  %s5 = inlined_call_operand.hbm [shape: f32[3,256,256], index: 5, kind: input, shape index: {}]
  %s6 = inlined_call_operand.hbm [shape: f32[1,256], index: 6, kind: input, shape index: {}]
  %s7 = inlined_call_operand.hbm [shape: f32[3,16,32], index: 7, kind: input, shape index: {}]
  %s8 = inlined_call_operand.hbm [shape: f32[3,256,256], index: 8, kind: input, shape index: {}]
  %s9 = inlined_call_operand.hbm [shape: f32[1,256], index: 9, kind: input, shape index: {}]
  %s10 = inlined_call_operand.hbm [shape: f32[3,8,16], index: 10, kind: input, shape index: {}]
  %s11 = inlined_call_operand.vmem [shape: f32[3,256,256], index: 11, kind: input, shape index: {}]
  %s12 = inlined_call_operand.hbm [shape: f32[1,256], index: 12, kind: input, shape index: {}]
  %s13 = inlined_call_operand.hbm [shape: f32[3,4,8], index: 13, kind: input, shape index: {}]
  %s14 = inlined_call_operand.vmem [shape: f32[3,256,256], index: 14, kind: input, shape index: {}]
  %s15 = inlined_call_operand.hbm [shape: f32[1,256], index: 15, kind: input, shape index: {}]
  %s16 = inlined_call_operand.hbm [shape: f32[2,4], index: 16, kind: input, shape index: {}]
  %s17 = inlined_call_operand.vmem [shape: f32[256,1], index: 17, kind: input, shape index: {}]
  %s18 = inlined_call_operand.<no memory space> [shape: f32[1,1], index: 18, kind: input, shape index: {}]
  %s19 = inlined_call_operand.vmem [shape: f32[2,2,1], index: 19, kind: output, shape index: {}]
  %s20 = sld [smem:[#allocation0]]
  $region165: #{forward.1} parent=0
    _
  %s22 = ssub.s32 1, %s20
  %s23 = scalar_select 0, %s22, %s20
  %v24 = vstv %s18
  %25 = vst [vmem:[#allocation2] sm:$0x1] %v24
  $region1: #{forward.1} parent=0
    #allocation3 [shape = 'u8[98304]{0}', space=vmem, size = 0x18000, scoped, tag = 'input window, operand 1, single buffered']
    #allocation4 [shape = 's32[2]{0}', space=sflag, size = 0x8, scoped, tag = 'scoped memory for forward.1']
    #allocation5 [shape = 'u8[589824]{0}', space=vmem, size = 0x90000, scoped, tag = 'input window, operand 2, single buffered']
    #allocation6 [shape = 's32[1]{0}', space=sflag, size = 0x4, scoped, tag = 'scoped memory for forward.1']
    #allocation7 [shape = 'u8[1024]{0}', space=vmem, size = 0x400, scoped, tag = 'input window, operand 3, single buffered']
    #allocation8 [shape = 'u8[49152]{0}', space=vmem, size = 0xc000, scoped, tag = 'input window, operand 4, single buffered']
    #allocation9 [shape = 's32[1]{0}', space=sflag, size = 0x4, scoped, tag = 'scoped memory for forward.1']
    #allocation10 [shape = 'u8[786432]{0}', space=vmem, size = 0xc0000, scoped, tag = 'input window, operand 5, single buffered']
    #allocation11 [shape = 'u8[1024]{0}', space=vmem, size = 0x400, scoped, tag = 'input window, operand 6, single buffered']
    #allocation12 [shape = 's32[1]{0}', space=sflag, size = 0x4, scoped, tag = 'scoped memory for forward.1']
    #allocation13 [shape = 'u8[24576]{0}', space=vmem, size = 0x6000, scoped, tag = 'input window, operand 7, single buffered']
    #allocation14 [shape = 'u8[786432]{0}', space=vmem, size = 0xc0000, scoped, tag = 'input window, operand 8, single buffered']
    #allocation15 [shape = 's32[1]{0}', space=sflag, size = 0x4, scoped, tag = 'scoped memory for forward.1']
    #allocation16 [shape = 'u8[1024]{0}', space=vmem, size = 0x400, scoped, tag = 'input window, operand 9, single buffered']
    #allocation17 [shape = 'u8[12288]{0}', space=vmem, size = 0x3000, scoped, tag = 'input window, operand 10, single buffered']
    #allocation18 [shape = 's32[1]{0}', space=sflag, size = 0x4, scoped, tag = 'scoped memory for forward.1']
    #allocation19 [shape = 'u8[1024]{0}', space=vmem, size = 0x400, scoped, tag = 'input window, operand 12, single buffered']
    #allocation20 [shape = 'u8[6144]{0}', space=vmem, size = 0x1800, scoped, tag = 'input window, operand 13, single buffered']
    #allocation21 [shape = 's32[1]{0}', space=sflag, size = 0x4, scoped, tag = 'scoped memory for forward.1']
    #allocation22 [shape = 'u8[1024]{0}', space=vmem, size = 0x400, scoped, tag = 'input window, operand 15, single buffered']
    #allocation23 [shape = 'u8[1024]{0}', space=vmem, size = 0x400, scoped, tag = 'input window, operand 16, single buffered']
    #allocation24 [shape = 's32[1]{0}', space=sflag, size = 0x4, scoped, tag = 'scoped memory for forward.1']
    %26 = vsyncpa [#allocation4], 0
    %27 = vsyncpa [#allocation6], 0
    %28 = vsyncpa [#allocation9], 0
    %29 = vsyncpa [#allocation12], 0
    %30 = vsyncpa [#allocation15], 0
    %31 = vsyncpa [#allocation18], 0
    %32 = vsyncpa [#allocation21], 0
    %33 = vsyncpa [#allocation24], 0
    loop: start=0, step=1, limit=4
    $region2: #{forward.1} parent=1 // loop_pre_header
      _
    $region3: #{forward.1} parent=1 // loop_header
      %s35 = sphi 0, %s39
      %p36 = scmp.ge.s32.totalorder %s35, 4
      %s45 = sphi 0, %s47
      %s48 = sphi 0, %s45
      %s49 = sphi 0, %s48
      %s65 = sphi 0, %s49
      %s69 = sphi 0, %s69
      %s71 = sphi 0, %s69
      %s72 = sphi 0, %s71
      %s86 = sphi 0, %s72
      %s90 = sphi 0, %s90
      %s92 = sphi 0, %s90
      %s93 = sphi 0, %s92
      %s107 = sphi 0, %s93
      %s111 = sphi 0, %s111
      %s113 = sphi 0, %s111
      %s114 = sphi 0, %s113
      %s128 = sphi 0, %s114
      %s132 = sphi 0, %s132
      %s134 = sphi 0, %s132
      %s135 = sphi 0, %s134
      %s149 = sphi 0, %s135
      %s153 = sphi 0, %s153
      %s155 = sphi 0, %s153
      %s156 = sphi 0, %s155
      %s170 = sphi 0, %s156
      %s174 = sphi 0, %s174
      %s176 = sphi 0, %s174
      %s177 = sphi 0, %s176
      %s191 = sphi 0, %s177
      %s195 = sphi 0, %s195
      %s197 = sphi 0, %s195
      %s198 = sphi 0, %s197
      %s212 = sphi 0, %s198
      %s216 = sphi 0, %s216
      %s218 = sphi 0, %s216
      %s219 = sphi 0, %s218
      %s233 = sphi 0, %s219
      %s237 = sphi 0, %s237
      %s239 = sphi 0, %s237
      %s240 = sphi 0, %s239
      %s254 = sphi 0, %s240
      %s258 = sphi 0, %s258
      %s260 = sphi 0, %s258
      %s261 = sphi 0, %s260
      %s275 = sphi 0, %s261
      %s279 = sphi 0, %s279
      %s281 = sphi 0, %s279
      %s282 = sphi 0, %s281
      %s296 = sphi 0, %s282
      %s300 = sphi 0, %s300
      %s302 = sphi 0, %s300
      %s303 = sphi 0, %s302
      %s317 = sphi 0, %s303
      %s321 = sphi 0, %s321
      %s323 = sphi 0, %s321
      %s324 = sphi 0, %s323
      %s338 = sphi 0, %s324
      %s342 = sphi 0, %s342
      %s344 = sphi 0, %s342
      %s345 = sphi 0, %s344
      %s359 = sphi 0, %s345
      %s363 = sphi 0, %s363
      %s365 = sphi 0, %s363
      %s366 = sphi 0, %s365
      %s380 = sphi 0, %s366
      %s384 = sphi 0, %s384
      %s386 = sphi 0, %s384
      %s387 = sphi 0, %s386
      %s401 = sphi 0, %s387
      %s405 = sphi 0, %s405
      %s407 = sphi 0, %s405
      %s408 = sphi 0, %s407
      %s422 = sphi 0, %s408
      %s426 = sphi 0, %s426
      %s428 = sphi 0, %s426
      %s429 = sphi 0, %s428
      %s443 = sphi 0, %s429
      %s449 = sphi 0, %s451
      %s452 = sphi 0, %s449
      %s453 = sphi 0, %s452
      %s469 = sphi 0, %s453
    $region4: #{forward.1} parent=1 // loop_header_branch
      %38 = sbr.rel (%p36) target = $region8
    $region5: #{forward.1} parent=1 // loop_body
      %s40 = ssub.s32 %s35, 1
      %s41 = ssub.s32 %s35, 2
      %s42 = sadd.s32 %s35, 1
      %s43 = ssub.s32 %s35, %s42
      %p44 = scmp.eq.s32.totalorder %s43, 0
      %s46 = sadd.s32 %s45, 1
      %s47 = scalar_select %p44, %s45, %s46
      %p50 = pneg %p44
      %p51 = scmp.eq.s32.totalorder %s35, 1
      %p52 = por %p50, %p51
      %p53 = scmp.ne.s32.totalorder %s45, %s48
      %p54 = scmp.eq.s32.totalorder %s35, 0
      %p55 = por %p53, %p54
      %p56 = scmp.ne.s32.totalorder %s45, %s48
      %p57 = scmp.eq.s32.totalorder %s40, 1
      %p58 = por %p56, %p57
      %p59 = scmp.ne.s32.totalorder %s48, %s49
      %p60 = scmp.eq.s32.totalorder %s40, 0
      %p61 = por %p59, %p60
      %p62 = scmp.ne.s32.totalorder %s48, %s49
      %p63 = scmp.eq.s32.totalorder %s41, 1
      %p64 = por %p62, %p63
      %p66 = scmp.ne.s32.totalorder %s49, %s65
      %p67 = scmp.eq.s32.totalorder %s41, 0
      %p68 = por %p66, %p67
      %s70 = sadd.s32 %s69, 1
      %p73 = scmp.eq.s32.totalorder %s35, 1
      %p74 = scmp.ne.s32.totalorder %s69, %s71
      %p75 = scmp.eq.s32.totalorder %s35, 0
      %p76 = por %p74, %p75
      %p77 = scmp.ne.s32.totalorder %s69, %s71
      %p78 = scmp.eq.s32.totalorder %s40, 1
      %p79 = por %p77, %p78
      %p80 = scmp.ne.s32.totalorder %s71, %s72
      %p81 = scmp.eq.s32.totalorder %s40, 0
      %p82 = por %p80, %p81
      %p83 = scmp.ne.s32.totalorder %s71, %s72
      %p84 = scmp.eq.s32.totalorder %s41, 1
      %p85 = por %p83, %p84
      %p87 = scmp.ne.s32.totalorder %s72, %s86
      %p88 = scmp.eq.s32.totalorder %s41, 0
      %p89 = por %p87, %p88
      %s91 = sadd.s32 %s90, 1
      %p94 = scmp.eq.s32.totalorder %s35, 1
      %p95 = scmp.ne.s32.totalorder %s90, %s92
      %p96 = scmp.eq.s32.totalorder %s35, 0
      %p97 = por %p95, %p96
      %p98 = scmp.ne.s32.totalorder %s90, %s92
      %p99 = scmp.eq.s32.totalorder %s40, 1
      %p100 = por %p98, %p99
      %p101 = scmp.ne.s32.totalorder %s92, %s93
      %p102 = scmp.eq.s32.totalorder %s40, 0
      %p103 = por %p101, %p102
      %p104 = scmp.ne.s32.totalorder %s92, %s93
      %p105 = scmp.eq.s32.totalorder %s41, 1
      %p106 = por %p104, %p105
      %p108 = scmp.ne.s32.totalorder %s93, %s107
      %p109 = scmp.eq.s32.totalorder %s41, 0
      %p110 = por %p108, %p109
      %s112 = sadd.s32 %s111, 1
      %p115 = scmp.eq.s32.totalorder %s35, 1
      %p116 = scmp.ne.s32.totalorder %s111, %s113
      %p117 = scmp.eq.s32.totalorder %s35, 0
      %p118 = por %p116, %p117
      %p119 = scmp.ne.s32.totalorder %s111, %s113
      %p120 = scmp.eq.s32.totalorder %s40, 1
      %p121 = por %p119, %p120
      %p122 = scmp.ne.s32.totalorder %s113, %s114
      %p123 = scmp.eq.s32.totalorder %s40, 0
      %p124 = por %p122, %p123
      %p125 = scmp.ne.s32.totalorder %s113, %s114
      %p126 = scmp.eq.s32.totalorder %s41, 1
      %p127 = por %p125, %p126
      %p129 = scmp.ne.s32.totalorder %s114, %s128
      %p130 = scmp.eq.s32.totalorder %s41, 0
      %p131 = por %p129, %p130
      %s133 = sadd.s32 %s132, 1
      %p136 = scmp.eq.s32.totalorder %s35, 1
      %p137 = scmp.ne.s32.totalorder %s132, %s134
      %p138 = scmp.eq.s32.totalorder %s35, 0
      %p139 = por %p137, %p138
      %p140 = scmp.ne.s32.totalorder %s132, %s134
      %p141 = scmp.eq.s32.totalorder %s40, 1
      %p142 = por %p140, %p141
      %p143 = scmp.ne.s32.totalorder %s134, %s135
      %p144 = scmp.eq.s32.totalorder %s40, 0
      %p145 = por %p143, %p144
      %p146 = scmp.ne.s32.totalorder %s134, %s135
      %p147 = scmp.eq.s32.totalorder %s41, 1
      %p148 = por %p146, %p147
      %p150 = scmp.ne.s32.totalorder %s135, %s149
      %p151 = scmp.eq.s32.totalorder %s41, 0
      %p152 = por %p150, %p151
      %s154 = sadd.s32 %s153, 1
      %p157 = scmp.eq.s32.totalorder %s35, 1
      %p158 = scmp.ne.s32.totalorder %s153, %s155
      %p159 = scmp.eq.s32.totalorder %s35, 0
      %p160 = por %p158, %p159
      %p161 = scmp.ne.s32.totalorder %s153, %s155
      %p162 = scmp.eq.s32.totalorder %s40, 1
      %p163 = por %p161, %p162
      %p164 = scmp.ne.s32.totalorder %s155, %s156
      %p165 = scmp.eq.s32.totalorder %s40, 0
      %p166 = por %p164, %p165
      %p167 = scmp.ne.s32.totalorder %s155, %s156
      %p168 = scmp.eq.s32.totalorder %s41, 1
      %p169 = por %p167, %p168
      %p171 = scmp.ne.s32.totalorder %s156, %s170
      %p172 = scmp.eq.s32.totalorder %s41, 0
      %p173 = por %p171, %p172
      %s175 = sadd.s32 %s174, 1
      %p178 = scmp.eq.s32.totalorder %s35, 1
      %p179 = scmp.ne.s32.totalorder %s174, %s176
      %p180 = scmp.eq.s32.totalorder %s35, 0
      %p181 = por %p179, %p180
      %p182 = scmp.ne.s32.totalorder %s174, %s176
      %p183 = scmp.eq.s32.totalorder %s40, 1
      %p184 = por %p182, %p183
      %p185 = scmp.ne.s32.totalorder %s176, %s177
      %p186 = scmp.eq.s32.totalorder %s40, 0
      %p187 = por %p185, %p186
      %p188 = scmp.ne.s32.totalorder %s176, %s177
      %p189 = scmp.eq.s32.totalorder %s41, 1
      %p190 = por %p188, %p189
      %p192 = scmp.ne.s32.totalorder %s177, %s191
      %p193 = scmp.eq.s32.totalorder %s41, 0
      %p194 = por %p192, %p193
      %s196 = sadd.s32 %s195, 1
      %p199 = scmp.eq.s32.totalorder %s35, 1
      %p200 = scmp.ne.s32.totalorder %s195, %s197
      %p201 = scmp.eq.s32.totalorder %s35, 0
      %p202 = por %p200, %p201
      %p203 = scmp.ne.s32.totalorder %s195, %s197
      %p204 = scmp.eq.s32.totalorder %s40, 1
      %p205 = por %p203, %p204
      %p206 = scmp.ne.s32.totalorder %s197, %s198
      %p207 = scmp.eq.s32.totalorder %s40, 0
      %p208 = por %p206, %p207
      %p209 = scmp.ne.s32.totalorder %s197, %s198
      %p210 = scmp.eq.s32.totalorder %s41, 1
      %p211 = por %p209, %p210
      %p213 = scmp.ne.s32.totalorder %s198, %s212
      %p214 = scmp.eq.s32.totalorder %s41, 0
      %p215 = por %p213, %p214
      %s217 = sadd.s32 %s216, 1
      %p220 = scmp.eq.s32.totalorder %s35, 1
      %p221 = scmp.ne.s32.totalorder %s216, %s218
      %p222 = scmp.eq.s32.totalorder %s35, 0
      %p223 = por %p221, %p222
      %p224 = scmp.ne.s32.totalorder %s216, %s218
      %p225 = scmp.eq.s32.totalorder %s40, 1
      %p226 = por %p224, %p225
      %p227 = scmp.ne.s32.totalorder %s218, %s219
      %p228 = scmp.eq.s32.totalorder %s40, 0
      %p229 = por %p227, %p228
      %p230 = scmp.ne.s32.totalorder %s218, %s219
      %p231 = scmp.eq.s32.totalorder %s41, 1
      %p232 = por %p230, %p231
      %p234 = scmp.ne.s32.totalorder %s219, %s233
      %p235 = scmp.eq.s32.totalorder %s41, 0
      %p236 = por %p234, %p235
      %s238 = sadd.s32 %s237, 1
      %p241 = scmp.eq.s32.totalorder %s35, 1
      %p242 = scmp.ne.s32.totalorder %s237, %s239
      %p243 = scmp.eq.s32.totalorder %s35, 0
      %p244 = por %p242, %p243
      %p245 = scmp.ne.s32.totalorder %s237, %s239
      %p246 = scmp.eq.s32.totalorder %s40, 1
      %p247 = por %p245, %p246
      %p248 = scmp.ne.s32.totalorder %s239, %s240
      %p249 = scmp.eq.s32.totalorder %s40, 0
      %p250 = por %p248, %p249
      %p251 = scmp.ne.s32.totalorder %s239, %s240
      %p252 = scmp.eq.s32.totalorder %s41, 1
      %p253 = por %p251, %p252
      %p255 = scmp.ne.s32.totalorder %s240, %s254
      %p256 = scmp.eq.s32.totalorder %s41, 0
      %p257 = por %p255, %p256
      %s259 = sadd.s32 %s258, 1
      %p262 = scmp.eq.s32.totalorder %s35, 1
      %p263 = scmp.ne.s32.totalorder %s258, %s260
      %p264 = scmp.eq.s32.totalorder %s35, 0
      %p265 = por %p263, %p264
      %p266 = scmp.ne.s32.totalorder %s258, %s260
      %p267 = scmp.eq.s32.totalorder %s40, 1
      %p268 = por %p266, %p267
      %p269 = scmp.ne.s32.totalorder %s260, %s261
      %p270 = scmp.eq.s32.totalorder %s40, 0
      %p271 = por %p269, %p270
      %p272 = scmp.ne.s32.totalorder %s260, %s261
      %p273 = scmp.eq.s32.totalorder %s41, 1
      %p274 = por %p272, %p273
      %p276 = scmp.ne.s32.totalorder %s261, %s275
      %p277 = scmp.eq.s32.totalorder %s41, 0
      %p278 = por %p276, %p277
      %s280 = sadd.s32 %s279, 1
      %p283 = scmp.eq.s32.totalorder %s35, 1
      %p284 = scmp.ne.s32.totalorder %s279, %s281
      %p285 = scmp.eq.s32.totalorder %s35, 0
      %p286 = por %p284, %p285
      %p287 = scmp.ne.s32.totalorder %s279, %s281
      %p288 = scmp.eq.s32.totalorder %s40, 1
      %p289 = por %p287, %p288
      %p290 = scmp.ne.s32.totalorder %s281, %s282
      %p291 = scmp.eq.s32.totalorder %s40, 0
      %p292 = por %p290, %p291
      %p293 = scmp.ne.s32.totalorder %s281, %s282
      %p294 = scmp.eq.s32.totalorder %s41, 1
      %p295 = por %p293, %p294
      %p297 = scmp.ne.s32.totalorder %s282, %s296
      %p298 = scmp.eq.s32.totalorder %s41, 0
      %p299 = por %p297, %p298
      %s301 = sadd.s32 %s300, 1
      %p304 = scmp.eq.s32.totalorder %s35, 1
      %p305 = scmp.ne.s32.totalorder %s300, %s302
      %p306 = scmp.eq.s32.totalorder %s35, 0
      %p307 = por %p305, %p306
      %p308 = scmp.ne.s32.totalorder %s300, %s302
      %p309 = scmp.eq.s32.totalorder %s40, 1
      %p310 = por %p308, %p309
      %p311 = scmp.ne.s32.totalorder %s302, %s303
      %p312 = scmp.eq.s32.totalorder %s40, 0
      %p313 = por %p311, %p312
      %p314 = scmp.ne.s32.totalorder %s302, %s303
      %p315 = scmp.eq.s32.totalorder %s41, 1
      %p316 = por %p314, %p315
      %p318 = scmp.ne.s32.totalorder %s303, %s317
      %p319 = scmp.eq.s32.totalorder %s41, 0
      %p320 = por %p318, %p319
      %s322 = sadd.s32 %s321, 1
      %p325 = scmp.eq.s32.totalorder %s35, 1
      %p326 = scmp.ne.s32.totalorder %s321, %s323
      %p327 = scmp.eq.s32.totalorder %s35, 0
      %p328 = por %p326, %p327
      %p329 = scmp.ne.s32.totalorder %s321, %s323
      %p330 = scmp.eq.s32.totalorder %s40, 1
      %p331 = por %p329, %p330
      %p332 = scmp.ne.s32.totalorder %s323, %s324
      %p333 = scmp.eq.s32.totalorder %s40, 0
      %p334 = por %p332, %p333
      %p335 = scmp.ne.s32.totalorder %s323, %s324
      %p336 = scmp.eq.s32.totalorder %s41, 1
      %p337 = por %p335, %p336
      %p339 = scmp.ne.s32.totalorder %s324, %s338
      %p340 = scmp.eq.s32.totalorder %s41, 0
      %p341 = por %p339, %p340
      %s343 = sadd.s32 %s342, 1
      %p346 = scmp.eq.s32.totalorder %s35, 1
      %p347 = scmp.ne.s32.totalorder %s342, %s344
      %p348 = scmp.eq.s32.totalorder %s35, 0
      %p349 = por %p347, %p348
      %p350 = scmp.ne.s32.totalorder %s342, %s344
      %p351 = scmp.eq.s32.totalorder %s40, 1
      %p352 = por %p350, %p351
      %p353 = scmp.ne.s32.totalorder %s344, %s345
      %p354 = scmp.eq.s32.totalorder %s40, 0
      %p355 = por %p353, %p354
      %p356 = scmp.ne.s32.totalorder %s344, %s345
      %p357 = scmp.eq.s32.totalorder %s41, 1
      %p358 = por %p356, %p357
      %p360 = scmp.ne.s32.totalorder %s345, %s359
      %p361 = scmp.eq.s32.totalorder %s41, 0
      %p362 = por %p360, %p361
      %s364 = sadd.s32 %s363, 1
      %p367 = scmp.eq.s32.totalorder %s35, 1
      %p368 = scmp.ne.s32.totalorder %s363, %s365
      %p369 = scmp.eq.s32.totalorder %s35, 0
      %p370 = por %p368, %p369
      %p371 = scmp.ne.s32.totalorder %s363, %s365
      %p372 = scmp.eq.s32.totalorder %s40, 1
      %p373 = por %p371, %p372
      %p374 = scmp.ne.s32.totalorder %s365, %s366
      %p375 = scmp.eq.s32.totalorder %s40, 0
      %p376 = por %p374, %p375
      %p377 = scmp.ne.s32.totalorder %s365, %s366
      %p378 = scmp.eq.s32.totalorder %s41, 1
      %p379 = por %p377, %p378
      %p381 = scmp.ne.s32.totalorder %s366, %s380
      %p382 = scmp.eq.s32.totalorder %s41, 0
      %p383 = por %p381, %p382
      %s385 = sadd.s32 %s384, 1
      %p388 = scmp.eq.s32.totalorder %s35, 1
      %p389 = scmp.ne.s32.totalorder %s384, %s386
      %p390 = scmp.eq.s32.totalorder %s35, 0
      %p391 = por %p389, %p390
      %p392 = scmp.ne.s32.totalorder %s384, %s386
      %p393 = scmp.eq.s32.totalorder %s40, 1
      %p394 = por %p392, %p393
      %p395 = scmp.ne.s32.totalorder %s386, %s387
      %p396 = scmp.eq.s32.totalorder %s40, 0
      %p397 = por %p395, %p396
      %p398 = scmp.ne.s32.totalorder %s386, %s387
      %p399 = scmp.eq.s32.totalorder %s41, 1
      %p400 = por %p398, %p399
      %p402 = scmp.ne.s32.totalorder %s387, %s401
      %p403 = scmp.eq.s32.totalorder %s41, 0
      %p404 = por %p402, %p403
      %s406 = sadd.s32 %s405, 1
      %p409 = scmp.eq.s32.totalorder %s35, 1
      %p410 = scmp.ne.s32.totalorder %s405, %s407
      %p411 = scmp.eq.s32.totalorder %s35, 0
      %p412 = por %p410, %p411
      %p413 = scmp.ne.s32.totalorder %s405, %s407
      %p414 = scmp.eq.s32.totalorder %s40, 1
      %p415 = por %p413, %p414
      %p416 = scmp.ne.s32.totalorder %s407, %s408
      %p417 = scmp.eq.s32.totalorder %s40, 0
      %p418 = por %p416, %p417
      %p419 = scmp.ne.s32.totalorder %s407, %s408
      %p420 = scmp.eq.s32.totalorder %s41, 1
      %p421 = por %p419, %p420
      %p423 = scmp.ne.s32.totalorder %s408, %s422
      %p424 = scmp.eq.s32.totalorder %s41, 0
      %p425 = por %p423, %p424
      %s427 = sadd.s32 %s426, 1
      %p430 = scmp.eq.s32.totalorder %s35, 1
      %p431 = scmp.ne.s32.totalorder %s426, %s428
      %p432 = scmp.eq.s32.totalorder %s35, 0
      %p433 = por %p431, %p432
      %p434 = scmp.ne.s32.totalorder %s426, %s428
      %p435 = scmp.eq.s32.totalorder %s40, 1
      %p436 = por %p434, %p435
      %p437 = scmp.ne.s32.totalorder %s428, %s429
      %p438 = scmp.eq.s32.totalorder %s40, 0
      %p439 = por %p437, %p438
      %p440 = scmp.ne.s32.totalorder %s428, %s429
      %p441 = scmp.eq.s32.totalorder %s41, 1
      %p442 = por %p440, %p441
      %p444 = scmp.ne.s32.totalorder %s429, %s443
      %p445 = scmp.eq.s32.totalorder %s41, 0
      %p446 = por %p444, %p445
      %s447 = ssub.s32 %s35, %s42
      %p448 = scmp.eq.s32.totalorder %s447, 0
      %s450 = sadd.s32 %s449, 1
      %s451 = scalar_select %p448, %s449, %s450
      %p454 = pneg %p448
      %p455 = scmp.eq.s32.totalorder %s35, 1
      %p456 = por %p454, %p455
      %p457 = scmp.ne.s32.totalorder %s449, %s452
      %p458 = scmp.eq.s32.totalorder %s35, 0
      %p459 = por %p457, %p458
      %p460 = scmp.ne.s32.totalorder %s449, %s452
      %p461 = scmp.eq.s32.totalorder %s40, 1
      %p462 = por %p460, %p461
      %p463 = scmp.ne.s32.totalorder %s452, %s453
      %p464 = scmp.eq.s32.totalorder %s40, 0
      %p465 = por %p463, %p464
      %p466 = scmp.ne.s32.totalorder %s452, %s453
      %p467 = scmp.eq.s32.totalorder %s41, 1
      %p468 = por %p466, %p467
      %p470 = scmp.ne.s32.totalorder %s453, %s469
      %p471 = scmp.eq.s32.totalorder %s41, 0
      %p472 = por %p470, %p471
      %p473 = scmp.le.s32.totalorder 1, %s35
      %p474 = scmp.lt.s32.totalorder %s35, 3
      %p475 = pnand %p473, %p474
      %p476 = pneg %p475
      // Predicated region
      $region9: #{forward.1} parent=5 // pred_check
        _
      $region10: #{forward.1} parent=5 // pred_check_branch
        %478 = sbr.rel (%p475) target = $region12
      $region11: #{forward.1} parent=5 // pred_region
        %s479 = ssub.s32 %s35, 1
        // Predicated region
        $region13: #{forward.1} parent=11 // pred_check
          %p480 = pneg %p82
        $region14: #{forward.1} parent=11 // pred_check_branch
          %482 = sbr.rel (%p480) target = $region16
        $region15: #{forward.1} parent=11 // pred_region
          %484 = vsyncadd [#allocation4], 0
          %s485 = sshll.u32 %s1, 4
          %s486 = int_to_ptr.hbm [resolvable:$true] %s485
          %s487 = sshll.u32 [#allocation3], 4
          %s488 = int_to_ptr.vmem [resolvable:$true] %s487
          %493 = dma.hbm_to_vmem [thread:$0]  %s486, 3072, %s488, [#allocation4], 128, 128, 8
        $region16: #{forward.1} parent=11 // pred_fallthru
          _
        // Predicated region
        $region17: #{forward.1} parent=11 // pred_check
          %p494 = pneg %p103
        $region18: #{forward.1} parent=11 // pred_check_branch
          %496 = sbr.rel (%p494) target = $region20
        $region19: #{forward.1} parent=11 // pred_region
          %498 = vsyncadd [#allocation6], 0
          %s499 = sshll.u32 %s2, 4
          %s500 = int_to_ptr.hbm [resolvable:$true] %s499
          %s501 = sshll.u32 [#allocation5], 4
          %s502 = int_to_ptr.vmem [resolvable:$true] %s501
          %507 = dma.hbm_to_vmem [thread:$0]  %s500, 18432, %s502, [#allocation6], 256, 256, 16
        $region20: #{forward.1} parent=11 // pred_fallthru
          _
        // Predicated region
        $region21: #{forward.1} parent=11 // pred_check
          %p508 = pneg %p124
        $region22: #{forward.1} parent=11 // pred_check_branch
          %510 = sbr.rel (%p508) target = $region24
        $region23: #{forward.1} parent=11 // pred_region
          %512 = vsyncadd [#allocation6], 0
          %s514 = sshll.u32 %s3, 4
          %s515 = int_to_ptr.hbm [resolvable:$true] %s514
          %s516 = sshll.u32 [#allocation7], 4
          %s517 = int_to_ptr.vmem [resolvable:$true] %s516
          %519 = dma.hbm_to_vmem [thread:$0]  %s515, 32, %s517, [#allocation6]
        $region24: #{forward.1} parent=11 // pred_fallthru
          _
        // Predicated region
        $region25: #{forward.1} parent=11 // pred_check
          %p520 = pneg %p145
        $region26: #{forward.1} parent=11 // pred_check_branch
          %522 = sbr.rel (%p520) target = $region28
        $region27: #{forward.1} parent=11 // pred_region
          %524 = vsyncadd [#allocation9], 0
          %s525 = sshll.u32 %s4, 4
          %s526 = int_to_ptr.hbm [resolvable:$true] %s525
          %s527 = sshll.u32 [#allocation8], 4
          %s528 = int_to_ptr.vmem [resolvable:$true] %s527
          %533 = dma.hbm_to_vmem [thread:$0]  %s526, 1536, %s528, [#allocation9], 128, 128, 8
        $region28: #{forward.1} parent=11 // pred_fallthru
          _
        // Predicated region
        $region29: #{forward.1} parent=11 // pred_check
          %p534 = pneg %p166
        $region30: #{forward.1} parent=11 // pred_check_branch
          %536 = sbr.rel (%p534) target = $region32
        $region31: #{forward.1} parent=11 // pred_region
          %538 = vsyncadd [#allocation9], 0
          %s539 = sshll.u32 %s5, 4
          %s540 = int_to_ptr.hbm [resolvable:$true] %s539
          %s541 = sshll.u32 [#allocation10], 4
          %s542 = int_to_ptr.vmem [resolvable:$true] %s541
          %547 = dma.hbm_to_vmem [thread:$0]  %s540, 24576, %s542, [#allocation9], 256, 256, 16
        $region32: #{forward.1} parent=11 // pred_fallthru
          _
        // Predicated region
        $region33: #{forward.1} parent=11 // pred_check
          %p548 = pneg %p187
        $region34: #{forward.1} parent=11 // pred_check_branch
          %550 = sbr.rel (%p548) target = $region36
        $region35: #{forward.1} parent=11 // pred_region
          %552 = vsyncadd [#allocation12], 0
          %s554 = sshll.u32 %s6, 4
          %s555 = int_to_ptr.hbm [resolvable:$true] %s554
          %s556 = sshll.u32 [#allocation11], 4
          %s557 = int_to_ptr.vmem [resolvable:$true] %s556
          %559 = dma.hbm_to_vmem [thread:$0]  %s555, 32, %s557, [#allocation12]
        $region36: #{forward.1} parent=11 // pred_fallthru
          _
        // Predicated region
        $region37: #{forward.1} parent=11 // pred_check
          %p560 = pneg %p208
        $region38: #{forward.1} parent=11 // pred_check_branch
          %562 = sbr.rel (%p560) target = $region40
        $region39: #{forward.1} parent=11 // pred_region
          %564 = vsyncadd [#allocation12], 0
          %s565 = sshll.u32 %s7, 4
          %s566 = int_to_ptr.hbm [resolvable:$true] %s565
          %s567 = sshll.u32 [#allocation13], 4
          %s568 = int_to_ptr.vmem [resolvable:$true] %s567
          %573 = dma.hbm_to_vmem [thread:$0]  %s566, 768, %s568, [#allocation12], 128, 128, 8
        $region40: #{forward.1} parent=11 // pred_fallthru
          _
        // Predicated region
        $region41: #{forward.1} parent=11 // pred_check
          %p574 = pneg %p229
        $region42: #{forward.1} parent=11 // pred_check_branch
          %576 = sbr.rel (%p574) target = $region44
        $region43: #{forward.1} parent=11 // pred_region
          %578 = vsyncadd [#allocation15], 0
          %s579 = sshll.u32 %s8, 4
          %s580 = int_to_ptr.hbm [resolvable:$true] %s579
          %s581 = sshll.u32 [#allocation14], 4
          %s582 = int_to_ptr.vmem [resolvable:$true] %s581
          %587 = dma.hbm_to_vmem [thread:$0]  %s580, 24576, %s582, [#allocation15], 256, 256, 16
        $region44: #{forward.1} parent=11 // pred_fallthru
          _
        // Predicated region
        $region45: #{forward.1} parent=11 // pred_check
          %p588 = pneg %p250
        $region46: #{forward.1} parent=11 // pred_check_branch
          %590 = sbr.rel (%p588) target = $region48
        $region47: #{forward.1} parent=11 // pred_region
          %592 = vsyncadd [#allocation15], 0
          %s594 = sshll.u32 %s9, 4
          %s595 = int_to_ptr.hbm [resolvable:$true] %s594
          %s596 = sshll.u32 [#allocation16], 4
          %s597 = int_to_ptr.vmem [resolvable:$true] %s596
          %599 = dma.hbm_to_vmem [thread:$0]  %s595, 32, %s597, [#allocation15]
        $region48: #{forward.1} parent=11 // pred_fallthru
          _
        // Predicated region
        $region49: #{forward.1} parent=11 // pred_check
          %p600 = pneg %p271
        $region50: #{forward.1} parent=11 // pred_check_branch
          %602 = sbr.rel (%p600) target = $region52
        $region51: #{forward.1} parent=11 // pred_region
          %604 = vsyncadd [#allocation18], 0
          %s605 = sshll.u32 %s10, 4
          %s606 = int_to_ptr.hbm [resolvable:$true] %s605
          %s607 = sshll.u32 [#allocation17], 4
          %s608 = int_to_ptr.vmem [resolvable:$true] %s607
          %613 = dma.hbm_to_vmem [thread:$0]  %s606, 384, %s608, [#allocation18], 128, 128, 8
        $region52: #{forward.1} parent=11 // pred_fallthru
          _
        // Predicated region
        $region53: #{forward.1} parent=11 // pred_check
          %p614 = pneg %p292
        $region54: #{forward.1} parent=11 // pred_check_branch
          %616 = sbr.rel (%p614) target = $region56
        $region55: #{forward.1} parent=11 // pred_region
          _
        $region56: #{forward.1} parent=11 // pred_fallthru
          _
        // Predicated region
        $region57: #{forward.1} parent=11 // pred_check
          %p617 = pneg %p313
        $region58: #{forward.1} parent=11 // pred_check_branch
          %619 = sbr.rel (%p617) target = $region60
        $region59: #{forward.1} parent=11 // pred_region
          %621 = vsyncadd [#allocation18], 0
          %s623 = sshll.u32 %s12, 4
          %s624 = int_to_ptr.hbm [resolvable:$true] %s623
          %s625 = sshll.u32 [#allocation19], 4
          %s626 = int_to_ptr.vmem [resolvable:$true] %s625
          %628 = dma.hbm_to_vmem [thread:$0]  %s624, 32, %s626, [#allocation18]
        $region60: #{forward.1} parent=11 // pred_fallthru
          _
        // Predicated region
        $region61: #{forward.1} parent=11 // pred_check
          %p629 = pneg %p334
        $region62: #{forward.1} parent=11 // pred_check_branch
          %631 = sbr.rel (%p629) target = $region64
        $region63: #{forward.1} parent=11 // pred_region
          %633 = vsyncadd [#allocation21], 0
          %s634 = sshll.u32 %s13, 4
          %s635 = int_to_ptr.hbm [resolvable:$true] %s634
          %s636 = sshll.u32 [#allocation20], 4
          %s637 = int_to_ptr.vmem [resolvable:$true] %s636
          %642 = dma.hbm_to_vmem [thread:$0]  %s635, 192, %s637, [#allocation21], 64, 64, 4
        $region64: #{forward.1} parent=11 // pred_fallthru
          _
        // Predicated region
        $region65: #{forward.1} parent=11 // pred_check
          %p643 = pneg %p355
        $region66: #{forward.1} parent=11 // pred_check_branch
          %645 = sbr.rel (%p643) target = $region68
        $region67: #{forward.1} parent=11 // pred_region
          _
        $region68: #{forward.1} parent=11 // pred_fallthru
          _
        // Predicated region
        $region69: #{forward.1} parent=11 // pred_check
          %p646 = pneg %p376
        $region70: #{forward.1} parent=11 // pred_check_branch
          %648 = sbr.rel (%p646) target = $region72
        $region71: #{forward.1} parent=11 // pred_region
          %650 = vsyncadd [#allocation21], 0
          %s652 = sshll.u32 %s15, 4
          %s653 = int_to_ptr.hbm [resolvable:$true] %s652
          %s654 = sshll.u32 [#allocation22], 4
          %s655 = int_to_ptr.vmem [resolvable:$true] %s654
          %657 = dma.hbm_to_vmem [thread:$0]  %s653, 32, %s655, [#allocation21]
        $region72: #{forward.1} parent=11 // pred_fallthru
          _
        // Predicated region
        $region73: #{forward.1} parent=11 // pred_check
          %p658 = pneg %p397
        $region74: #{forward.1} parent=11 // pred_check_branch
          %660 = sbr.rel (%p658) target = $region76
        $region75: #{forward.1} parent=11 // pred_region
          %662 = vsyncadd [#allocation24], 0
          %s664 = sshll.u32 %s16, 4
          %s665 = int_to_ptr.hbm [resolvable:$true] %s664
          %s666 = sshll.u32 [#allocation23], 4
          %s667 = int_to_ptr.vmem [resolvable:$true] %s666
          %669 = dma.hbm_to_vmem [thread:$0]  %s665, 32, %s667, [#allocation24]
        $region76: #{forward.1} parent=11 // pred_fallthru
          _
        // Predicated region
        $region77: #{forward.1} parent=11 // pred_check
          %p670 = pneg %p418
        $region78: #{forward.1} parent=11 // pred_check_branch
          %672 = sbr.rel (%p670) target = $region80
        $region79: #{forward.1} parent=11 // pred_region
          _
        $region80: #{forward.1} parent=11 // pred_fallthru
          _
        // Predicated region
        $region81: #{forward.1} parent=11 // pred_check
          %p673 = pneg %p439
        $region82: #{forward.1} parent=11 // pred_check_branch
          %675 = sbr.rel (%p673) target = $region84
        $region83: #{forward.1} parent=11 // pred_region
          _
        $region84: #{forward.1} parent=11 // pred_fallthru
          _
      $region12: #{forward.1} parent=5 // pred_fallthru
        _
      %p676 = scmp.lt.s32.totalorder %s35, 2
      // Predicated region
      $region85: #{forward.1} parent=5 // pred_check
        %p677 = pneg %p676
      $region86: #{forward.1} parent=5 // pred_check_branch
        %679 = sbr.rel (%p677) target = $region88
      $region87: #{forward.1} parent=5 // pred_region
        // Predicated region
        $region89: #{forward.1} parent=87 // pred_check
          %p680 = pneg %p55
        $region90: #{forward.1} parent=87 // pred_check_branch
          %682 = sbr.rel (%p680) target = $region92
        $region91: #{forward.1} parent=87 // pred_region
          %s683 = smul.u32 16, %s35
          %p684 = scmp.lt.s32.totalorder %s683, 31
          %s685 = scalar_select %p684, %s683, 31
          %s686 = smul.addr %s685, 2
          %s687 = smul.addr %s686, 8
          %s688 = scalar_lea.vmem %s0, %s687
          %s689 = smul.u32 16, %s35
        $region92: #{forward.1} parent=87 // pred_fallthru
          _
      $region88: #{forward.1} parent=5 // pred_fallthru
        _
      %p690 = scmp.le.s32.totalorder 1, %s35
      %p691 = scmp.lt.s32.totalorder %s35, 3
      %p692 = pnand %p690, %p691
      %p693 = pneg %p692
      // Predicated region
      $region93: #{forward.1} parent=5 // pred_check
        _
      $region94: #{forward.1} parent=5 // pred_check_branch
        %695 = sbr.rel (%p692) target = $region96
      $region95: #{forward.1} parent=5 // pred_region
        %s696 = ssub.s32 %s35, 1
        // Predicated region
        $region97: #{forward.1} parent=95 // pred_check
          %p697 = pneg %p82
        $region98: #{forward.1} parent=95 // pred_check_branch
          %699 = sbr.rel (%p697) target = $region100
        $region99: #{forward.1} parent=95 // pred_region
          %701 = dma.done [#allocation4], 3072
        $region100: #{forward.1} parent=95 // pred_fallthru
          _
        // Predicated region
        $region101: #{forward.1} parent=95 // pred_check
          %p702 = pneg %p103
        $region102: #{forward.1} parent=95 // pred_check_branch
          %704 = sbr.rel (%p702) target = $region104
        $region103: #{forward.1} parent=95 // pred_region
          %706 = dma.done [#allocation6], 18432
        $region104: #{forward.1} parent=95 // pred_fallthru
          _
        // Predicated region
        $region105: #{forward.1} parent=95 // pred_check
          %p707 = pneg %p124
        $region106: #{forward.1} parent=95 // pred_check_branch
          %709 = sbr.rel (%p707) target = $region108
        $region107: #{forward.1} parent=95 // pred_region
          %711 = dma.done [#allocation6], 32
        $region108: #{forward.1} parent=95 // pred_fallthru
          _
        // Predicated region
        $region109: #{forward.1} parent=95 // pred_check
          %p712 = pneg %p145
        $region110: #{forward.1} parent=95 // pred_check_branch
          %714 = sbr.rel (%p712) target = $region112
        $region111: #{forward.1} parent=95 // pred_region
          %716 = dma.done [#allocation9], 1536
        $region112: #{forward.1} parent=95 // pred_fallthru
          _
        // Predicated region
        $region113: #{forward.1} parent=95 // pred_check
          %p717 = pneg %p166
        $region114: #{forward.1} parent=95 // pred_check_branch
          %719 = sbr.rel (%p717) target = $region116
        $region115: #{forward.1} parent=95 // pred_region
          %721 = dma.done [#allocation9], 24576
        $region116: #{forward.1} parent=95 // pred_fallthru
          _
        // Predicated region
        $region117: #{forward.1} parent=95 // pred_check
          %p722 = pneg %p187
        $region118: #{forward.1} parent=95 // pred_check_branch
          %724 = sbr.rel (%p722) target = $region120
        $region119: #{forward.1} parent=95 // pred_region
          %726 = dma.done [#allocation12], 32
        $region120: #{forward.1} parent=95 // pred_fallthru
          _
        // Predicated region
        $region121: #{forward.1} parent=95 // pred_check
          %p727 = pneg %p208
        $region122: #{forward.1} parent=95 // pred_check_branch
          %729 = sbr.rel (%p727) target = $region124
        $region123: #{forward.1} parent=95 // pred_region
          %731 = dma.done [#allocation12], 768
        $region124: #{forward.1} parent=95 // pred_fallthru
          _
        // Predicated region
        $region125: #{forward.1} parent=95 // pred_check
          %p732 = pneg %p229
        $region126: #{forward.1} parent=95 // pred_check_branch
          %734 = sbr.rel (%p732) target = $region128
        $region127: #{forward.1} parent=95 // pred_region
          %736 = dma.done [#allocation15], 24576
        $region128: #{forward.1} parent=95 // pred_fallthru
          _
        // Predicated region
        $region129: #{forward.1} parent=95 // pred_check
          %p737 = pneg %p250
        $region130: #{forward.1} parent=95 // pred_check_branch
          %739 = sbr.rel (%p737) target = $region132
        $region131: #{forward.1} parent=95 // pred_region
          %741 = dma.done [#allocation15], 32
        $region132: #{forward.1} parent=95 // pred_fallthru
          _
        // Predicated region
        $region133: #{forward.1} parent=95 // pred_check
          %p742 = pneg %p271
        $region134: #{forward.1} parent=95 // pred_check_branch
          %744 = sbr.rel (%p742) target = $region136
        $region135: #{forward.1} parent=95 // pred_region
          %746 = dma.done [#allocation18], 384
        $region136: #{forward.1} parent=95 // pred_fallthru
          _
        // Predicated region
        $region137: #{forward.1} parent=95 // pred_check
          %p747 = pneg %p313
        $region138: #{forward.1} parent=95 // pred_check_branch
          %749 = sbr.rel (%p747) target = $region140
        $region139: #{forward.1} parent=95 // pred_region
          %751 = dma.done [#allocation18], 32
        $region140: #{forward.1} parent=95 // pred_fallthru
          _
        // Predicated region
        $region141: #{forward.1} parent=95 // pred_check
          %p752 = pneg %p334
        $region142: #{forward.1} parent=95 // pred_check_branch
          %754 = sbr.rel (%p752) target = $region144
        $region143: #{forward.1} parent=95 // pred_region
          %756 = dma.done [#allocation21], 192
        $region144: #{forward.1} parent=95 // pred_fallthru
          _
        // Predicated region
        $region145: #{forward.1} parent=95 // pred_check
          %p757 = pneg %p376
        $region146: #{forward.1} parent=95 // pred_check_branch
          %759 = sbr.rel (%p757) target = $region148
        $region147: #{forward.1} parent=95 // pred_region
          %761 = dma.done [#allocation21], 32
        $region148: #{forward.1} parent=95 // pred_fallthru
          _
        // Predicated region
        $region149: #{forward.1} parent=95 // pred_check
          %p762 = pneg %p397
        $region150: #{forward.1} parent=95 // pred_check_branch
          %764 = sbr.rel (%p762) target = $region152
        $region151: #{forward.1} parent=95 // pred_region
          %766 = dma.done [#allocation24], 32
        $region152: #{forward.1} parent=95 // pred_fallthru
          _
        %s767 = smul.u32 16, %s40
        %p768 = scmp.lt.s32.totalorder %s767, 31
        %s769 = scalar_select %p768, %s767, 31
        %s770 = smul.addr %s769, 2
        %s771 = smul.addr %s770, 8
        %s772 = scalar_lea.vmem %s0, %s771
        %p773 = pneg %p61
        %p774 = pneg %p58
        %p775 = pneg %p82
        %p776 = pneg %p79
        %p777 = pneg %p103
        %p778 = pneg %p100
        %p779 = pneg %p124
        %p780 = pneg %p121
        %p781 = pneg %p145
        %p782 = pneg %p142
        %p783 = pneg %p166
        %p784 = pneg %p163
        %p785 = pneg %p187
        %p786 = pneg %p184
        %p787 = pneg %p208
        %p788 = pneg %p205
        %p789 = pneg %p229
        %p790 = pneg %p226
        %p791 = pneg %p250
        %p792 = pneg %p247
        %p793 = pneg %p271
        %p794 = pneg %p268
        %p795 = pneg %p292
        %p796 = pneg %p289
        %p797 = pneg %p313
        %p798 = pneg %p310
        %p799 = pneg %p334
        %p800 = pneg %p331
        %p801 = pneg %p355
        %p802 = pneg %p352
        %p803 = pneg %p376
        %p804 = pneg %p373
        %p805 = pneg %p397
        %p806 = pneg %p394
        %p807 = pneg %p418
        %p808 = pneg %p415
        %p809 = pneg %p439
        %p810 = pneg %p436
        %p811 = pneg %p465
        %p812 = pneg %p462
        %p813 = scmp.lt.s32.totalorder %s40, 1
        %s814 = scalar_select %p813, %s40, 1
        %s815 = smul.addr %s814, 2
        %s816 = scalar_lea.vmem %s19, %s815
        %s817 = smul.u32 16, %s40
        %p818 = scmp.lt.s32.totalorder %s817, 31
        %s819 = scalar_select %p818, %s817, 31
        %s820 = smul.addr %s819, 2
        %s821 = smul.addr %s820, 8
        %s822 = scalar_lea.vmem %s0, %s821
        %s823 = smul.u32 16, %s40
        %p824 = scmp.lt.s32.totalorder %s40, 1
        %s825 = scalar_select %p824, %s40, 1
        %s826 = smul.addr %s825, 2
        %s827 = scalar_lea.vmem %s19, %s826
        %v828 = vld [vmem:[%s822] sm:$0xff]
        %v829 = vld [vmem:[%s822 + $0x8] sm:$0xff]
        %v830 = vld [vmem:[%s822 + $0x10] sm:$0xff]
        %v831 = vld [vmem:[%s822 + $0x18] sm:$0xff]
        %v832 = vld [vmem:[%s822 + $0x20] sm:$0xff]
        %v833 = vld [vmem:[%s822 + $0x28] sm:$0xff]
        %v834 = vld [vmem:[%s822 + $0x30] sm:$0xff]
        %v835 = vld [vmem:[%s822 + $0x38] sm:$0xff]
        %v836 = vld [vmem:[%s822 + $0x40] sm:$0xff]
        %v837 = vld [vmem:[%s822 + $0x48] sm:$0xff]
        %v838 = vld [vmem:[%s822 + $0x50] sm:$0xff]
        %v839 = vld [vmem:[%s822 + $0x58] sm:$0xff]
        %v840 = vld [vmem:[%s822 + $0x60] sm:$0xff]
        %v841 = vld [vmem:[%s822 + $0x68] sm:$0xff]
        %v842 = vld [vmem:[%s822 + $0x70] sm:$0xff]
        %v843 = vld [vmem:[%s822 + $0x78] sm:$0xff]
        %v844 = vld [vmem:[%s822 + $0x80] sm:$0xff]
        %v845 = vld [vmem:[%s822 + $0x88] sm:$0xff]
        %v846 = vld [vmem:[%s822 + $0x90] sm:$0xff]
        %v847 = vld [vmem:[%s822 + $0x98] sm:$0xff]
        %v848 = vld [vmem:[%s822 + $0xa0] sm:$0xff]
        %v849 = vld [vmem:[%s822 + $0xa8] sm:$0xff]
        %v850 = vld [vmem:[%s822 + $0xb0] sm:$0xff]
        %v851 = vld [vmem:[%s822 + $0xb8] sm:$0xff]
        %v852 = vld [vmem:[%s822 + $0xc0] sm:$0xff]
        %v853 = vld [vmem:[%s822 + $0xc8] sm:$0xff]
        %v854 = vld [vmem:[%s822 + $0xd0] sm:$0xff]
        %v855 = vld [vmem:[%s822 + $0xd8] sm:$0xff]
        %v856 = vld [vmem:[%s822 + $0xe0] sm:$0xff]
        %v857 = vld [vmem:[%s822 + $0xe8] sm:$0xff]
        %v858 = vld [vmem:[%s822 + $0xf0] sm:$0xff]
        %v859 = vld [vmem:[%s822 + $0xf8] sm:$0xff]
        %v860 = vld [vmem:[#allocation3] sm:$0xff]
        %v861 = vld [vmem:[#allocation3 + $0x8] sm:$0xff]
        %v862 = vld [vmem:[#allocation3 + $0x10] sm:$0xff]
        %v863 = vld [vmem:[#allocation3 + $0x18] sm:$0xff]
        %v864 = vld [vmem:[#allocation3 + $0x20] sm:$0xff]
        %v865 = vld [vmem:[#allocation3 + $0x28] sm:$0xff]
        %v866 = vld [vmem:[#allocation3 + $0x30] sm:$0xff]
        %v867 = vld [vmem:[#allocation3 + $0x38] sm:$0xff]
        %868 = vmatpush.msra.mxu0 %v858
        %869 = vmatpush.msra.mxu0 %v856
        %870 = vmatpush.msra.mxu0 %v854
        %871 = vmatpush.msra.mxu0 %v852
        %872 = vmatpush.msra.mxu0 %v850
        %873 = vmatpush.msra.mxu0 %v848
        %874 = vmatpush.msra.mxu0 %v846
        %875 = vmatpush.msra.mxu0 %v844
        %876 = vmatpush.msra.mxu0 %v842
        %877 = vmatpush.msra.mxu0 %v840
        %878 = vmatpush.msra.mxu0 %v838
        %879 = vmatpush.msra.mxu0 %v836
        %880 = vmatpush.msra.mxu0 %v834
        %881 = vmatpush.msra.mxu0 %v832
        %882 = vmatpush.msra.mxu0 %v830
        %883 = vmatpush.msra.mxu0 %v828
        %884 = vmatmul.f32.gmra.mxu0 %v860
        %v885 = vpop.f32.mrf.mxu0
        %v886 = vadd.f32 0.0, %v885
        %887 = vmatmul.f32.gmra.mxu0 %v861
        %v888 = vpop.f32.mrf.mxu0
        %v889 = vadd.f32 0.0, %v888
        %890 = vmatmul.f32.gmra.mxu0 %v862
        %v891 = vpop.f32.mrf.mxu0
        %v892 = vadd.f32 0.0, %v891
        %893 = vmatmul.f32.gmra.mxu0 %v863
        %v894 = vpop.f32.mrf.mxu0
        %v895 = vadd.f32 0.0, %v894
        %896 = vmatmul.f32.gmra.mxu0 %v864
        %v897 = vpop.f32.mrf.mxu0
        %v898 = vadd.f32 0.0, %v897
        %899 = vmatmul.f32.gmra.mxu0 %v865
        %v900 = vpop.f32.mrf.mxu0
        %v901 = vadd.f32 0.0, %v900
        %902 = vmatmul.f32.gmra.mxu0 %v866
        %v903 = vpop.f32.mrf.mxu0
        %v904 = vadd.f32 0.0, %v903
        %905 = vmatmul.f32.gmra.mxu0 %v867
        %v906 = vpop.f32.mrf.mxu0
        %v907 = vadd.f32 0.0, %v906
        %908 = vdwg.mxu0
        %909 = vmatpush.msra.mxu0 %v859
        %910 = vmatpush.msra.mxu0 %v857
        %911 = vmatpush.msra.mxu0 %v855
        %912 = vmatpush.msra.mxu0 %v853
        %913 = vmatpush.msra.mxu0 %v851
        %914 = vmatpush.msra.mxu0 %v849
        %915 = vmatpush.msra.mxu0 %v847
        %916 = vmatpush.msra.mxu0 %v845
        %917 = vmatpush.msra.mxu0 %v843
        %918 = vmatpush.msra.mxu0 %v841
        %919 = vmatpush.msra.mxu0 %v839
        %920 = vmatpush.msra.mxu0 %v837
        %921 = vmatpush.msra.mxu0 %v835
        %922 = vmatpush.msra.mxu0 %v833
        %923 = vmatpush.msra.mxu0 %v831
        %924 = vmatpush.msra.mxu0 %v829
        %925 = vmatmul.f32.gmra.mxu0 %v860
        %v926 = vpop.f32.mrf.mxu0
        %v927 = vadd.f32 0.0, %v926
        %928 = vmatmul.f32.gmra.mxu0 %v861
        %v929 = vpop.f32.mrf.mxu0
        %v930 = vadd.f32 0.0, %v929
        %931 = vmatmul.f32.gmra.mxu0 %v862
        %v932 = vpop.f32.mrf.mxu0
        %v933 = vadd.f32 0.0, %v932
        %934 = vmatmul.f32.gmra.mxu0 %v863
        %v935 = vpop.f32.mrf.mxu0
        %v936 = vadd.f32 0.0, %v935
        %937 = vmatmul.f32.gmra.mxu0 %v864
        %v938 = vpop.f32.mrf.mxu0
        %v939 = vadd.f32 0.0, %v938
        %940 = vmatmul.f32.gmra.mxu0 %v865
        %v941 = vpop.f32.mrf.mxu0
        %v942 = vadd.f32 0.0, %v941
        %943 = vmatmul.f32.gmra.mxu0 %v866
        %v944 = vpop.f32.mrf.mxu0
        %v945 = vadd.f32 0.0, %v944
        %946 = vmatmul.f32.gmra.mxu0 %v867
        %v947 = vpop.f32.mrf.mxu0
        %v948 = vadd.f32 0.0, %v947
        %949 = vdwg.mxu0
        %v950 = vld [vmem:[#allocation5] sm:$0xff]
        %v951 = vld [vmem:[#allocation5 + $0x8] sm:$0xff]
        %v952 = vld [vmem:[#allocation5 + $0x10] sm:$0xff]
        %v953 = vld [vmem:[#allocation5 + $0x18] sm:$0xff]
        %v954 = vld [vmem:[#allocation5 + $0x20] sm:$0xff]
        %v955 = vld [vmem:[#allocation5 + $0x28] sm:$0xff]
        %v956 = vld [vmem:[#allocation5 + $0x30] sm:$0xff]
        %v957 = vld [vmem:[#allocation5 + $0x38] sm:$0xff]
        %v958 = vld [vmem:[#allocation5 + $0x40] sm:$0xff]
        %v959 = vld [vmem:[#allocation5 + $0x48] sm:$0xff]
        %v960 = vld [vmem:[#allocation5 + $0x50] sm:$0xff]
        %v961 = vld [vmem:[#allocation5 + $0x58] sm:$0xff]
        %v962 = vld [vmem:[#allocation5 + $0x60] sm:$0xff]
        %v963 = vld [vmem:[#allocation5 + $0x68] sm:$0xff]
        %v964 = vld [vmem:[#allocation5 + $0x70] sm:$0xff]
        %v965 = vld [vmem:[#allocation5 + $0x78] sm:$0xff]
        %v966 = vld [vmem:[#allocation5 + $0x80] sm:$0xff]
        %v967 = vld [vmem:[#allocation5 + $0x88] sm:$0xff]
        %v968 = vld [vmem:[#allocation5 + $0x90] sm:$0xff]
        %v969 = vld [vmem:[#allocation5 + $0x98] sm:$0xff]
        %v970 = vld [vmem:[#allocation5 + $0xa0] sm:$0xff]
        %v971 = vld [vmem:[#allocation5 + $0xa8] sm:$0xff]
        %v972 = vld [vmem:[#allocation5 + $0xb0] sm:$0xff]
        %v973 = vld [vmem:[#allocation5 + $0xb8] sm:$0xff]
        %v974 = vld [vmem:[#allocation5 + $0xc0] sm:$0xff]
        %v975 = vld [vmem:[#allocation5 + $0xc8] sm:$0xff]
        %v976 = vld [vmem:[#allocation5 + $0xd0] sm:$0xff]
        %v977 = vld [vmem:[#allocation5 + $0xd8] sm:$0xff]
        %v978 = vld [vmem:[#allocation5 + $0xe0] sm:$0xff]
        %v979 = vld [vmem:[#allocation5 + $0xe8] sm:$0xff]
        %v980 = vld [vmem:[#allocation5 + $0xf0] sm:$0xff]
        %v981 = vld [vmem:[#allocation5 + $0xf8] sm:$0xff]
        %v982 = vld [vmem:[#allocation5 + $0x100] sm:$0xff]
        %v983 = vld [vmem:[#allocation5 + $0x108] sm:$0xff]
        %v984 = vld [vmem:[#allocation5 + $0x110] sm:$0xff]
        %v985 = vld [vmem:[#allocation5 + $0x118] sm:$0xff]
        %v986 = vld [vmem:[#allocation5 + $0x120] sm:$0xff]
        %v987 = vld [vmem:[#allocation5 + $0x128] sm:$0xff]
        %v988 = vld [vmem:[#allocation5 + $0x130] sm:$0xff]
        %v989 = vld [vmem:[#allocation5 + $0x138] sm:$0xff]
        %v990 = vld [vmem:[#allocation5 + $0x140] sm:$0xff]
        %v991 = vld [vmem:[#allocation5 + $0x148] sm:$0xff]
        %v992 = vld [vmem:[#allocation5 + $0x150] sm:$0xff]
        %v993 = vld [vmem:[#allocation5 + $0x158] sm:$0xff]
        %v994 = vld [vmem:[#allocation5 + $0x160] sm:$0xff]
        %v995 = vld [vmem:[#allocation5 + $0x168] sm:$0xff]
        %v996 = vld [vmem:[#allocation5 + $0x170] sm:$0xff]
        %v997 = vld [vmem:[#allocation5 + $0x178] sm:$0xff]
        %s998 = scalar_lea.vmem [#allocation3], 64
        %v999 = vld [vmem:[%s998] sm:$0xff]
        %v1000 = vld [vmem:[%s998 + $0x8] sm:$0xff]
        %v1001 = vld [vmem:[%s998 + $0x10] sm:$0xff]
        %v1002 = vld [vmem:[%s998 + $0x18] sm:$0xff]
        %v1003 = vld [vmem:[%s998 + $0x20] sm:$0xff]
        %v1004 = vld [vmem:[%s998 + $0x28] sm:$0xff]
        %v1005 = vld [vmem:[%s998 + $0x30] sm:$0xff]
        %v1006 = vld [vmem:[%s998 + $0x38] sm:$0xff]
        %1007 = vmatpush.msra.mxu0 %v858
        %1008 = vmatpush.msra.mxu0 %v856
        %1009 = vmatpush.msra.mxu0 %v854
        %1010 = vmatpush.msra.mxu0 %v852
        %1011 = vmatpush.msra.mxu0 %v850
        %1012 = vmatpush.msra.mxu0 %v848
        %1013 = vmatpush.msra.mxu0 %v846
        %1014 = vmatpush.msra.mxu0 %v844
        %1015 = vmatpush.msra.mxu0 %v842
        %1016 = vmatpush.msra.mxu0 %v840
        %1017 = vmatpush.msra.mxu0 %v838
        %1018 = vmatpush.msra.mxu0 %v836
        %1019 = vmatpush.msra.mxu0 %v834
        %1020 = vmatpush.msra.mxu0 %v832
        %1021 = vmatpush.msra.mxu0 %v830
        %1022 = vmatpush.msra.mxu0 %v828
        %1023 = vmatmul.f32.gmra.mxu0 %v999
        %v1024 = vpop.f32.mrf.mxu0
        %v1025 = vadd.f32 0.0, %v1024
        %1026 = vmatmul.f32.gmra.mxu0 %v1000
        %v1027 = vpop.f32.mrf.mxu0
        %v1028 = vadd.f32 0.0, %v1027
        %1029 = vmatmul.f32.gmra.mxu0 %v1001
        %v1030 = vpop.f32.mrf.mxu0
        %v1031 = vadd.f32 0.0, %v1030
        %1032 = vmatmul.f32.gmra.mxu0 %v1002
        %v1033 = vpop.f32.mrf.mxu0
        %v1034 = vadd.f32 0.0, %v1033
        %1035 = vmatmul.f32.gmra.mxu0 %v1003
        %v1036 = vpop.f32.mrf.mxu0
        %v1037 = vadd.f32 0.0, %v1036
        %1038 = vmatmul.f32.gmra.mxu0 %v1004
        %v1039 = vpop.f32.mrf.mxu0
        %v1040 = vadd.f32 0.0, %v1039
        %1041 = vmatmul.f32.gmra.mxu0 %v1005
        %v1042 = vpop.f32.mrf.mxu0
        %v1043 = vadd.f32 0.0, %v1042
        %1044 = vmatmul.f32.gmra.mxu0 %v1006
        %v1045 = vpop.f32.mrf.mxu0
        %v1046 = vadd.f32 0.0, %v1045
        %1047 = vdwg.mxu0
        %1048 = vmatpush.msra.mxu0 %v859
        %1049 = vmatpush.msra.mxu0 %v857
        %1050 = vmatpush.msra.mxu0 %v855
        %1051 = vmatpush.msra.mxu0 %v853
        %1052 = vmatpush.msra.mxu0 %v851
        %1053 = vmatpush.msra.mxu0 %v849
        %1054 = vmatpush.msra.mxu0 %v847
        %1055 = vmatpush.msra.mxu0 %v845
        %1056 = vmatpush.msra.mxu0 %v843
        %1057 = vmatpush.msra.mxu0 %v841
        %1058 = vmatpush.msra.mxu0 %v839
        %1059 = vmatpush.msra.mxu0 %v837
        %1060 = vmatpush.msra.mxu0 %v835
        %1061 = vmatpush.msra.mxu0 %v833
        %1062 = vmatpush.msra.mxu0 %v831
        %1063 = vmatpush.msra.mxu0 %v829
        %1064 = vmatmul.f32.gmra.mxu0 %v999
        %v1065 = vpop.f32.mrf.mxu0
        %v1066 = vadd.f32 0.0, %v1065
        %1067 = vmatmul.f32.gmra.mxu0 %v1000
        %v1068 = vpop.f32.mrf.mxu0
        %v1069 = vadd.f32 0.0, %v1068
        %1070 = vmatmul.f32.gmra.mxu0 %v1001
        %v1071 = vpop.f32.mrf.mxu0
        %v1072 = vadd.f32 0.0, %v1071
        %1073 = vmatmul.f32.gmra.mxu0 %v1002
        %v1074 = vpop.f32.mrf.mxu0
        %v1075 = vadd.f32 0.0, %v1074
        %1076 = vmatmul.f32.gmra.mxu0 %v1003
        %v1077 = vpop.f32.mrf.mxu0
        %v1078 = vadd.f32 0.0, %v1077
        %1079 = vmatmul.f32.gmra.mxu0 %v1004
        %v1080 = vpop.f32.mrf.mxu0
        %v1081 = vadd.f32 0.0, %v1080
        %1082 = vmatmul.f32.gmra.mxu0 %v1005
        %v1083 = vpop.f32.mrf.mxu0
        %v1084 = vadd.f32 0.0, %v1083
        %1085 = vmatmul.f32.gmra.mxu0 %v1006
        %v1086 = vpop.f32.mrf.mxu0
        %v1087 = vadd.f32 0.0, %v1086
        %1088 = vdwg.mxu0
        %s1089 = scalar_lea.vmem [#allocation5], 384
        %v1090 = vld [vmem:[%s1089] sm:$0xff]
        %v1091 = vld [vmem:[%s1089 + $0x8] sm:$0xff]
        %v1092 = vld [vmem:[%s1089 + $0x10] sm:$0xff]
        %v1093 = vld [vmem:[%s1089 + $0x18] sm:$0xff]
        %v1094 = vld [vmem:[%s1089 + $0x20] sm:$0xff]
        %v1095 = vld [vmem:[%s1089 + $0x28] sm:$0xff]
        %v1096 = vld [vmem:[%s1089 + $0x30] sm:$0xff]
        %v1097 = vld [vmem:[%s1089 + $0x38] sm:$0xff]
        %v1098 = vld [vmem:[%s1089 + $0x40] sm:$0xff]
        %v1099 = vld [vmem:[%s1089 + $0x48] sm:$0xff]
        %v1100 = vld [vmem:[%s1089 + $0x50] sm:$0xff]
        %v1101 = vld [vmem:[%s1089 + $0x58] sm:$0xff]
        %v1102 = vld [vmem:[%s1089 + $0x60] sm:$0xff]
        %v1103 = vld [vmem:[%s1089 + $0x68] sm:$0xff]
        %v1104 = vld [vmem:[%s1089 + $0x70] sm:$0xff]
        %v1105 = vld [vmem:[%s1089 + $0x78] sm:$0xff]
        %v1106 = vld [vmem:[%s1089 + $0x80] sm:$0xff]
        %v1107 = vld [vmem:[%s1089 + $0x88] sm:$0xff]
        %v1108 = vld [vmem:[%s1089 + $0x90] sm:$0xff]
        %v1109 = vld [vmem:[%s1089 + $0x98] sm:$0xff]
        %v1110 = vld [vmem:[%s1089 + $0xa0] sm:$0xff]
        %v1111 = vld [vmem:[%s1089 + $0xa8] sm:$0xff]
        %v1112 = vld [vmem:[%s1089 + $0xb0] sm:$0xff]
        %v1113 = vld [vmem:[%s1089 + $0xb8] sm:$0xff]
        %v1114 = vld [vmem:[%s1089 + $0xc0] sm:$0xff]
        %v1115 = vld [vmem:[%s1089 + $0xc8] sm:$0xff]
        %v1116 = vld [vmem:[%s1089 + $0xd0] sm:$0xff]
        %v1117 = vld [vmem:[%s1089 + $0xd8] sm:$0xff]
        %v1118 = vld [vmem:[%s1089 + $0xe0] sm:$0xff]
        %v1119 = vld [vmem:[%s1089 + $0xe8] sm:$0xff]
        %v1120 = vld [vmem:[%s1089 + $0xf0] sm:$0xff]
        %v1121 = vld [vmem:[%s1089 + $0xf8] sm:$0xff]
        %v1122 = vld [vmem:[%s1089 + $0x100] sm:$0xff]
        %v1123 = vld [vmem:[%s1089 + $0x108] sm:$0xff]
        %v1124 = vld [vmem:[%s1089 + $0x110] sm:$0xff]
        %v1125 = vld [vmem:[%s1089 + $0x118] sm:$0xff]
        %v1126 = vld [vmem:[%s1089 + $0x120] sm:$0xff]
        %v1127 = vld [vmem:[%s1089 + $0x128] sm:$0xff]
        %v1128 = vld [vmem:[%s1089 + $0x130] sm:$0xff]
        %v1129 = vld [vmem:[%s1089 + $0x138] sm:$0xff]
        %v1130 = vld [vmem:[%s1089 + $0x140] sm:$0xff]
        %v1131 = vld [vmem:[%s1089 + $0x148] sm:$0xff]
        %v1132 = vld [vmem:[%s1089 + $0x150] sm:$0xff]
        %v1133 = vld [vmem:[%s1089 + $0x158] sm:$0xff]
        %v1134 = vld [vmem:[%s1089 + $0x160] sm:$0xff]
        %v1135 = vld [vmem:[%s1089 + $0x168] sm:$0xff]
        %v1136 = vld [vmem:[%s1089 + $0x170] sm:$0xff]
        %v1137 = vld [vmem:[%s1089 + $0x178] sm:$0xff]
        %vm1138 = vcmask 523264
        %v1140 = vsel %vm1138, %v1066, 0
        %v1143 = vsel %vm1138, %v1069, 0
        %v1146 = vsel %vm1138, %v1072, 0
        %v1149 = vsel %vm1138, %v1075, 0
        %v1152 = vsel %vm1138, %v1078, 0
        %v1155 = vsel %vm1138, %v1081, 0
        %v1158 = vsel %vm1138, %v1084, 0
        %v1161 = vsel %vm1138, %v1087, 0
        %1163 = vmatpush.msra.mxu0 %v1120
        %1164 = vmatpush.msra.mxu0 %v1118
        %1165 = vmatpush.msra.mxu0 %v1116
        %1166 = vmatpush.msra.mxu0 %v1114
        %1167 = vmatpush.msra.mxu0 %v1112
        %1168 = vmatpush.msra.mxu0 %v1110
        %1169 = vmatpush.msra.mxu0 %v1108
        %1170 = vmatpush.msra.mxu0 %v1106
        %1171 = vmatpush.msra.mxu0 %v1104
        %1172 = vmatpush.msra.mxu0 %v1102
        %1173 = vmatpush.msra.mxu0 %v1100
        %1174 = vmatpush.msra.mxu0 %v1098
        %1175 = vmatpush.msra.mxu0 %v1096
        %1176 = vmatpush.msra.mxu0 %v1094
        %1177 = vmatpush.msra.mxu0 %v1092
        %1178 = vmatpush.msra.mxu0 %v1090
        %1179 = vmatmul.f32.gmra.mxu0 %v1025
        %v1180 = vpop.f32.mrf.mxu0
        %v1181 = vadd.f32 0.0, %v1180
        %1182 = vmatmul.f32.gmra.mxu0 %v1028
        %v1183 = vpop.f32.mrf.mxu0
        %v1184 = vadd.f32 0.0, %v1183
        %1185 = vmatmul.f32.gmra.mxu0 %v1031
        %v1186 = vpop.f32.mrf.mxu0
        %v1187 = vadd.f32 0.0, %v1186
        %1188 = vmatmul.f32.gmra.mxu0 %v1034
        %v1189 = vpop.f32.mrf.mxu0
        %v1190 = vadd.f32 0.0, %v1189
        %1191 = vmatmul.f32.gmra.mxu0 %v1037
        %v1192 = vpop.f32.mrf.mxu0
        %v1193 = vadd.f32 0.0, %v1192
        %1194 = vmatmul.f32.gmra.mxu0 %v1040
        %v1195 = vpop.f32.mrf.mxu0
        %v1196 = vadd.f32 0.0, %v1195
        %1197 = vmatmul.f32.gmra.mxu0 %v1043
        %v1198 = vpop.f32.mrf.mxu0
        %v1199 = vadd.f32 0.0, %v1198
        %1200 = vmatmul.f32.gmra.mxu0 %v1046
        %v1201 = vpop.f32.mrf.mxu0
        %v1202 = vadd.f32 0.0, %v1201
        %1203 = vdwg.mxu0
        %1204 = vmatpush.msra.mxu0 0.0
        %1205 = vmatpush.msra.mxu0 0.0
        %1206 = vmatpush.msra.mxu0 0.0
        %1207 = vmatpush.msra.mxu0 0.0
        %1208 = vmatpush.msra.mxu0 0.0
        %1209 = vmatpush.msra.mxu0 0.0
        %1210 = vmatpush.msra.mxu0 0.0
        %1211 = vmatpush.msra.mxu0 0.0
        %1212 = vmatpush.msra.mxu0 %v1136
        %1213 = vmatpush.msra.mxu0 %v1134
        %1214 = vmatpush.msra.mxu0 %v1132
        %1215 = vmatpush.msra.mxu0 %v1130
        %1216 = vmatpush.msra.mxu0 %v1128
        %1217 = vmatpush.msra.mxu0 %v1126
        %1218 = vmatpush.msra.mxu0 %v1124
        %1219 = vmatpush.msra.mxu0 %v1122
        %1220 = vmatmul.f32.gmra.mxu0 %v1140
        %v1221 = vpop.f32.mrf.mxu0
        %v1222 = vadd.f32 %v1181, %v1221
        %1223 = vmatmul.f32.gmra.mxu0 %v1143
        %v1224 = vpop.f32.mrf.mxu0
        %v1225 = vadd.f32 %v1184, %v1224
        %1226 = vmatmul.f32.gmra.mxu0 %v1146
        %v1227 = vpop.f32.mrf.mxu0
        %v1228 = vadd.f32 %v1187, %v1227
        %1229 = vmatmul.f32.gmra.mxu0 %v1149
        %v1230 = vpop.f32.mrf.mxu0
        %v1231 = vadd.f32 %v1190, %v1230
        %1232 = vmatmul.f32.gmra.mxu0 %v1152
        %v1233 = vpop.f32.mrf.mxu0
        %v1234 = vadd.f32 %v1193, %v1233
        %1235 = vmatmul.f32.gmra.mxu0 %v1155
        %v1236 = vpop.f32.mrf.mxu0
        %v1237 = vadd.f32 %v1196, %v1236
        %1238 = vmatmul.f32.gmra.mxu0 %v1158
        %v1239 = vpop.f32.mrf.mxu0
        %v1240 = vadd.f32 %v1199, %v1239
        %1241 = vmatmul.f32.gmra.mxu0 %v1161
        %v1242 = vpop.f32.mrf.mxu0
        %v1243 = vadd.f32 %v1202, %v1242
        %1244 = vdwg.mxu0
        %1245 = vmatpush.msra.mxu0 %v1121
        %1246 = vmatpush.msra.mxu0 %v1119
        %1247 = vmatpush.msra.mxu0 %v1117
        %1248 = vmatpush.msra.mxu0 %v1115
        %1249 = vmatpush.msra.mxu0 %v1113
        %1250 = vmatpush.msra.mxu0 %v1111
        %1251 = vmatpush.msra.mxu0 %v1109
        %1252 = vmatpush.msra.mxu0 %v1107
        %1253 = vmatpush.msra.mxu0 %v1105
        %1254 = vmatpush.msra.mxu0 %v1103
        %1255 = vmatpush.msra.mxu0 %v1101
        %1256 = vmatpush.msra.mxu0 %v1099
        %1257 = vmatpush.msra.mxu0 %v1097
        %1258 = vmatpush.msra.mxu0 %v1095
        %1259 = vmatpush.msra.mxu0 %v1093
        %1260 = vmatpush.msra.mxu0 %v1091
        %1261 = vmatmul.f32.gmra.mxu0 %v1025
        %v1262 = vpop.f32.mrf.mxu0
        %v1263 = vadd.f32 0.0, %v1262
        %1264 = vmatmul.f32.gmra.mxu0 %v1028
        %v1265 = vpop.f32.mrf.mxu0
        %v1266 = vadd.f32 0.0, %v1265
        %1267 = vmatmul.f32.gmra.mxu0 %v1031
        %v1268 = vpop.f32.mrf.mxu0
        %v1269 = vadd.f32 0.0, %v1268
        %1270 = vmatmul.f32.gmra.mxu0 %v1034
        %v1271 = vpop.f32.mrf.mxu0
        %v1272 = vadd.f32 0.0, %v1271
        %1273 = vmatmul.f32.gmra.mxu0 %v1037
        %v1274 = vpop.f32.mrf.mxu0
        %v1275 = vadd.f32 0.0, %v1274
        %1276 = vmatmul.f32.gmra.mxu0 %v1040
        %v1277 = vpop.f32.mrf.mxu0
        %v1278 = vadd.f32 0.0, %v1277
        %1279 = vmatmul.f32.gmra.mxu0 %v1043
        %v1280 = vpop.f32.mrf.mxu0
        %v1281 = vadd.f32 0.0, %v1280
        %1282 = vmatmul.f32.gmra.mxu0 %v1046
        %v1283 = vpop.f32.mrf.mxu0
        %v1284 = vadd.f32 0.0, %v1283
        %1285 = vdwg.mxu0
        %1286 = vmatpush.msra.mxu0 0.0
        %1287 = vmatpush.msra.mxu0 0.0
        %1288 = vmatpush.msra.mxu0 0.0
        %1289 = vmatpush.msra.mxu0 0.0
        %1290 = vmatpush.msra.mxu0 0.0
        %1291 = vmatpush.msra.mxu0 0.0
        %1292 = vmatpush.msra.mxu0 0.0
        %1293 = vmatpush.msra.mxu0 0.0
        %1294 = vmatpush.msra.mxu0 %v1137
        %1295 = vmatpush.msra.mxu0 %v1135
        %1296 = vmatpush.msra.mxu0 %v1133
        %1297 = vmatpush.msra.mxu0 %v1131
        %1298 = vmatpush.msra.mxu0 %v1129
        %1299 = vmatpush.msra.mxu0 %v1127
        %1300 = vmatpush.msra.mxu0 %v1125
        %1301 = vmatpush.msra.mxu0 %v1123
        %1302 = vmatmul.f32.gmra.mxu0 %v1140
        %v1303 = vpop.f32.mrf.mxu0
        %v1304 = vadd.f32 %v1263, %v1303
        %1305 = vmatmul.f32.gmra.mxu0 %v1143
        %v1306 = vpop.f32.mrf.mxu0
        %v1307 = vadd.f32 %v1266, %v1306
        %1308 = vmatmul.f32.gmra.mxu0 %v1146
        %v1309 = vpop.f32.mrf.mxu0
        %v1310 = vadd.f32 %v1269, %v1309
        %1311 = vmatmul.f32.gmra.mxu0 %v1149
        %v1312 = vpop.f32.mrf.mxu0
        %v1313 = vadd.f32 %v1272, %v1312
        %1314 = vmatmul.f32.gmra.mxu0 %v1152
        %v1315 = vpop.f32.mrf.mxu0
        %v1316 = vadd.f32 %v1275, %v1315
        %1317 = vmatmul.f32.gmra.mxu0 %v1155
        %v1318 = vpop.f32.mrf.mxu0
        %v1319 = vadd.f32 %v1278, %v1318
        %1320 = vmatmul.f32.gmra.mxu0 %v1158
        %v1321 = vpop.f32.mrf.mxu0
        %v1322 = vadd.f32 %v1281, %v1321
        %1323 = vmatmul.f32.gmra.mxu0 %v1161
        %v1324 = vpop.f32.mrf.mxu0
        %v1325 = vadd.f32 %v1284, %v1324
        %1326 = vdwg.mxu0
        %v1328 = vsel %vm1138, %v927, 0
        %v1331 = vsel %vm1138, %v930, 0
        %v1334 = vsel %vm1138, %v933, 0
        %v1337 = vsel %vm1138, %v936, 0
        %v1340 = vsel %vm1138, %v939, 0
        %v1343 = vsel %vm1138, %v942, 0
        %v1346 = vsel %vm1138, %v945, 0
        %v1349 = vsel %vm1138, %v948, 0
        %1351 = vmatpush.msra.mxu0 %v980
        %1352 = vmatpush.msra.mxu0 %v978
        %1353 = vmatpush.msra.mxu0 %v976
        %1354 = vmatpush.msra.mxu0 %v974
        %1355 = vmatpush.msra.mxu0 %v972
        %1356 = vmatpush.msra.mxu0 %v970
        %1357 = vmatpush.msra.mxu0 %v968
        %1358 = vmatpush.msra.mxu0 %v966
        %1359 = vmatpush.msra.mxu0 %v964
        %1360 = vmatpush.msra.mxu0 %v962
        %1361 = vmatpush.msra.mxu0 %v960
        %1362 = vmatpush.msra.mxu0 %v958
        %1363 = vmatpush.msra.mxu0 %v956
        %1364 = vmatpush.msra.mxu0 %v954
        %1365 = vmatpush.msra.mxu0 %v952
        %1366 = vmatpush.msra.mxu0 %v950
        %1367 = vmatmul.f32.gmra.mxu0 %v886
        %v1368 = vpop.f32.mrf.mxu0
        %v1369 = vadd.f32 %v1222, %v1368
        %1370 = vmatmul.f32.gmra.mxu0 %v889
        %v1371 = vpop.f32.mrf.mxu0
        %v1372 = vadd.f32 %v1225, %v1371
        %1373 = vmatmul.f32.gmra.mxu0 %v892
        %v1374 = vpop.f32.mrf.mxu0
        %v1375 = vadd.f32 %v1228, %v1374
        %1376 = vmatmul.f32.gmra.mxu0 %v895
        %v1377 = vpop.f32.mrf.mxu0
        %v1378 = vadd.f32 %v1231, %v1377
        %1379 = vmatmul.f32.gmra.mxu0 %v898
        %v1380 = vpop.f32.mrf.mxu0
        %v1381 = vadd.f32 %v1234, %v1380
        %1382 = vmatmul.f32.gmra.mxu0 %v901
        %v1383 = vpop.f32.mrf.mxu0
        %v1384 = vadd.f32 %v1237, %v1383
        %1385 = vmatmul.f32.gmra.mxu0 %v904
        %v1386 = vpop.f32.mrf.mxu0
        %v1387 = vadd.f32 %v1240, %v1386
        %1388 = vmatmul.f32.gmra.mxu0 %v907
        %v1389 = vpop.f32.mrf.mxu0
        %v1390 = vadd.f32 %v1243, %v1389
        %1391 = vdwg.mxu0
        %1392 = vmatpush.msra.mxu0 0.0
        %1393 = vmatpush.msra.mxu0 0.0
        %1394 = vmatpush.msra.mxu0 0.0
        %1395 = vmatpush.msra.mxu0 0.0
        %1396 = vmatpush.msra.mxu0 0.0
        %1397 = vmatpush.msra.mxu0 0.0
        %1398 = vmatpush.msra.mxu0 0.0
        %1399 = vmatpush.msra.mxu0 0.0
        %1400 = vmatpush.msra.mxu0 %v996
        %1401 = vmatpush.msra.mxu0 %v994
        %1402 = vmatpush.msra.mxu0 %v992
        %1403 = vmatpush.msra.mxu0 %v990
        %1404 = vmatpush.msra.mxu0 %v988
        %1405 = vmatpush.msra.mxu0 %v986
        %1406 = vmatpush.msra.mxu0 %v984
        %1407 = vmatpush.msra.mxu0 %v982
        %1408 = vmatmul.f32.gmra.mxu0 %v1328
        %v1409 = vpop.f32.mrf.mxu0
        %v1410 = vadd.f32 %v1369, %v1409
        %1411 = vmatmul.f32.gmra.mxu0 %v1331
        %v1412 = vpop.f32.mrf.mxu0
        %v1413 = vadd.f32 %v1372, %v1412
        %1414 = vmatmul.f32.gmra.mxu0 %v1334
        %v1415 = vpop.f32.mrf.mxu0
        %v1416 = vadd.f32 %v1375, %v1415
        %1417 = vmatmul.f32.gmra.mxu0 %v1337
        %v1418 = vpop.f32.mrf.mxu0
        %v1419 = vadd.f32 %v1378, %v1418
        %1420 = vmatmul.f32.gmra.mxu0 %v1340
        %v1421 = vpop.f32.mrf.mxu0
        %v1422 = vadd.f32 %v1381, %v1421
        %1423 = vmatmul.f32.gmra.mxu0 %v1343
        %v1424 = vpop.f32.mrf.mxu0
        %v1425 = vadd.f32 %v1384, %v1424
        %1426 = vmatmul.f32.gmra.mxu0 %v1346
        %v1427 = vpop.f32.mrf.mxu0
        %v1428 = vadd.f32 %v1387, %v1427
        %1429 = vmatmul.f32.gmra.mxu0 %v1349
        %v1430 = vpop.f32.mrf.mxu0
        %v1431 = vadd.f32 %v1390, %v1430
        %1432 = vdwg.mxu0
        %1433 = vmatpush.msra.mxu0 %v981
        %1434 = vmatpush.msra.mxu0 %v979
        %1435 = vmatpush.msra.mxu0 %v977
        %1436 = vmatpush.msra.mxu0 %v975
        %1437 = vmatpush.msra.mxu0 %v973
        %1438 = vmatpush.msra.mxu0 %v971
        %1439 = vmatpush.msra.mxu0 %v969
        %1440 = vmatpush.msra.mxu0 %v967
        %1441 = vmatpush.msra.mxu0 %v965
        %1442 = vmatpush.msra.mxu0 %v963
        %1443 = vmatpush.msra.mxu0 %v961
        %1444 = vmatpush.msra.mxu0 %v959
        %1445 = vmatpush.msra.mxu0 %v957
        %1446 = vmatpush.msra.mxu0 %v955
        %1447 = vmatpush.msra.mxu0 %v953
        %1448 = vmatpush.msra.mxu0 %v951
        %1449 = vmatmul.f32.gmra.mxu0 %v886
        %v1450 = vpop.f32.mrf.mxu0
        %v1451 = vadd.f32 %v1304, %v1450
        %1452 = vmatmul.f32.gmra.mxu0 %v889
        %v1453 = vpop.f32.mrf.mxu0
        %v1454 = vadd.f32 %v1307, %v1453
        %1455 = vmatmul.f32.gmra.mxu0 %v892
        %v1456 = vpop.f32.mrf.mxu0
        %v1457 = vadd.f32 %v1310, %v1456
        %1458 = vmatmul.f32.gmra.mxu0 %v895
        %v1459 = vpop.f32.mrf.mxu0
        %v1460 = vadd.f32 %v1313, %v1459
        %1461 = vmatmul.f32.gmra.mxu0 %v898
        %v1462 = vpop.f32.mrf.mxu0
        %v1463 = vadd.f32 %v1316, %v1462
        %1464 = vmatmul.f32.gmra.mxu0 %v901
        %v1465 = vpop.f32.mrf.mxu0
        %v1466 = vadd.f32 %v1319, %v1465
        %1467 = vmatmul.f32.gmra.mxu0 %v904
        %v1468 = vpop.f32.mrf.mxu0
        %v1469 = vadd.f32 %v1322, %v1468
        %1470 = vmatmul.f32.gmra.mxu0 %v907
        %v1471 = vpop.f32.mrf.mxu0
        %v1472 = vadd.f32 %v1325, %v1471
        %1473 = vdwg.mxu0
        %1474 = vmatpush.msra.mxu0 0.0
        %1475 = vmatpush.msra.mxu0 0.0
        %1476 = vmatpush.msra.mxu0 0.0
        %1477 = vmatpush.msra.mxu0 0.0
        %1478 = vmatpush.msra.mxu0 0.0
        %1479 = vmatpush.msra.mxu0 0.0
        %1480 = vmatpush.msra.mxu0 0.0
        %1481 = vmatpush.msra.mxu0 0.0
        %1482 = vmatpush.msra.mxu0 %v997
        %1483 = vmatpush.msra.mxu0 %v995
        %1484 = vmatpush.msra.mxu0 %v993
        %1485 = vmatpush.msra.mxu0 %v991
        %1486 = vmatpush.msra.mxu0 %v989
        %1487 = vmatpush.msra.mxu0 %v987
        %1488 = vmatpush.msra.mxu0 %v985
        %1489 = vmatpush.msra.mxu0 %v983
        %1490 = vmatmul.f32.gmra.mxu0 %v1328
        %v1491 = vpop.f32.mrf.mxu0
        %v1492 = vadd.f32 %v1451, %v1491
        %1493 = vmatmul.f32.gmra.mxu0 %v1331
        %v1494 = vpop.f32.mrf.mxu0
        %v1495 = vadd.f32 %v1454, %v1494
        %1496 = vmatmul.f32.gmra.mxu0 %v1334
        %v1497 = vpop.f32.mrf.mxu0
        %v1498 = vadd.f32 %v1457, %v1497
        %1499 = vmatmul.f32.gmra.mxu0 %v1337
        %v1500 = vpop.f32.mrf.mxu0
        %v1501 = vadd.f32 %v1460, %v1500
        %1502 = vmatmul.f32.gmra.mxu0 %v1340
        %v1503 = vpop.f32.mrf.mxu0
        %v1504 = vadd.f32 %v1463, %v1503
        %1505 = vmatmul.f32.gmra.mxu0 %v1343
        %v1506 = vpop.f32.mrf.mxu0
        %v1507 = vadd.f32 %v1466, %v1506
        %1508 = vmatmul.f32.gmra.mxu0 %v1346
        %v1509 = vpop.f32.mrf.mxu0
        %v1510 = vadd.f32 %v1469, %v1509
        %1511 = vmatmul.f32.gmra.mxu0 %v1349
        %v1512 = vpop.f32.mrf.mxu0
        %v1513 = vadd.f32 %v1472, %v1512
        %1514 = vdwg.mxu0
        %s1515 = scalar_lea.vmem [#allocation3], 128
        %v1516 = vld [vmem:[%s1515] sm:$0xff]
        %v1517 = vld [vmem:[%s1515 + $0x8] sm:$0xff]
        %v1518 = vld [vmem:[%s1515 + $0x10] sm:$0xff]
        %v1519 = vld [vmem:[%s1515 + $0x18] sm:$0xff]
        %v1520 = vld [vmem:[%s1515 + $0x20] sm:$0xff]
        %v1521 = vld [vmem:[%s1515 + $0x28] sm:$0xff]
        %v1522 = vld [vmem:[%s1515 + $0x30] sm:$0xff]
        %v1523 = vld [vmem:[%s1515 + $0x38] sm:$0xff]
        %1524 = vmatpush.msra.mxu0 %v858
        %1525 = vmatpush.msra.mxu0 %v856
        %1526 = vmatpush.msra.mxu0 %v854
        %1527 = vmatpush.msra.mxu0 %v852
        %1528 = vmatpush.msra.mxu0 %v850
        %1529 = vmatpush.msra.mxu0 %v848
        %1530 = vmatpush.msra.mxu0 %v846
        %1531 = vmatpush.msra.mxu0 %v844
        %1532 = vmatpush.msra.mxu0 %v842
        %1533 = vmatpush.msra.mxu0 %v840
        %1534 = vmatpush.msra.mxu0 %v838
        %1535 = vmatpush.msra.mxu0 %v836
        %1536 = vmatpush.msra.mxu0 %v834
        %1537 = vmatpush.msra.mxu0 %v832
        %1538 = vmatpush.msra.mxu0 %v830
        %1539 = vmatpush.msra.mxu0 %v828
        %1540 = vmatmul.f32.gmra.mxu0 %v1516
        %v1541 = vpop.f32.mrf.mxu0
        %v1542 = vadd.f32 0.0, %v1541
        %1543 = vmatmul.f32.gmra.mxu0 %v1517
        %v1544 = vpop.f32.mrf.mxu0
        %v1545 = vadd.f32 0.0, %v1544
        %1546 = vmatmul.f32.gmra.mxu0 %v1518
        %v1547 = vpop.f32.mrf.mxu0
        %v1548 = vadd.f32 0.0, %v1547
        %1549 = vmatmul.f32.gmra.mxu0 %v1519
        %v1550 = vpop.f32.mrf.mxu0
        %v1551 = vadd.f32 0.0, %v1550
        %1552 = vmatmul.f32.gmra.mxu0 %v1520
        %v1553 = vpop.f32.mrf.mxu0
        %v1554 = vadd.f32 0.0, %v1553
        %1555 = vmatmul.f32.gmra.mxu0 %v1521
        %v1556 = vpop.f32.mrf.mxu0
        %v1557 = vadd.f32 0.0, %v1556
        %1558 = vmatmul.f32.gmra.mxu0 %v1522
        %v1559 = vpop.f32.mrf.mxu0
        %v1560 = vadd.f32 0.0, %v1559
        %1561 = vmatmul.f32.gmra.mxu0 %v1523
        %v1562 = vpop.f32.mrf.mxu0
        %v1563 = vadd.f32 0.0, %v1562
        %1564 = vdwg.mxu0
        %1565 = vmatpush.msra.mxu0 %v859
        %1566 = vmatpush.msra.mxu0 %v857
        %1567 = vmatpush.msra.mxu0 %v855
        %1568 = vmatpush.msra.mxu0 %v853
        %1569 = vmatpush.msra.mxu0 %v851
        %1570 = vmatpush.msra.mxu0 %v849
        %1571 = vmatpush.msra.mxu0 %v847
        %1572 = vmatpush.msra.mxu0 %v845
        %1573 = vmatpush.msra.mxu0 %v843
        %1574 = vmatpush.msra.mxu0 %v841
        %1575 = vmatpush.msra.mxu0 %v839
        %1576 = vmatpush.msra.mxu0 %v837
        %1577 = vmatpush.msra.mxu0 %v835
        %1578 = vmatpush.msra.mxu0 %v833
        %1579 = vmatpush.msra.mxu0 %v831
        %1580 = vmatpush.msra.mxu0 %v829
        %1581 = vmatmul.f32.gmra.mxu0 %v1516
        %v1582 = vpop.f32.mrf.mxu0
        %v1583 = vadd.f32 0.0, %v1582
        %1584 = vmatmul.f32.gmra.mxu0 %v1517
        %v1585 = vpop.f32.mrf.mxu0
        %v1586 = vadd.f32 0.0, %v1585
        %1587 = vmatmul.f32.gmra.mxu0 %v1518
        %v1588 = vpop.f32.mrf.mxu0
        %v1589 = vadd.f32 0.0, %v1588
        %1590 = vmatmul.f32.gmra.mxu0 %v1519
        %v1591 = vpop.f32.mrf.mxu0
        %v1592 = vadd.f32 0.0, %v1591
        %1593 = vmatmul.f32.gmra.mxu0 %v1520
        %v1594 = vpop.f32.mrf.mxu0
        %v1595 = vadd.f32 0.0, %v1594
        %1596 = vmatmul.f32.gmra.mxu0 %v1521
        %v1597 = vpop.f32.mrf.mxu0
        %v1598 = vadd.f32 0.0, %v1597
        %1599 = vmatmul.f32.gmra.mxu0 %v1522
        %v1600 = vpop.f32.mrf.mxu0
        %v1601 = vadd.f32 0.0, %v1600
        %1602 = vmatmul.f32.gmra.mxu0 %v1523
        %v1603 = vpop.f32.mrf.mxu0
        %v1604 = vadd.f32 0.0, %v1603
        %1605 = vdwg.mxu0
        %s1606 = scalar_lea.vmem [#allocation5], 768
        %v1607 = vld [vmem:[%s1606] sm:$0xff]
        %v1608 = vld [vmem:[%s1606 + $0x8] sm:$0xff]
        %v1609 = vld [vmem:[%s1606 + $0x10] sm:$0xff]
        %v1610 = vld [vmem:[%s1606 + $0x18] sm:$0xff]
        %v1611 = vld [vmem:[%s1606 + $0x20] sm:$0xff]
        %v1612 = vld [vmem:[%s1606 + $0x28] sm:$0xff]
        %v1613 = vld [vmem:[%s1606 + $0x30] sm:$0xff]
        %v1614 = vld [vmem:[%s1606 + $0x38] sm:$0xff]
        %v1615 = vld [vmem:[%s1606 + $0x40] sm:$0xff]
        %v1616 = vld [vmem:[%s1606 + $0x48] sm:$0xff]
        %v1617 = vld [vmem:[%s1606 + $0x50] sm:$0xff]
        %v1618 = vld [vmem:[%s1606 + $0x58] sm:$0xff]
        %v1619 = vld [vmem:[%s1606 + $0x60] sm:$0xff]
        %v1620 = vld [vmem:[%s1606 + $0x68] sm:$0xff]
        %v1621 = vld [vmem:[%s1606 + $0x70] sm:$0xff]
        %v1622 = vld [vmem:[%s1606 + $0x78] sm:$0xff]
        %v1623 = vld [vmem:[%s1606 + $0x80] sm:$0xff]
        %v1624 = vld [vmem:[%s1606 + $0x88] sm:$0xff]
        %v1625 = vld [vmem:[%s1606 + $0x90] sm:$0xff]
        %v1626 = vld [vmem:[%s1606 + $0x98] sm:$0xff]
        %v1627 = vld [vmem:[%s1606 + $0xa0] sm:$0xff]
        %v1628 = vld [vmem:[%s1606 + $0xa8] sm:$0xff]
        %v1629 = vld [vmem:[%s1606 + $0xb0] sm:$0xff]
        %v1630 = vld [vmem:[%s1606 + $0xb8] sm:$0xff]
        %v1631 = vld [vmem:[%s1606 + $0xc0] sm:$0xff]
        %v1632 = vld [vmem:[%s1606 + $0xc8] sm:$0xff]
        %v1633 = vld [vmem:[%s1606 + $0xd0] sm:$0xff]
        %v1634 = vld [vmem:[%s1606 + $0xd8] sm:$0xff]
        %v1635 = vld [vmem:[%s1606 + $0xe0] sm:$0xff]
        %v1636 = vld [vmem:[%s1606 + $0xe8] sm:$0xff]
        %v1637 = vld [vmem:[%s1606 + $0xf0] sm:$0xff]
        %v1638 = vld [vmem:[%s1606 + $0xf8] sm:$0xff]
        %v1639 = vld [vmem:[%s1606 + $0x100] sm:$0xff]
        %v1640 = vld [vmem:[%s1606 + $0x108] sm:$0xff]
        %v1641 = vld [vmem:[%s1606 + $0x110] sm:$0xff]
        %v1642 = vld [vmem:[%s1606 + $0x118] sm:$0xff]
        %v1643 = vld [vmem:[%s1606 + $0x120] sm:$0xff]
        %v1644 = vld [vmem:[%s1606 + $0x128] sm:$0xff]
        %v1645 = vld [vmem:[%s1606 + $0x130] sm:$0xff]
        %v1646 = vld [vmem:[%s1606 + $0x138] sm:$0xff]
        %v1647 = vld [vmem:[%s1606 + $0x140] sm:$0xff]
        %v1648 = vld [vmem:[%s1606 + $0x148] sm:$0xff]
        %v1649 = vld [vmem:[%s1606 + $0x150] sm:$0xff]
        %v1650 = vld [vmem:[%s1606 + $0x158] sm:$0xff]
        %v1651 = vld [vmem:[%s1606 + $0x160] sm:$0xff]
        %v1652 = vld [vmem:[%s1606 + $0x168] sm:$0xff]
        %v1653 = vld [vmem:[%s1606 + $0x170] sm:$0xff]
        %v1654 = vld [vmem:[%s1606 + $0x178] sm:$0xff]
        %v1656 = vsel %vm1138, %v1583, 0
        %v1659 = vsel %vm1138, %v1586, 0
        %v1662 = vsel %vm1138, %v1589, 0
        %v1665 = vsel %vm1138, %v1592, 0
        %v1668 = vsel %vm1138, %v1595, 0
        %v1671 = vsel %vm1138, %v1598, 0
        %v1674 = vsel %vm1138, %v1601, 0
        %v1677 = vsel %vm1138, %v1604, 0
        %1679 = vmatpush.msra.mxu0 %v1637
        %1680 = vmatpush.msra.mxu0 %v1635
        %1681 = vmatpush.msra.mxu0 %v1633
        %1682 = vmatpush.msra.mxu0 %v1631
        %1683 = vmatpush.msra.mxu0 %v1629
        %1684 = vmatpush.msra.mxu0 %v1627
        %1685 = vmatpush.msra.mxu0 %v1625
        %1686 = vmatpush.msra.mxu0 %v1623
        %1687 = vmatpush.msra.mxu0 %v1621
        %1688 = vmatpush.msra.mxu0 %v1619
        %1689 = vmatpush.msra.mxu0 %v1617
        %1690 = vmatpush.msra.mxu0 %v1615
        %1691 = vmatpush.msra.mxu0 %v1613
        %1692 = vmatpush.msra.mxu0 %v1611
        %1693 = vmatpush.msra.mxu0 %v1609
        %1694 = vmatpush.msra.mxu0 %v1607
        %1695 = vmatmul.f32.gmra.mxu0 %v1542
        %v1696 = vpop.f32.mrf.mxu0
        %v1697 = vadd.f32 0.0, %v1696
        %1698 = vmatmul.f32.gmra.mxu0 %v1545
        %v1699 = vpop.f32.mrf.mxu0
        %v1700 = vadd.f32 0.0, %v1699
        %1701 = vmatmul.f32.gmra.mxu0 %v1548
        %v1702 = vpop.f32.mrf.mxu0
        %v1703 = vadd.f32 0.0, %v1702
        %1704 = vmatmul.f32.gmra.mxu0 %v1551
        %v1705 = vpop.f32.mrf.mxu0
        %v1706 = vadd.f32 0.0, %v1705
        %1707 = vmatmul.f32.gmra.mxu0 %v1554
        %v1708 = vpop.f32.mrf.mxu0
        %v1709 = vadd.f32 0.0, %v1708
        %1710 = vmatmul.f32.gmra.mxu0 %v1557
        %v1711 = vpop.f32.mrf.mxu0
        %v1712 = vadd.f32 0.0, %v1711
        %1713 = vmatmul.f32.gmra.mxu0 %v1560
        %v1714 = vpop.f32.mrf.mxu0
        %v1715 = vadd.f32 0.0, %v1714
        %1716 = vmatmul.f32.gmra.mxu0 %v1563
        %v1717 = vpop.f32.mrf.mxu0
        %v1718 = vadd.f32 0.0, %v1717
        %1719 = vdwg.mxu0
        %1720 = vmatpush.msra.mxu0 0.0
        %1721 = vmatpush.msra.mxu0 0.0
        %1722 = vmatpush.msra.mxu0 0.0
        %1723 = vmatpush.msra.mxu0 0.0
        %1724 = vmatpush.msra.mxu0 0.0
        %1725 = vmatpush.msra.mxu0 0.0
        %1726 = vmatpush.msra.mxu0 0.0
        %1727 = vmatpush.msra.mxu0 0.0
        %1728 = vmatpush.msra.mxu0 %v1653
        %1729 = vmatpush.msra.mxu0 %v1651
        %1730 = vmatpush.msra.mxu0 %v1649
        %1731 = vmatpush.msra.mxu0 %v1647
        %1732 = vmatpush.msra.mxu0 %v1645
        %1733 = vmatpush.msra.mxu0 %v1643
        %1734 = vmatpush.msra.mxu0 %v1641
        %1735 = vmatpush.msra.mxu0 %v1639
        %1736 = vmatmul.f32.gmra.mxu0 %v1656
        %v1737 = vpop.f32.mrf.mxu0
        %v1738 = vadd.f32 %v1697, %v1737
        %1739 = vmatmul.f32.gmra.mxu0 %v1659
        %v1740 = vpop.f32.mrf.mxu0
        %v1741 = vadd.f32 %v1700, %v1740
        %1742 = vmatmul.f32.gmra.mxu0 %v1662
        %v1743 = vpop.f32.mrf.mxu0
        %v1744 = vadd.f32 %v1703, %v1743
        %1745 = vmatmul.f32.gmra.mxu0 %v1665
        %v1746 = vpop.f32.mrf.mxu0
        %v1747 = vadd.f32 %v1706, %v1746
        %1748 = vmatmul.f32.gmra.mxu0 %v1668
        %v1749 = vpop.f32.mrf.mxu0
        %v1750 = vadd.f32 %v1709, %v1749
        %1751 = vmatmul.f32.gmra.mxu0 %v1671
        %v1752 = vpop.f32.mrf.mxu0
        %v1753 = vadd.f32 %v1712, %v1752
        %1754 = vmatmul.f32.gmra.mxu0 %v1674
        %v1755 = vpop.f32.mrf.mxu0
        %v1756 = vadd.f32 %v1715, %v1755
        %1757 = vmatmul.f32.gmra.mxu0 %v1677
        %v1758 = vpop.f32.mrf.mxu0
        %v1759 = vadd.f32 %v1718, %v1758
        %1760 = vdwg.mxu0
        %1761 = vmatpush.msra.mxu0 %v1638
        %1762 = vmatpush.msra.mxu0 %v1636
        %1763 = vmatpush.msra.mxu0 %v1634
        %1764 = vmatpush.msra.mxu0 %v1632
        %1765 = vmatpush.msra.mxu0 %v1630
        %1766 = vmatpush.msra.mxu0 %v1628
        %1767 = vmatpush.msra.mxu0 %v1626
        %1768 = vmatpush.msra.mxu0 %v1624
        %1769 = vmatpush.msra.mxu0 %v1622
        %1770 = vmatpush.msra.mxu0 %v1620
        %1771 = vmatpush.msra.mxu0 %v1618
        %1772 = vmatpush.msra.mxu0 %v1616
        %1773 = vmatpush.msra.mxu0 %v1614
        %1774 = vmatpush.msra.mxu0 %v1612
        %1775 = vmatpush.msra.mxu0 %v1610
        %1776 = vmatpush.msra.mxu0 %v1608
        %1777 = vmatmul.f32.gmra.mxu0 %v1542
        %v1778 = vpop.f32.mrf.mxu0
        %v1779 = vadd.f32 0.0, %v1778
        %1780 = vmatmul.f32.gmra.mxu0 %v1545
        %v1781 = vpop.f32.mrf.mxu0
        %v1782 = vadd.f32 0.0, %v1781
        %1783 = vmatmul.f32.gmra.mxu0 %v1548
        %v1784 = vpop.f32.mrf.mxu0
        %v1785 = vadd.f32 0.0, %v1784
        %1786 = vmatmul.f32.gmra.mxu0 %v1551
        %v1787 = vpop.f32.mrf.mxu0
        %v1788 = vadd.f32 0.0, %v1787
        %1789 = vmatmul.f32.gmra.mxu0 %v1554
        %v1790 = vpop.f32.mrf.mxu0
        %v1791 = vadd.f32 0.0, %v1790
        %1792 = vmatmul.f32.gmra.mxu0 %v1557
        %v1793 = vpop.f32.mrf.mxu0
        %v1794 = vadd.f32 0.0, %v1793
        %1795 = vmatmul.f32.gmra.mxu0 %v1560
        %v1796 = vpop.f32.mrf.mxu0
        %v1797 = vadd.f32 0.0, %v1796
        %1798 = vmatmul.f32.gmra.mxu0 %v1563
        %v1799 = vpop.f32.mrf.mxu0
        %v1800 = vadd.f32 0.0, %v1799
        %1801 = vdwg.mxu0
        %1802 = vmatpush.msra.mxu0 0.0
        %1803 = vmatpush.msra.mxu0 0.0
        %1804 = vmatpush.msra.mxu0 0.0
        %1805 = vmatpush.msra.mxu0 0.0
        %1806 = vmatpush.msra.mxu0 0.0
        %1807 = vmatpush.msra.mxu0 0.0
        %1808 = vmatpush.msra.mxu0 0.0
        %1809 = vmatpush.msra.mxu0 0.0
        %1810 = vmatpush.msra.mxu0 %v1654
        %1811 = vmatpush.msra.mxu0 %v1652
        %1812 = vmatpush.msra.mxu0 %v1650
        %1813 = vmatpush.msra.mxu0 %v1648
        %1814 = vmatpush.msra.mxu0 %v1646
        %1815 = vmatpush.msra.mxu0 %v1644
        %1816 = vmatpush.msra.mxu0 %v1642
        %1817 = vmatpush.msra.mxu0 %v1640
        %1818 = vmatmul.f32.gmra.mxu0 %v1656
        %v1819 = vpop.f32.mrf.mxu0
        %v1820 = vadd.f32 %v1779, %v1819
        %1821 = vmatmul.f32.gmra.mxu0 %v1659
        %v1822 = vpop.f32.mrf.mxu0
        %v1823 = vadd.f32 %v1782, %v1822
        %1824 = vmatmul.f32.gmra.mxu0 %v1662
        %v1825 = vpop.f32.mrf.mxu0
        %v1826 = vadd.f32 %v1785, %v1825
        %1827 = vmatmul.f32.gmra.mxu0 %v1665
        %v1828 = vpop.f32.mrf.mxu0
        %v1829 = vadd.f32 %v1788, %v1828
        %1830 = vmatmul.f32.gmra.mxu0 %v1668
        %v1831 = vpop.f32.mrf.mxu0
        %v1832 = vadd.f32 %v1791, %v1831
        %1833 = vmatmul.f32.gmra.mxu0 %v1671
        %v1834 = vpop.f32.mrf.mxu0
        %v1835 = vadd.f32 %v1794, %v1834
        %1836 = vmatmul.f32.gmra.mxu0 %v1674
        %v1837 = vpop.f32.mrf.mxu0
        %v1838 = vadd.f32 %v1797, %v1837
        %1839 = vmatmul.f32.gmra.mxu0 %v1677
        %v1840 = vpop.f32.mrf.mxu0
        %v1841 = vadd.f32 %v1800, %v1840
        %1842 = vdwg.mxu0
        %v1843 = vadd.f32 %v1410, %v1738
        %v1844 = vadd.f32 %v1492, %v1820
        %v1845 = vadd.f32 %v1413, %v1741
        %v1846 = vadd.f32 %v1495, %v1823
        %v1847 = vadd.f32 %v1416, %v1744
        %v1848 = vadd.f32 %v1498, %v1826
        %v1849 = vadd.f32 %v1419, %v1747
        %v1850 = vadd.f32 %v1501, %v1829
        %v1851 = vadd.f32 %v1422, %v1750
        %v1852 = vadd.f32 %v1504, %v1832
        %v1853 = vadd.f32 %v1425, %v1753
        %v1854 = vadd.f32 %v1507, %v1835
        %v1855 = vadd.f32 %v1428, %v1756
        %v1856 = vadd.f32 %v1510, %v1838
        %v1857 = vadd.f32 %v1431, %v1759
        %v1858 = vadd.f32 %v1513, %v1841
        %v1859 = vld [vmem:[#allocation7] sm:$0x3]
        %v1861 = vperm.slane %v1859, 0
        %v1862 = vperm.slane %v1859, 1
        %v1865 = vadd.f32 %v1843, %v1861
        %v1866 = vadd.f32 %v1844, %v1862
        %v1867 = vadd.f32 %v1845, %v1861
        %v1868 = vadd.f32 %v1846, %v1862
        %v1869 = vadd.f32 %v1847, %v1861
        %v1870 = vadd.f32 %v1848, %v1862
        %v1871 = vadd.f32 %v1849, %v1861
        %v1872 = vadd.f32 %v1850, %v1862
        %v1873 = vadd.f32 %v1851, %v1861
        %v1874 = vadd.f32 %v1852, %v1862
        %v1875 = vadd.f32 %v1853, %v1861
        %v1876 = vadd.f32 %v1854, %v1862
        %v1877 = vadd.f32 %v1855, %v1861
        %v1878 = vadd.f32 %v1856, %v1862
        %v1879 = vadd.f32 %v1857, %v1861
        %v1880 = vadd.f32 %v1858, %v1862
        %v1881 = vmax.f32 %v1865, 0.0
        %v1882 = vmax.f32 %v1866, 0.0
        %v1883 = vmax.f32 %v1867, 0.0
        %v1884 = vmax.f32 %v1868, 0.0
        %v1885 = vmax.f32 %v1869, 0.0
        %v1886 = vmax.f32 %v1870, 0.0
        %v1887 = vmax.f32 %v1871, 0.0
        %v1888 = vmax.f32 %v1872, 0.0
        %v1889 = vmax.f32 %v1873, 0.0
        %v1890 = vmax.f32 %v1874, 0.0
        %v1891 = vmax.f32 %v1875, 0.0
        %v1892 = vmax.f32 %v1876, 0.0
        %v1893 = vmax.f32 %v1877, 0.0
        %v1894 = vmax.f32 %v1878, 0.0
        %v1895 = vmax.f32 %v1879, 0.0
        %v1896 = vmax.f32 %v1880, 0.0
        %v1897 = vld [vmem:[#allocation8] sm:$0xff]
        %v1898 = vld [vmem:[#allocation8 + $0x8] sm:$0xff]
        %v1899 = vld [vmem:[#allocation8 + $0x10] sm:$0xff]
        %v1900 = vld [vmem:[#allocation8 + $0x18] sm:$0xff]
        %v1902 = vsel %vm1138, %v1897, 0
        %v1905 = vsel %vm1138, %v1898, 0
        %v1908 = vsel %vm1138, %v1899, 0
        %v1911 = vsel %vm1138, %v1900, 0
        %1913 = vmatpush.msra.mxu0 0.0
        %1914 = vmatpush.msra.mxu0 0.0
        %1915 = vmatpush.msra.mxu0 0.0
        %1916 = vmatpush.msra.mxu0 0.0
        %1917 = vmatpush.msra.mxu0 0.0
        %1918 = vmatpush.msra.mxu0 0.0
        %1919 = vmatpush.msra.mxu0 0.0
        %1920 = vmatpush.msra.mxu0 0.0
        %1921 = vmatpush.msra.mxu0 %v1895
        %1922 = vmatpush.msra.mxu0 %v1893
        %1923 = vmatpush.msra.mxu0 %v1891
        %1924 = vmatpush.msra.mxu0 %v1889
        %1925 = vmatpush.msra.mxu0 %v1887
        %1926 = vmatpush.msra.mxu0 %v1885
        %1927 = vmatpush.msra.mxu0 %v1883
        %1928 = vmatpush.msra.mxu0 %v1881
        %1929 = vmatmul.f32.gmra.mxu0 %v1902
        %v1930 = vpop.f32.mrf.mxu0
        %v1931 = vadd.f32 0.0, %v1930
        %1932 = vmatmul.f32.gmra.mxu0 %v1905
        %v1933 = vpop.f32.mrf.mxu0
        %v1934 = vadd.f32 0.0, %v1933
        %1935 = vmatmul.f32.gmra.mxu0 %v1908
        %v1936 = vpop.f32.mrf.mxu0
        %v1937 = vadd.f32 0.0, %v1936
        %1938 = vmatmul.f32.gmra.mxu0 %v1911
        %v1939 = vpop.f32.mrf.mxu0
        %v1940 = vadd.f32 0.0, %v1939
        %1941 = vdwg.mxu0
        %1942 = vmatpush.msra.mxu0 0.0
        %1943 = vmatpush.msra.mxu0 0.0
        %1944 = vmatpush.msra.mxu0 0.0
        %1945 = vmatpush.msra.mxu0 0.0
        %1946 = vmatpush.msra.mxu0 0.0
        %1947 = vmatpush.msra.mxu0 0.0
        %1948 = vmatpush.msra.mxu0 0.0
        %1949 = vmatpush.msra.mxu0 0.0
        %1950 = vmatpush.msra.mxu0 %v1896
        %1951 = vmatpush.msra.mxu0 %v1894
        %1952 = vmatpush.msra.mxu0 %v1892
        %1953 = vmatpush.msra.mxu0 %v1890
        %1954 = vmatpush.msra.mxu0 %v1888
        %1955 = vmatpush.msra.mxu0 %v1886
        %1956 = vmatpush.msra.mxu0 %v1884
        %1957 = vmatpush.msra.mxu0 %v1882
        %1958 = vmatmul.f32.gmra.mxu0 %v1902
        %v1959 = vpop.f32.mrf.mxu0
        %v1960 = vadd.f32 0.0, %v1959
        %1961 = vmatmul.f32.gmra.mxu0 %v1905
        %v1962 = vpop.f32.mrf.mxu0
        %v1963 = vadd.f32 0.0, %v1962
        %1964 = vmatmul.f32.gmra.mxu0 %v1908
        %v1965 = vpop.f32.mrf.mxu0
        %v1966 = vadd.f32 0.0, %v1965
        %1967 = vmatmul.f32.gmra.mxu0 %v1911
        %v1968 = vpop.f32.mrf.mxu0
        %v1969 = vadd.f32 0.0, %v1968
        %1970 = vdwg.mxu0
        %v1971 = vld [vmem:[#allocation10] sm:$0xff]
        %v1972 = vld [vmem:[#allocation10 + $0x8] sm:$0xff]
        %v1973 = vld [vmem:[#allocation10 + $0x10] sm:$0xff]
        %v1974 = vld [vmem:[#allocation10 + $0x18] sm:$0xff]
        %v1975 = vld [vmem:[#allocation10 + $0x20] sm:$0xff]
        %v1976 = vld [vmem:[#allocation10 + $0x28] sm:$0xff]
        %v1977 = vld [vmem:[#allocation10 + $0x30] sm:$0xff]
        %v1978 = vld [vmem:[#allocation10 + $0x38] sm:$0xff]
        %v1979 = vld [vmem:[#allocation10 + $0x40] sm:$0xff]
        %v1980 = vld [vmem:[#allocation10 + $0x48] sm:$0xff]
        %v1981 = vld [vmem:[#allocation10 + $0x50] sm:$0xff]
        %v1982 = vld [vmem:[#allocation10 + $0x58] sm:$0xff]
        %v1983 = vld [vmem:[#allocation10 + $0x60] sm:$0xff]
        %v1984 = vld [vmem:[#allocation10 + $0x68] sm:$0xff]
        %v1985 = vld [vmem:[#allocation10 + $0x70] sm:$0xff]
        %v1986 = vld [vmem:[#allocation10 + $0x78] sm:$0xff]
        %v1987 = vld [vmem:[#allocation10 + $0x80] sm:$0xff]
        %v1988 = vld [vmem:[#allocation10 + $0x88] sm:$0xff]
        %v1989 = vld [vmem:[#allocation10 + $0x90] sm:$0xff]
        %v1990 = vld [vmem:[#allocation10 + $0x98] sm:$0xff]
        %v1991 = vld [vmem:[#allocation10 + $0xa0] sm:$0xff]
        %v1992 = vld [vmem:[#allocation10 + $0xa8] sm:$0xff]
        %v1993 = vld [vmem:[#allocation10 + $0xb0] sm:$0xff]
        %v1994 = vld [vmem:[#allocation10 + $0xb8] sm:$0xff]
        %v1995 = vld [vmem:[#allocation10 + $0xc0] sm:$0xff]
        %v1996 = vld [vmem:[#allocation10 + $0xc8] sm:$0xff]
        %v1997 = vld [vmem:[#allocation10 + $0xd0] sm:$0xff]
        %v1998 = vld [vmem:[#allocation10 + $0xd8] sm:$0xff]
        %v1999 = vld [vmem:[#allocation10 + $0xe0] sm:$0xff]
        %v2000 = vld [vmem:[#allocation10 + $0xe8] sm:$0xff]
        %v2001 = vld [vmem:[#allocation10 + $0xf0] sm:$0xff]
        %v2002 = vld [vmem:[#allocation10 + $0xf8] sm:$0xff]
        %v2003 = vld [vmem:[#allocation10 + $0x100] sm:$0xff]
        %v2004 = vld [vmem:[#allocation10 + $0x108] sm:$0xff]
        %v2005 = vld [vmem:[#allocation10 + $0x110] sm:$0xff]
        %v2006 = vld [vmem:[#allocation10 + $0x118] sm:$0xff]
        %v2007 = vld [vmem:[#allocation10 + $0x120] sm:$0xff]
        %v2008 = vld [vmem:[#allocation10 + $0x128] sm:$0xff]
        %v2009 = vld [vmem:[#allocation10 + $0x130] sm:$0xff]
        %v2010 = vld [vmem:[#allocation10 + $0x138] sm:$0xff]
        %v2011 = vld [vmem:[#allocation10 + $0x140] sm:$0xff]
        %v2012 = vld [vmem:[#allocation10 + $0x148] sm:$0xff]
        %v2013 = vld [vmem:[#allocation10 + $0x150] sm:$0xff]
        %v2014 = vld [vmem:[#allocation10 + $0x158] sm:$0xff]
        %v2015 = vld [vmem:[#allocation10 + $0x160] sm:$0xff]
        %v2016 = vld [vmem:[#allocation10 + $0x168] sm:$0xff]
        %v2017 = vld [vmem:[#allocation10 + $0x170] sm:$0xff]
        %v2018 = vld [vmem:[#allocation10 + $0x178] sm:$0xff]
        %v2019 = vld [vmem:[#allocation10 + $0x180] sm:$0xff]
        %v2020 = vld [vmem:[#allocation10 + $0x188] sm:$0xff]
        %v2021 = vld [vmem:[#allocation10 + $0x190] sm:$0xff]
        %v2022 = vld [vmem:[#allocation10 + $0x198] sm:$0xff]
        %v2023 = vld [vmem:[#allocation10 + $0x1a0] sm:$0xff]
        %v2024 = vld [vmem:[#allocation10 + $0x1a8] sm:$0xff]
        %v2025 = vld [vmem:[#allocation10 + $0x1b0] sm:$0xff]
        %v2026 = vld [vmem:[#allocation10 + $0x1b8] sm:$0xff]
        %v2027 = vld [vmem:[#allocation10 + $0x1c0] sm:$0xff]
        %v2028 = vld [vmem:[#allocation10 + $0x1c8] sm:$0xff]
        %v2029 = vld [vmem:[#allocation10 + $0x1d0] sm:$0xff]
        %v2030 = vld [vmem:[#allocation10 + $0x1d8] sm:$0xff]
        %v2031 = vld [vmem:[#allocation10 + $0x1e0] sm:$0xff]
        %v2032 = vld [vmem:[#allocation10 + $0x1e8] sm:$0xff]
        %v2033 = vld [vmem:[#allocation10 + $0x1f0] sm:$0xff]
        %v2034 = vld [vmem:[#allocation10 + $0x1f8] sm:$0xff]
        %s2035 = scalar_lea.vmem [#allocation8], 32
        %v2036 = vld [vmem:[%s2035] sm:$0xff]
        %v2037 = vld [vmem:[%s2035 + $0x8] sm:$0xff]
        %v2038 = vld [vmem:[%s2035 + $0x10] sm:$0xff]
        %v2039 = vld [vmem:[%s2035 + $0x18] sm:$0xff]
        %v2041 = vsel %vm1138, %v2036, 0
        %v2044 = vsel %vm1138, %v2037, 0
        %v2047 = vsel %vm1138, %v2038, 0
        %v2050 = vsel %vm1138, %v2039, 0
        %2052 = vmatpush.msra.mxu0 0.0
        %2053 = vmatpush.msra.mxu0 0.0
        %2054 = vmatpush.msra.mxu0 0.0
        %2055 = vmatpush.msra.mxu0 0.0
        %2056 = vmatpush.msra.mxu0 0.0
        %2057 = vmatpush.msra.mxu0 0.0
        %2058 = vmatpush.msra.mxu0 0.0
        %2059 = vmatpush.msra.mxu0 0.0
        %2060 = vmatpush.msra.mxu0 %v1895
        %2061 = vmatpush.msra.mxu0 %v1893
        %2062 = vmatpush.msra.mxu0 %v1891
        %2063 = vmatpush.msra.mxu0 %v1889
        %2064 = vmatpush.msra.mxu0 %v1887
        %2065 = vmatpush.msra.mxu0 %v1885
        %2066 = vmatpush.msra.mxu0 %v1883
        %2067 = vmatpush.msra.mxu0 %v1881
        %2068 = vmatmul.f32.gmra.mxu0 %v2041
        %v2069 = vpop.f32.mrf.mxu0
        %v2070 = vadd.f32 0.0, %v2069
        %2071 = vmatmul.f32.gmra.mxu0 %v2044
        %v2072 = vpop.f32.mrf.mxu0
        %v2073 = vadd.f32 0.0, %v2072
        %2074 = vmatmul.f32.gmra.mxu0 %v2047
        %v2075 = vpop.f32.mrf.mxu0
        %v2076 = vadd.f32 0.0, %v2075
        %2077 = vmatmul.f32.gmra.mxu0 %v2050
        %v2078 = vpop.f32.mrf.mxu0
        %v2079 = vadd.f32 0.0, %v2078
        %2080 = vdwg.mxu0
        %2081 = vmatpush.msra.mxu0 0.0
        %2082 = vmatpush.msra.mxu0 0.0
        %2083 = vmatpush.msra.mxu0 0.0
        %2084 = vmatpush.msra.mxu0 0.0
        %2085 = vmatpush.msra.mxu0 0.0
        %2086 = vmatpush.msra.mxu0 0.0
        %2087 = vmatpush.msra.mxu0 0.0
        %2088 = vmatpush.msra.mxu0 0.0
        %2089 = vmatpush.msra.mxu0 %v1896
        %2090 = vmatpush.msra.mxu0 %v1894
        %2091 = vmatpush.msra.mxu0 %v1892
        %2092 = vmatpush.msra.mxu0 %v1890
        %2093 = vmatpush.msra.mxu0 %v1888
        %2094 = vmatpush.msra.mxu0 %v1886
        %2095 = vmatpush.msra.mxu0 %v1884
        %2096 = vmatpush.msra.mxu0 %v1882
        %2097 = vmatmul.f32.gmra.mxu0 %v2041
        %v2098 = vpop.f32.mrf.mxu0
        %v2099 = vadd.f32 0.0, %v2098
        %2100 = vmatmul.f32.gmra.mxu0 %v2044
        %v2101 = vpop.f32.mrf.mxu0
        %v2102 = vadd.f32 0.0, %v2101
        %2103 = vmatmul.f32.gmra.mxu0 %v2047
        %v2104 = vpop.f32.mrf.mxu0
        %v2105 = vadd.f32 0.0, %v2104
        %2106 = vmatmul.f32.gmra.mxu0 %v2050
        %v2107 = vpop.f32.mrf.mxu0
        %v2108 = vadd.f32 0.0, %v2107
        %2109 = vdwg.mxu0
        %s2110 = scalar_lea.vmem [#allocation10], 512
        %v2111 = vld [vmem:[%s2110] sm:$0xff]
        %v2112 = vld [vmem:[%s2110 + $0x8] sm:$0xff]
        %v2113 = vld [vmem:[%s2110 + $0x10] sm:$0xff]
        %v2114 = vld [vmem:[%s2110 + $0x18] sm:$0xff]
        %v2115 = vld [vmem:[%s2110 + $0x20] sm:$0xff]
        %v2116 = vld [vmem:[%s2110 + $0x28] sm:$0xff]
        %v2117 = vld [vmem:[%s2110 + $0x30] sm:$0xff]
        %v2118 = vld [vmem:[%s2110 + $0x38] sm:$0xff]
        %v2119 = vld [vmem:[%s2110 + $0x40] sm:$0xff]
        %v2120 = vld [vmem:[%s2110 + $0x48] sm:$0xff]
        %v2121 = vld [vmem:[%s2110 + $0x50] sm:$0xff]
        %v2122 = vld [vmem:[%s2110 + $0x58] sm:$0xff]
        %v2123 = vld [vmem:[%s2110 + $0x60] sm:$0xff]
        %v2124 = vld [vmem:[%s2110 + $0x68] sm:$0xff]
        %v2125 = vld [vmem:[%s2110 + $0x70] sm:$0xff]
        %v2126 = vld [vmem:[%s2110 + $0x78] sm:$0xff]
        %v2127 = vld [vmem:[%s2110 + $0x80] sm:$0xff]
        %v2128 = vld [vmem:[%s2110 + $0x88] sm:$0xff]
        %v2129 = vld [vmem:[%s2110 + $0x90] sm:$0xff]
        %v2130 = vld [vmem:[%s2110 + $0x98] sm:$0xff]
        %v2131 = vld [vmem:[%s2110 + $0xa0] sm:$0xff]
        %v2132 = vld [vmem:[%s2110 + $0xa8] sm:$0xff]
        %v2133 = vld [vmem:[%s2110 + $0xb0] sm:$0xff]
        %v2134 = vld [vmem:[%s2110 + $0xb8] sm:$0xff]
        %v2135 = vld [vmem:[%s2110 + $0xc0] sm:$0xff]
        %v2136 = vld [vmem:[%s2110 + $0xc8] sm:$0xff]
        %v2137 = vld [vmem:[%s2110 + $0xd0] sm:$0xff]
        %v2138 = vld [vmem:[%s2110 + $0xd8] sm:$0xff]
        %v2139 = vld [vmem:[%s2110 + $0xe0] sm:$0xff]
        %v2140 = vld [vmem:[%s2110 + $0xe8] sm:$0xff]
        %v2141 = vld [vmem:[%s2110 + $0xf0] sm:$0xff]
        %v2142 = vld [vmem:[%s2110 + $0xf8] sm:$0xff]
        %v2143 = vld [vmem:[%s2110 + $0x100] sm:$0xff]
        %v2144 = vld [vmem:[%s2110 + $0x108] sm:$0xff]
        %v2145 = vld [vmem:[%s2110 + $0x110] sm:$0xff]
        %v2146 = vld [vmem:[%s2110 + $0x118] sm:$0xff]
        %v2147 = vld [vmem:[%s2110 + $0x120] sm:$0xff]
        %v2148 = vld [vmem:[%s2110 + $0x128] sm:$0xff]
        %v2149 = vld [vmem:[%s2110 + $0x130] sm:$0xff]
        %v2150 = vld [vmem:[%s2110 + $0x138] sm:$0xff]
        %v2151 = vld [vmem:[%s2110 + $0x140] sm:$0xff]
        %v2152 = vld [vmem:[%s2110 + $0x148] sm:$0xff]
        %v2153 = vld [vmem:[%s2110 + $0x150] sm:$0xff]
        %v2154 = vld [vmem:[%s2110 + $0x158] sm:$0xff]
        %v2155 = vld [vmem:[%s2110 + $0x160] sm:$0xff]
        %v2156 = vld [vmem:[%s2110 + $0x168] sm:$0xff]
        %v2157 = vld [vmem:[%s2110 + $0x170] sm:$0xff]
        %v2158 = vld [vmem:[%s2110 + $0x178] sm:$0xff]
        %v2159 = vld [vmem:[%s2110 + $0x180] sm:$0xff]
        %v2160 = vld [vmem:[%s2110 + $0x188] sm:$0xff]
        %v2161 = vld [vmem:[%s2110 + $0x190] sm:$0xff]
        %v2162 = vld [vmem:[%s2110 + $0x198] sm:$0xff]
        %v2163 = vld [vmem:[%s2110 + $0x1a0] sm:$0xff]
        %v2164 = vld [vmem:[%s2110 + $0x1a8] sm:$0xff]
        %v2165 = vld [vmem:[%s2110 + $0x1b0] sm:$0xff]
        %v2166 = vld [vmem:[%s2110 + $0x1b8] sm:$0xff]
        %v2167 = vld [vmem:[%s2110 + $0x1c0] sm:$0xff]
        %v2168 = vld [vmem:[%s2110 + $0x1c8] sm:$0xff]
        %v2169 = vld [vmem:[%s2110 + $0x1d0] sm:$0xff]
        %v2170 = vld [vmem:[%s2110 + $0x1d8] sm:$0xff]
        %v2171 = vld [vmem:[%s2110 + $0x1e0] sm:$0xff]
        %v2172 = vld [vmem:[%s2110 + $0x1e8] sm:$0xff]
        %v2173 = vld [vmem:[%s2110 + $0x1f0] sm:$0xff]
        %v2174 = vld [vmem:[%s2110 + $0x1f8] sm:$0xff]
        %2175 = vmatpush.msra.mxu0 %v2141
        %2176 = vmatpush.msra.mxu0 %v2139
        %2177 = vmatpush.msra.mxu0 %v2137
        %2178 = vmatpush.msra.mxu0 %v2135
        %2179 = vmatpush.msra.mxu0 %v2133
        %2180 = vmatpush.msra.mxu0 %v2131
        %2181 = vmatpush.msra.mxu0 %v2129
        %2182 = vmatpush.msra.mxu0 %v2127
        %2183 = vmatpush.msra.mxu0 %v2125
        %2184 = vmatpush.msra.mxu0 %v2123
        %2185 = vmatpush.msra.mxu0 %v2121
        %2186 = vmatpush.msra.mxu0 %v2119
        %2187 = vmatpush.msra.mxu0 %v2117
        %2188 = vmatpush.msra.mxu0 %v2115
        %2189 = vmatpush.msra.mxu0 %v2113
        %2190 = vmatpush.msra.mxu0 %v2111
        %2191 = vmatmul.f32.gmra.mxu0 %v2070
        %v2192 = vpop.f32.mrf.mxu0
        %v2193 = vadd.f32 0.0, %v2192
        %2194 = vmatmul.f32.gmra.mxu0 %v2073
        %v2195 = vpop.f32.mrf.mxu0
        %v2196 = vadd.f32 0.0, %v2195
        %2197 = vmatmul.f32.gmra.mxu0 %v2076
        %v2198 = vpop.f32.mrf.mxu0
        %v2199 = vadd.f32 0.0, %v2198
        %2200 = vmatmul.f32.gmra.mxu0 %v2079
        %v2201 = vpop.f32.mrf.mxu0
        %v2202 = vadd.f32 0.0, %v2201
        %2203 = vdwg.mxu0
        %2204 = vmatpush.msra.mxu0 %v2173
        %2205 = vmatpush.msra.mxu0 %v2171
        %2206 = vmatpush.msra.mxu0 %v2169
        %2207 = vmatpush.msra.mxu0 %v2167
        %2208 = vmatpush.msra.mxu0 %v2165
        %2209 = vmatpush.msra.mxu0 %v2163
        %2210 = vmatpush.msra.mxu0 %v2161
        %2211 = vmatpush.msra.mxu0 %v2159
        %2212 = vmatpush.msra.mxu0 %v2157
        %2213 = vmatpush.msra.mxu0 %v2155
        %2214 = vmatpush.msra.mxu0 %v2153
        %2215 = vmatpush.msra.mxu0 %v2151
        %2216 = vmatpush.msra.mxu0 %v2149
        %2217 = vmatpush.msra.mxu0 %v2147
        %2218 = vmatpush.msra.mxu0 %v2145
        %2219 = vmatpush.msra.mxu0 %v2143
        %2220 = vmatmul.f32.gmra.mxu0 %v2099
        %v2221 = vpop.f32.mrf.mxu0
        %v2222 = vadd.f32 %v2193, %v2221
        %2223 = vmatmul.f32.gmra.mxu0 %v2102
        %v2224 = vpop.f32.mrf.mxu0
        %v2225 = vadd.f32 %v2196, %v2224
        %2226 = vmatmul.f32.gmra.mxu0 %v2105
        %v2227 = vpop.f32.mrf.mxu0
        %v2228 = vadd.f32 %v2199, %v2227
        %2229 = vmatmul.f32.gmra.mxu0 %v2108
        %v2230 = vpop.f32.mrf.mxu0
        %v2231 = vadd.f32 %v2202, %v2230
        %2232 = vdwg.mxu0
        %2233 = vmatpush.msra.mxu0 %v2142
        %2234 = vmatpush.msra.mxu0 %v2140
        %2235 = vmatpush.msra.mxu0 %v2138
        %2236 = vmatpush.msra.mxu0 %v2136
        %2237 = vmatpush.msra.mxu0 %v2134
        %2238 = vmatpush.msra.mxu0 %v2132
        %2239 = vmatpush.msra.mxu0 %v2130
        %2240 = vmatpush.msra.mxu0 %v2128
        %2241 = vmatpush.msra.mxu0 %v2126
        %2242 = vmatpush.msra.mxu0 %v2124
        %2243 = vmatpush.msra.mxu0 %v2122
        %2244 = vmatpush.msra.mxu0 %v2120
        %2245 = vmatpush.msra.mxu0 %v2118
        %2246 = vmatpush.msra.mxu0 %v2116
        %2247 = vmatpush.msra.mxu0 %v2114
        %2248 = vmatpush.msra.mxu0 %v2112
        %2249 = vmatmul.f32.gmra.mxu0 %v2070
        %v2250 = vpop.f32.mrf.mxu0
        %v2251 = vadd.f32 0.0, %v2250
        %2252 = vmatmul.f32.gmra.mxu0 %v2073
        %v2253 = vpop.f32.mrf.mxu0
        %v2254 = vadd.f32 0.0, %v2253
        %2255 = vmatmul.f32.gmra.mxu0 %v2076
        %v2256 = vpop.f32.mrf.mxu0
        %v2257 = vadd.f32 0.0, %v2256
        %2258 = vmatmul.f32.gmra.mxu0 %v2079
        %v2259 = vpop.f32.mrf.mxu0
        %v2260 = vadd.f32 0.0, %v2259
        %2261 = vdwg.mxu0
        %2262 = vmatpush.msra.mxu0 %v2174
        %2263 = vmatpush.msra.mxu0 %v2172
        %2264 = vmatpush.msra.mxu0 %v2170
        %2265 = vmatpush.msra.mxu0 %v2168
        %2266 = vmatpush.msra.mxu0 %v2166
        %2267 = vmatpush.msra.mxu0 %v2164
        %2268 = vmatpush.msra.mxu0 %v2162
        %2269 = vmatpush.msra.mxu0 %v2160
        %2270 = vmatpush.msra.mxu0 %v2158
        %2271 = vmatpush.msra.mxu0 %v2156
        %2272 = vmatpush.msra.mxu0 %v2154
        %2273 = vmatpush.msra.mxu0 %v2152
        %2274 = vmatpush.msra.mxu0 %v2150
        %2275 = vmatpush.msra.mxu0 %v2148
        %2276 = vmatpush.msra.mxu0 %v2146
        %2277 = vmatpush.msra.mxu0 %v2144
        %2278 = vmatmul.f32.gmra.mxu0 %v2099
        %v2279 = vpop.f32.mrf.mxu0
        %v2280 = vadd.f32 %v2251, %v2279
        %2281 = vmatmul.f32.gmra.mxu0 %v2102
        %v2282 = vpop.f32.mrf.mxu0
        %v2283 = vadd.f32 %v2254, %v2282
        %2284 = vmatmul.f32.gmra.mxu0 %v2105
        %v2285 = vpop.f32.mrf.mxu0
        %v2286 = vadd.f32 %v2257, %v2285
        %2287 = vmatmul.f32.gmra.mxu0 %v2108
        %v2288 = vpop.f32.mrf.mxu0
        %v2289 = vadd.f32 %v2260, %v2288
        %2290 = vdwg.mxu0
        %2291 = vmatpush.msra.mxu0 %v2001
        %2292 = vmatpush.msra.mxu0 %v1999
        %2293 = vmatpush.msra.mxu0 %v1997
        %2294 = vmatpush.msra.mxu0 %v1995
        %2295 = vmatpush.msra.mxu0 %v1993
        %2296 = vmatpush.msra.mxu0 %v1991
        %2297 = vmatpush.msra.mxu0 %v1989
        %2298 = vmatpush.msra.mxu0 %v1987
        %2299 = vmatpush.msra.mxu0 %v1985
        %2300 = vmatpush.msra.mxu0 %v1983
        %2301 = vmatpush.msra.mxu0 %v1981
        %2302 = vmatpush.msra.mxu0 %v1979
        %2303 = vmatpush.msra.mxu0 %v1977
        %2304 = vmatpush.msra.mxu0 %v1975
        %2305 = vmatpush.msra.mxu0 %v1973
        %2306 = vmatpush.msra.mxu0 %v1971
        %2307 = vmatmul.f32.gmra.mxu0 %v1931
        %v2308 = vpop.f32.mrf.mxu0
        %v2309 = vadd.f32 %v2222, %v2308
        %2310 = vmatmul.f32.gmra.mxu0 %v1934
        %v2311 = vpop.f32.mrf.mxu0
        %v2312 = vadd.f32 %v2225, %v2311
        %2313 = vmatmul.f32.gmra.mxu0 %v1937
        %v2314 = vpop.f32.mrf.mxu0
        %v2315 = vadd.f32 %v2228, %v2314
        %2316 = vmatmul.f32.gmra.mxu0 %v1940
        %v2317 = vpop.f32.mrf.mxu0
        %v2318 = vadd.f32 %v2231, %v2317
        %2319 = vdwg.mxu0
        %2320 = vmatpush.msra.mxu0 %v2033
        %2321 = vmatpush.msra.mxu0 %v2031
        %2322 = vmatpush.msra.mxu0 %v2029
        %2323 = vmatpush.msra.mxu0 %v2027
        %2324 = vmatpush.msra.mxu0 %v2025
        %2325 = vmatpush.msra.mxu0 %v2023
        %2326 = vmatpush.msra.mxu0 %v2021
        %2327 = vmatpush.msra.mxu0 %v2019
        %2328 = vmatpush.msra.mxu0 %v2017
        %2329 = vmatpush.msra.mxu0 %v2015
        %2330 = vmatpush.msra.mxu0 %v2013
        %2331 = vmatpush.msra.mxu0 %v2011
        %2332 = vmatpush.msra.mxu0 %v2009
        %2333 = vmatpush.msra.mxu0 %v2007
        %2334 = vmatpush.msra.mxu0 %v2005
        %2335 = vmatpush.msra.mxu0 %v2003
        %2336 = vmatmul.f32.gmra.mxu0 %v1960
        %v2337 = vpop.f32.mrf.mxu0
        %v2338 = vadd.f32 %v2309, %v2337
        %2339 = vmatmul.f32.gmra.mxu0 %v1963
        %v2340 = vpop.f32.mrf.mxu0
        %v2341 = vadd.f32 %v2312, %v2340
        %2342 = vmatmul.f32.gmra.mxu0 %v1966
        %v2343 = vpop.f32.mrf.mxu0
        %v2344 = vadd.f32 %v2315, %v2343
        %2345 = vmatmul.f32.gmra.mxu0 %v1969
        %v2346 = vpop.f32.mrf.mxu0
        %v2347 = vadd.f32 %v2318, %v2346
        %2348 = vdwg.mxu0
        %2349 = vmatpush.msra.mxu0 %v2002
        %2350 = vmatpush.msra.mxu0 %v2000
        %2351 = vmatpush.msra.mxu0 %v1998
        %2352 = vmatpush.msra.mxu0 %v1996
        %2353 = vmatpush.msra.mxu0 %v1994
        %2354 = vmatpush.msra.mxu0 %v1992
        %2355 = vmatpush.msra.mxu0 %v1990
        %2356 = vmatpush.msra.mxu0 %v1988
        %2357 = vmatpush.msra.mxu0 %v1986
        %2358 = vmatpush.msra.mxu0 %v1984
        %2359 = vmatpush.msra.mxu0 %v1982
        %2360 = vmatpush.msra.mxu0 %v1980
        %2361 = vmatpush.msra.mxu0 %v1978
        %2362 = vmatpush.msra.mxu0 %v1976
        %2363 = vmatpush.msra.mxu0 %v1974
        %2364 = vmatpush.msra.mxu0 %v1972
        %2365 = vmatmul.f32.gmra.mxu0 %v1931
        %v2366 = vpop.f32.mrf.mxu0
        %v2367 = vadd.f32 %v2280, %v2366
        %2368 = vmatmul.f32.gmra.mxu0 %v1934
        %v2369 = vpop.f32.mrf.mxu0
        %v2370 = vadd.f32 %v2283, %v2369
        %2371 = vmatmul.f32.gmra.mxu0 %v1937
        %v2372 = vpop.f32.mrf.mxu0
        %v2373 = vadd.f32 %v2286, %v2372
        %2374 = vmatmul.f32.gmra.mxu0 %v1940
        %v2375 = vpop.f32.mrf.mxu0
        %v2376 = vadd.f32 %v2289, %v2375
        %2377 = vdwg.mxu0
        %2378 = vmatpush.msra.mxu0 %v2034
        %2379 = vmatpush.msra.mxu0 %v2032
        %2380 = vmatpush.msra.mxu0 %v2030
        %2381 = vmatpush.msra.mxu0 %v2028
        %2382 = vmatpush.msra.mxu0 %v2026
        %2383 = vmatpush.msra.mxu0 %v2024
        %2384 = vmatpush.msra.mxu0 %v2022
        %2385 = vmatpush.msra.mxu0 %v2020
        %2386 = vmatpush.msra.mxu0 %v2018
        %2387 = vmatpush.msra.mxu0 %v2016
        %2388 = vmatpush.msra.mxu0 %v2014
        %2389 = vmatpush.msra.mxu0 %v2012
        %2390 = vmatpush.msra.mxu0 %v2010
        %2391 = vmatpush.msra.mxu0 %v2008
        %2392 = vmatpush.msra.mxu0 %v2006
        %2393 = vmatpush.msra.mxu0 %v2004
        %2394 = vmatmul.f32.gmra.mxu0 %v1960
        %v2395 = vpop.f32.mrf.mxu0
        %v2396 = vadd.f32 %v2367, %v2395
        %2397 = vmatmul.f32.gmra.mxu0 %v1963
        %v2398 = vpop.f32.mrf.mxu0
        %v2399 = vadd.f32 %v2370, %v2398
        %2400 = vmatmul.f32.gmra.mxu0 %v1966
        %v2401 = vpop.f32.mrf.mxu0
        %v2402 = vadd.f32 %v2373, %v2401
        %2403 = vmatmul.f32.gmra.mxu0 %v1969
        %v2404 = vpop.f32.mrf.mxu0
        %v2405 = vadd.f32 %v2376, %v2404
        %2406 = vdwg.mxu0
        %s2407 = scalar_lea.vmem [#allocation8], 64
        %v2408 = vld [vmem:[%s2407] sm:$0xff]
        %v2409 = vld [vmem:[%s2407 + $0x8] sm:$0xff]
        %v2410 = vld [vmem:[%s2407 + $0x10] sm:$0xff]
        %v2411 = vld [vmem:[%s2407 + $0x18] sm:$0xff]
        %v2413 = vsel %vm1138, %v2408, 0
        %v2416 = vsel %vm1138, %v2409, 0
        %v2419 = vsel %vm1138, %v2410, 0
        %v2422 = vsel %vm1138, %v2411, 0
        %2424 = vmatpush.msra.mxu0 0.0
        %2425 = vmatpush.msra.mxu0 0.0
        %2426 = vmatpush.msra.mxu0 0.0
        %2427 = vmatpush.msra.mxu0 0.0
        %2428 = vmatpush.msra.mxu0 0.0
        %2429 = vmatpush.msra.mxu0 0.0
        %2430 = vmatpush.msra.mxu0 0.0
        %2431 = vmatpush.msra.mxu0 0.0
        %2432 = vmatpush.msra.mxu0 %v1895
        %2433 = vmatpush.msra.mxu0 %v1893
        %2434 = vmatpush.msra.mxu0 %v1891
        %2435 = vmatpush.msra.mxu0 %v1889
        %2436 = vmatpush.msra.mxu0 %v1887
        %2437 = vmatpush.msra.mxu0 %v1885
        %2438 = vmatpush.msra.mxu0 %v1883
        %2439 = vmatpush.msra.mxu0 %v1881
        %2440 = vmatmul.f32.gmra.mxu0 %v2413
        %v2441 = vpop.f32.mrf.mxu0
        %v2442 = vadd.f32 0.0, %v2441
        %2443 = vmatmul.f32.gmra.mxu0 %v2416
        %v2444 = vpop.f32.mrf.mxu0
        %v2445 = vadd.f32 0.0, %v2444
        %2446 = vmatmul.f32.gmra.mxu0 %v2419
        %v2447 = vpop.f32.mrf.mxu0
        %v2448 = vadd.f32 0.0, %v2447
        %2449 = vmatmul.f32.gmra.mxu0 %v2422
        %v2450 = vpop.f32.mrf.mxu0
        %v2451 = vadd.f32 0.0, %v2450
        %2452 = vdwg.mxu0
        %2453 = vmatpush.msra.mxu0 0.0
        %2454 = vmatpush.msra.mxu0 0.0
        %2455 = vmatpush.msra.mxu0 0.0
        %2456 = vmatpush.msra.mxu0 0.0
        %2457 = vmatpush.msra.mxu0 0.0
        %2458 = vmatpush.msra.mxu0 0.0
        %2459 = vmatpush.msra.mxu0 0.0
        %2460 = vmatpush.msra.mxu0 0.0
        %2461 = vmatpush.msra.mxu0 %v1896
        %2462 = vmatpush.msra.mxu0 %v1894
        %2463 = vmatpush.msra.mxu0 %v1892
        %2464 = vmatpush.msra.mxu0 %v1890
        %2465 = vmatpush.msra.mxu0 %v1888
        %2466 = vmatpush.msra.mxu0 %v1886
        %2467 = vmatpush.msra.mxu0 %v1884
        %2468 = vmatpush.msra.mxu0 %v1882
        %2469 = vmatmul.f32.gmra.mxu0 %v2413
        %v2470 = vpop.f32.mrf.mxu0
        %v2471 = vadd.f32 0.0, %v2470
        %2472 = vmatmul.f32.gmra.mxu0 %v2416
        %v2473 = vpop.f32.mrf.mxu0
        %v2474 = vadd.f32 0.0, %v2473
        %2475 = vmatmul.f32.gmra.mxu0 %v2419
        %v2476 = vpop.f32.mrf.mxu0
        %v2477 = vadd.f32 0.0, %v2476
        %2478 = vmatmul.f32.gmra.mxu0 %v2422
        %v2479 = vpop.f32.mrf.mxu0
        %v2480 = vadd.f32 0.0, %v2479
        %2481 = vdwg.mxu0
        %s2482 = scalar_lea.vmem [#allocation10], 1024
        %v2483 = vld [vmem:[%s2482] sm:$0xff]
        %v2484 = vld [vmem:[%s2482 + $0x8] sm:$0xff]
        %v2485 = vld [vmem:[%s2482 + $0x10] sm:$0xff]
        %v2486 = vld [vmem:[%s2482 + $0x18] sm:$0xff]
        %v2487 = vld [vmem:[%s2482 + $0x20] sm:$0xff]
        %v2488 = vld [vmem:[%s2482 + $0x28] sm:$0xff]
        %v2489 = vld [vmem:[%s2482 + $0x30] sm:$0xff]
        %v2490 = vld [vmem:[%s2482 + $0x38] sm:$0xff]
        %v2491 = vld [vmem:[%s2482 + $0x40] sm:$0xff]
        %v2492 = vld [vmem:[%s2482 + $0x48] sm:$0xff]
        %v2493 = vld [vmem:[%s2482 + $0x50] sm:$0xff]
        %v2494 = vld [vmem:[%s2482 + $0x58] sm:$0xff]
        %v2495 = vld [vmem:[%s2482 + $0x60] sm:$0xff]
        %v2496 = vld [vmem:[%s2482 + $0x68] sm:$0xff]
        %v2497 = vld [vmem:[%s2482 + $0x70] sm:$0xff]
        %v2498 = vld [vmem:[%s2482 + $0x78] sm:$0xff]
        %v2499 = vld [vmem:[%s2482 + $0x80] sm:$0xff]
        %v2500 = vld [vmem:[%s2482 + $0x88] sm:$0xff]
        %v2501 = vld [vmem:[%s2482 + $0x90] sm:$0xff]
        %v2502 = vld [vmem:[%s2482 + $0x98] sm:$0xff]
        %v2503 = vld [vmem:[%s2482 + $0xa0] sm:$0xff]
        %v2504 = vld [vmem:[%s2482 + $0xa8] sm:$0xff]
        %v2505 = vld [vmem:[%s2482 + $0xb0] sm:$0xff]
        %v2506 = vld [vmem:[%s2482 + $0xb8] sm:$0xff]
        %v2507 = vld [vmem:[%s2482 + $0xc0] sm:$0xff]
        %v2508 = vld [vmem:[%s2482 + $0xc8] sm:$0xff]
        %v2509 = vld [vmem:[%s2482 + $0xd0] sm:$0xff]
        %v2510 = vld [vmem:[%s2482 + $0xd8] sm:$0xff]
        %v2511 = vld [vmem:[%s2482 + $0xe0] sm:$0xff]
        %v2512 = vld [vmem:[%s2482 + $0xe8] sm:$0xff]
        %v2513 = vld [vmem:[%s2482 + $0xf0] sm:$0xff]
        %v2514 = vld [vmem:[%s2482 + $0xf8] sm:$0xff]
        %v2515 = vld [vmem:[%s2482 + $0x100] sm:$0xff]
        %v2516 = vld [vmem:[%s2482 + $0x108] sm:$0xff]
        %v2517 = vld [vmem:[%s2482 + $0x110] sm:$0xff]
        %v2518 = vld [vmem:[%s2482 + $0x118] sm:$0xff]
        %v2519 = vld [vmem:[%s2482 + $0x120] sm:$0xff]
        %v2520 = vld [vmem:[%s2482 + $0x128] sm:$0xff]
        %v2521 = vld [vmem:[%s2482 + $0x130] sm:$0xff]
        %v2522 = vld [vmem:[%s2482 + $0x138] sm:$0xff]
        %v2523 = vld [vmem:[%s2482 + $0x140] sm:$0xff]
        %v2524 = vld [vmem:[%s2482 + $0x148] sm:$0xff]
        %v2525 = vld [vmem:[%s2482 + $0x150] sm:$0xff]
        %v2526 = vld [vmem:[%s2482 + $0x158] sm:$0xff]
        %v2527 = vld [vmem:[%s2482 + $0x160] sm:$0xff]
        %v2528 = vld [vmem:[%s2482 + $0x168] sm:$0xff]
        %v2529 = vld [vmem:[%s2482 + $0x170] sm:$0xff]
        %v2530 = vld [vmem:[%s2482 + $0x178] sm:$0xff]
        %v2531 = vld [vmem:[%s2482 + $0x180] sm:$0xff]
        %v2532 = vld [vmem:[%s2482 + $0x188] sm:$0xff]
        %v2533 = vld [vmem:[%s2482 + $0x190] sm:$0xff]
        %v2534 = vld [vmem:[%s2482 + $0x198] sm:$0xff]
        %v2535 = vld [vmem:[%s2482 + $0x1a0] sm:$0xff]
        %v2536 = vld [vmem:[%s2482 + $0x1a8] sm:$0xff]
        %v2537 = vld [vmem:[%s2482 + $0x1b0] sm:$0xff]
        %v2538 = vld [vmem:[%s2482 + $0x1b8] sm:$0xff]
        %v2539 = vld [vmem:[%s2482 + $0x1c0] sm:$0xff]
        %v2540 = vld [vmem:[%s2482 + $0x1c8] sm:$0xff]
        %v2541 = vld [vmem:[%s2482 + $0x1d0] sm:$0xff]
        %v2542 = vld [vmem:[%s2482 + $0x1d8] sm:$0xff]
        %v2543 = vld [vmem:[%s2482 + $0x1e0] sm:$0xff]
        %v2544 = vld [vmem:[%s2482 + $0x1e8] sm:$0xff]
        %v2545 = vld [vmem:[%s2482 + $0x1f0] sm:$0xff]
        %v2546 = vld [vmem:[%s2482 + $0x1f8] sm:$0xff]
        %2547 = vmatpush.msra.mxu0 %v2513
        %2548 = vmatpush.msra.mxu0 %v2511
        %2549 = vmatpush.msra.mxu0 %v2509
        %2550 = vmatpush.msra.mxu0 %v2507
        %2551 = vmatpush.msra.mxu0 %v2505
        %2552 = vmatpush.msra.mxu0 %v2503
        %2553 = vmatpush.msra.mxu0 %v2501
        %2554 = vmatpush.msra.mxu0 %v2499
        %2555 = vmatpush.msra.mxu0 %v2497
        %2556 = vmatpush.msra.mxu0 %v2495
        %2557 = vmatpush.msra.mxu0 %v2493
        %2558 = vmatpush.msra.mxu0 %v2491
        %2559 = vmatpush.msra.mxu0 %v2489
        %2560 = vmatpush.msra.mxu0 %v2487
        %2561 = vmatpush.msra.mxu0 %v2485
        %2562 = vmatpush.msra.mxu0 %v2483
        %2563 = vmatmul.f32.gmra.mxu0 %v2442
        %v2564 = vpop.f32.mrf.mxu0
        %v2565 = vadd.f32 0.0, %v2564
        %2566 = vmatmul.f32.gmra.mxu0 %v2445
        %v2567 = vpop.f32.mrf.mxu0
        %v2568 = vadd.f32 0.0, %v2567
        %2569 = vmatmul.f32.gmra.mxu0 %v2448
        %v2570 = vpop.f32.mrf.mxu0
        %v2571 = vadd.f32 0.0, %v2570
        %2572 = vmatmul.f32.gmra.mxu0 %v2451
        %v2573 = vpop.f32.mrf.mxu0
        %v2574 = vadd.f32 0.0, %v2573
        %2575 = vdwg.mxu0
        %2576 = vmatpush.msra.mxu0 %v2545
        %2577 = vmatpush.msra.mxu0 %v2543
        %2578 = vmatpush.msra.mxu0 %v2541
        %2579 = vmatpush.msra.mxu0 %v2539
        %2580 = vmatpush.msra.mxu0 %v2537
        %2581 = vmatpush.msra.mxu0 %v2535
        %2582 = vmatpush.msra.mxu0 %v2533
        %2583 = vmatpush.msra.mxu0 %v2531
        %2584 = vmatpush.msra.mxu0 %v2529
        %2585 = vmatpush.msra.mxu0 %v2527
        %2586 = vmatpush.msra.mxu0 %v2525
        %2587 = vmatpush.msra.mxu0 %v2523
        %2588 = vmatpush.msra.mxu0 %v2521
        %2589 = vmatpush.msra.mxu0 %v2519
        %2590 = vmatpush.msra.mxu0 %v2517
        %2591 = vmatpush.msra.mxu0 %v2515
        %2592 = vmatmul.f32.gmra.mxu0 %v2471
        %v2593 = vpop.f32.mrf.mxu0
        %v2594 = vadd.f32 %v2565, %v2593
        %2595 = vmatmul.f32.gmra.mxu0 %v2474
        %v2596 = vpop.f32.mrf.mxu0
        %v2597 = vadd.f32 %v2568, %v2596
        %2598 = vmatmul.f32.gmra.mxu0 %v2477
        %v2599 = vpop.f32.mrf.mxu0
        %v2600 = vadd.f32 %v2571, %v2599
        %2601 = vmatmul.f32.gmra.mxu0 %v2480
        %v2602 = vpop.f32.mrf.mxu0
        %v2603 = vadd.f32 %v2574, %v2602
        %2604 = vdwg.mxu0
        %2605 = vmatpush.msra.mxu0 %v2514
        %2606 = vmatpush.msra.mxu0 %v2512
        %2607 = vmatpush.msra.mxu0 %v2510
        %2608 = vmatpush.msra.mxu0 %v2508
        %2609 = vmatpush.msra.mxu0 %v2506
        %2610 = vmatpush.msra.mxu0 %v2504
        %2611 = vmatpush.msra.mxu0 %v2502
        %2612 = vmatpush.msra.mxu0 %v2500
        %2613 = vmatpush.msra.mxu0 %v2498
        %2614 = vmatpush.msra.mxu0 %v2496
        %2615 = vmatpush.msra.mxu0 %v2494
        %2616 = vmatpush.msra.mxu0 %v2492
        %2617 = vmatpush.msra.mxu0 %v2490
        %2618 = vmatpush.msra.mxu0 %v2488
        %2619 = vmatpush.msra.mxu0 %v2486
        %2620 = vmatpush.msra.mxu0 %v2484
        %2621 = vmatmul.f32.gmra.mxu0 %v2442
        %v2622 = vpop.f32.mrf.mxu0
        %v2623 = vadd.f32 0.0, %v2622
        %2624 = vmatmul.f32.gmra.mxu0 %v2445
        %v2625 = vpop.f32.mrf.mxu0
        %v2626 = vadd.f32 0.0, %v2625
        %2627 = vmatmul.f32.gmra.mxu0 %v2448
        %v2628 = vpop.f32.mrf.mxu0
        %v2629 = vadd.f32 0.0, %v2628
        %2630 = vmatmul.f32.gmra.mxu0 %v2451
        %v2631 = vpop.f32.mrf.mxu0
        %v2632 = vadd.f32 0.0, %v2631
        %2633 = vdwg.mxu0
        %2634 = vmatpush.msra.mxu0 %v2546
        %2635 = vmatpush.msra.mxu0 %v2544
        %2636 = vmatpush.msra.mxu0 %v2542
        %2637 = vmatpush.msra.mxu0 %v2540
        %2638 = vmatpush.msra.mxu0 %v2538
        %2639 = vmatpush.msra.mxu0 %v2536
        %2640 = vmatpush.msra.mxu0 %v2534
        %2641 = vmatpush.msra.mxu0 %v2532
        %2642 = vmatpush.msra.mxu0 %v2530
        %2643 = vmatpush.msra.mxu0 %v2528
        %2644 = vmatpush.msra.mxu0 %v2526
        %2645 = vmatpush.msra.mxu0 %v2524
        %2646 = vmatpush.msra.mxu0 %v2522
        %2647 = vmatpush.msra.mxu0 %v2520
        %2648 = vmatpush.msra.mxu0 %v2518
        %2649 = vmatpush.msra.mxu0 %v2516
        %2650 = vmatmul.f32.gmra.mxu0 %v2471
        %v2651 = vpop.f32.mrf.mxu0
        %v2652 = vadd.f32 %v2623, %v2651
        %2653 = vmatmul.f32.gmra.mxu0 %v2474
        %v2654 = vpop.f32.mrf.mxu0
        %v2655 = vadd.f32 %v2626, %v2654
        %2656 = vmatmul.f32.gmra.mxu0 %v2477
        %v2657 = vpop.f32.mrf.mxu0
        %v2658 = vadd.f32 %v2629, %v2657
        %2659 = vmatmul.f32.gmra.mxu0 %v2480
        %v2660 = vpop.f32.mrf.mxu0
        %v2661 = vadd.f32 %v2632, %v2660
        %2662 = vdwg.mxu0
        %v2663 = vadd.f32 %v2338, %v2594
        %v2664 = vadd.f32 %v2396, %v2652
        %v2665 = vadd.f32 %v2341, %v2597
        %v2666 = vadd.f32 %v2399, %v2655
        %v2667 = vadd.f32 %v2344, %v2600
        %v2668 = vadd.f32 %v2402, %v2658
        %v2669 = vadd.f32 %v2347, %v2603
        %v2670 = vadd.f32 %v2405, %v2661
        %v2671 = vld [vmem:[#allocation11] sm:$0x3]
        %v2673 = vperm.slane %v2671, 0
        %v2674 = vperm.slane %v2671, 1
        %v2677 = vadd.f32 %v2663, %v2673
        %v2678 = vadd.f32 %v2664, %v2674
        %v2679 = vadd.f32 %v2665, %v2673
        %v2680 = vadd.f32 %v2666, %v2674
        %v2681 = vadd.f32 %v2667, %v2673
        %v2682 = vadd.f32 %v2668, %v2674
        %v2683 = vadd.f32 %v2669, %v2673
        %v2684 = vadd.f32 %v2670, %v2674
        %v2685 = vmax.f32 %v2677, 0.0
        %v2686 = vmax.f32 %v2678, 0.0
        %v2687 = vmax.f32 %v2679, 0.0
        %v2688 = vmax.f32 %v2680, 0.0
        %v2689 = vmax.f32 %v2681, 0.0
        %v2690 = vmax.f32 %v2682, 0.0
        %v2691 = vmax.f32 %v2683, 0.0
        %v2692 = vmax.f32 %v2684, 0.0
        %v2693 = vld [vmem:[#allocation13] sm:$0xff]
        %v2694 = vld [vmem:[#allocation13 + $0x8] sm:$0xff]
        %vm2695 = vcmask 261120
        %v2697 = vsel %vm2695, %v2693, 0
        %v2700 = vsel %vm2695, %v2694, 0
        %2702 = vmatpush.msra.mxu0 0.0
        %2703 = vmatpush.msra.mxu0 0.0
        %2704 = vmatpush.msra.mxu0 0.0
        %2705 = vmatpush.msra.mxu0 0.0
        %2706 = vmatpush.msra.mxu0 0.0
        %2707 = vmatpush.msra.mxu0 0.0
        %2708 = vmatpush.msra.mxu0 0.0
        %2709 = vmatpush.msra.mxu0 0.0
        %2710 = vmatpush.msra.mxu0 0.0
        %2711 = vmatpush.msra.mxu0 0.0
        %2712 = vmatpush.msra.mxu0 0.0
        %2713 = vmatpush.msra.mxu0 0.0
        %2714 = vmatpush.msra.mxu0 %v2691
        %2715 = vmatpush.msra.mxu0 %v2689
        %2716 = vmatpush.msra.mxu0 %v2687
        %2717 = vmatpush.msra.mxu0 %v2685
        %2718 = vmatmul.f32.gmra.mxu0 %v2697
        %v2719 = vpop.f32.mrf.mxu0
        %v2720 = vadd.f32 0.0, %v2719
        %2721 = vmatmul.f32.gmra.mxu0 %v2700
        %v2722 = vpop.f32.mrf.mxu0
        %v2723 = vadd.f32 0.0, %v2722
        %2724 = vdwg.mxu0
        %2725 = vmatpush.msra.mxu0 0.0
        %2726 = vmatpush.msra.mxu0 0.0
        %2727 = vmatpush.msra.mxu0 0.0
        %2728 = vmatpush.msra.mxu0 0.0
        %2729 = vmatpush.msra.mxu0 0.0
        %2730 = vmatpush.msra.mxu0 0.0
        %2731 = vmatpush.msra.mxu0 0.0
        %2732 = vmatpush.msra.mxu0 0.0
        %2733 = vmatpush.msra.mxu0 0.0
        %2734 = vmatpush.msra.mxu0 0.0
        %2735 = vmatpush.msra.mxu0 0.0
        %2736 = vmatpush.msra.mxu0 0.0
        %2737 = vmatpush.msra.mxu0 %v2692
        %2738 = vmatpush.msra.mxu0 %v2690
        %2739 = vmatpush.msra.mxu0 %v2688
        %2740 = vmatpush.msra.mxu0 %v2686
        %2741 = vmatmul.f32.gmra.mxu0 %v2697
        %v2742 = vpop.f32.mrf.mxu0
        %v2743 = vadd.f32 0.0, %v2742
        %2744 = vmatmul.f32.gmra.mxu0 %v2700
        %v2745 = vpop.f32.mrf.mxu0
        %v2746 = vadd.f32 0.0, %v2745
        %2747 = vdwg.mxu0
        %v2748 = vld [vmem:[#allocation14] sm:$0xff]
        %v2749 = vld [vmem:[#allocation14 + $0x8] sm:$0xff]
        %v2750 = vld [vmem:[#allocation14 + $0x10] sm:$0xff]
        %v2751 = vld [vmem:[#allocation14 + $0x18] sm:$0xff]
        %v2752 = vld [vmem:[#allocation14 + $0x20] sm:$0xff]
        %v2753 = vld [vmem:[#allocation14 + $0x28] sm:$0xff]
        %v2754 = vld [vmem:[#allocation14 + $0x30] sm:$0xff]
        %v2755 = vld [vmem:[#allocation14 + $0x38] sm:$0xff]
        %v2756 = vld [vmem:[#allocation14 + $0x40] sm:$0xff]
        %v2757 = vld [vmem:[#allocation14 + $0x48] sm:$0xff]
        %v2758 = vld [vmem:[#allocation14 + $0x50] sm:$0xff]
        %v2759 = vld [vmem:[#allocation14 + $0x58] sm:$0xff]
        %v2760 = vld [vmem:[#allocation14 + $0x60] sm:$0xff]
        %v2761 = vld [vmem:[#allocation14 + $0x68] sm:$0xff]
        %v2762 = vld [vmem:[#allocation14 + $0x70] sm:$0xff]
        %v2763 = vld [vmem:[#allocation14 + $0x78] sm:$0xff]
        %v2764 = vld [vmem:[#allocation14 + $0x80] sm:$0xff]
        %v2765 = vld [vmem:[#allocation14 + $0x88] sm:$0xff]
        %v2766 = vld [vmem:[#allocation14 + $0x90] sm:$0xff]
        %v2767 = vld [vmem:[#allocation14 + $0x98] sm:$0xff]
        %v2768 = vld [vmem:[#allocation14 + $0xa0] sm:$0xff]
        %v2769 = vld [vmem:[#allocation14 + $0xa8] sm:$0xff]
        %v2770 = vld [vmem:[#allocation14 + $0xb0] sm:$0xff]
        %v2771 = vld [vmem:[#allocation14 + $0xb8] sm:$0xff]
        %v2772 = vld [vmem:[#allocation14 + $0xc0] sm:$0xff]
        %v2773 = vld [vmem:[#allocation14 + $0xc8] sm:$0xff]
        %v2774 = vld [vmem:[#allocation14 + $0xd0] sm:$0xff]
        %v2775 = vld [vmem:[#allocation14 + $0xd8] sm:$0xff]
        %v2776 = vld [vmem:[#allocation14 + $0xe0] sm:$0xff]
        %v2777 = vld [vmem:[#allocation14 + $0xe8] sm:$0xff]
        %v2778 = vld [vmem:[#allocation14 + $0xf0] sm:$0xff]
        %v2779 = vld [vmem:[#allocation14 + $0xf8] sm:$0xff]
        %v2780 = vld [vmem:[#allocation14 + $0x100] sm:$0xff]
        %v2781 = vld [vmem:[#allocation14 + $0x108] sm:$0xff]
        %v2782 = vld [vmem:[#allocation14 + $0x110] sm:$0xff]
        %v2783 = vld [vmem:[#allocation14 + $0x118] sm:$0xff]
        %v2784 = vld [vmem:[#allocation14 + $0x120] sm:$0xff]
        %v2785 = vld [vmem:[#allocation14 + $0x128] sm:$0xff]
        %v2786 = vld [vmem:[#allocation14 + $0x130] sm:$0xff]
        %v2787 = vld [vmem:[#allocation14 + $0x138] sm:$0xff]
        %v2788 = vld [vmem:[#allocation14 + $0x140] sm:$0xff]
        %v2789 = vld [vmem:[#allocation14 + $0x148] sm:$0xff]
        %v2790 = vld [vmem:[#allocation14 + $0x150] sm:$0xff]
        %v2791 = vld [vmem:[#allocation14 + $0x158] sm:$0xff]
        %v2792 = vld [vmem:[#allocation14 + $0x160] sm:$0xff]
        %v2793 = vld [vmem:[#allocation14 + $0x168] sm:$0xff]
        %v2794 = vld [vmem:[#allocation14 + $0x170] sm:$0xff]
        %v2795 = vld [vmem:[#allocation14 + $0x178] sm:$0xff]
        %v2796 = vld [vmem:[#allocation14 + $0x180] sm:$0xff]
        %v2797 = vld [vmem:[#allocation14 + $0x188] sm:$0xff]
        %v2798 = vld [vmem:[#allocation14 + $0x190] sm:$0xff]
        %v2799 = vld [vmem:[#allocation14 + $0x198] sm:$0xff]
        %v2800 = vld [vmem:[#allocation14 + $0x1a0] sm:$0xff]
        %v2801 = vld [vmem:[#allocation14 + $0x1a8] sm:$0xff]
        %v2802 = vld [vmem:[#allocation14 + $0x1b0] sm:$0xff]
        %v2803 = vld [vmem:[#allocation14 + $0x1b8] sm:$0xff]
        %v2804 = vld [vmem:[#allocation14 + $0x1c0] sm:$0xff]
        %v2805 = vld [vmem:[#allocation14 + $0x1c8] sm:$0xff]
        %v2806 = vld [vmem:[#allocation14 + $0x1d0] sm:$0xff]
        %v2807 = vld [vmem:[#allocation14 + $0x1d8] sm:$0xff]
        %v2808 = vld [vmem:[#allocation14 + $0x1e0] sm:$0xff]
        %v2809 = vld [vmem:[#allocation14 + $0x1e8] sm:$0xff]
        %v2810 = vld [vmem:[#allocation14 + $0x1f0] sm:$0xff]
        %v2811 = vld [vmem:[#allocation14 + $0x1f8] sm:$0xff]
        %s2812 = scalar_lea.vmem [#allocation13], 16
        %v2813 = vld [vmem:[%s2812] sm:$0xff]
        %v2814 = vld [vmem:[%s2812 + $0x8] sm:$0xff]
        %v2816 = vsel %vm2695, %v2813, 0
        %v2819 = vsel %vm2695, %v2814, 0
        %2821 = vmatpush.msra.mxu0 0.0
        %2822 = vmatpush.msra.mxu0 0.0
        %2823 = vmatpush.msra.mxu0 0.0
        %2824 = vmatpush.msra.mxu0 0.0
        %2825 = vmatpush.msra.mxu0 0.0
        %2826 = vmatpush.msra.mxu0 0.0
        %2827 = vmatpush.msra.mxu0 0.0
        %2828 = vmatpush.msra.mxu0 0.0
        %2829 = vmatpush.msra.mxu0 0.0
        %2830 = vmatpush.msra.mxu0 0.0
        %2831 = vmatpush.msra.mxu0 0.0
        %2832 = vmatpush.msra.mxu0 0.0
        %2833 = vmatpush.msra.mxu0 %v2691
        %2834 = vmatpush.msra.mxu0 %v2689
        %2835 = vmatpush.msra.mxu0 %v2687
        %2836 = vmatpush.msra.mxu0 %v2685
        %2837 = vmatmul.f32.gmra.mxu0 %v2816
        %v2838 = vpop.f32.mrf.mxu0
        %v2839 = vadd.f32 0.0, %v2838
        %2840 = vmatmul.f32.gmra.mxu0 %v2819
        %v2841 = vpop.f32.mrf.mxu0
        %v2842 = vadd.f32 0.0, %v2841
        %2843 = vdwg.mxu0
        %2844 = vmatpush.msra.mxu0 0.0
        %2845 = vmatpush.msra.mxu0 0.0
        %2846 = vmatpush.msra.mxu0 0.0
        %2847 = vmatpush.msra.mxu0 0.0
        %2848 = vmatpush.msra.mxu0 0.0
        %2849 = vmatpush.msra.mxu0 0.0
        %2850 = vmatpush.msra.mxu0 0.0
        %2851 = vmatpush.msra.mxu0 0.0
        %2852 = vmatpush.msra.mxu0 0.0
        %2853 = vmatpush.msra.mxu0 0.0
        %2854 = vmatpush.msra.mxu0 0.0
        %2855 = vmatpush.msra.mxu0 0.0
        %2856 = vmatpush.msra.mxu0 %v2692
        %2857 = vmatpush.msra.mxu0 %v2690
        %2858 = vmatpush.msra.mxu0 %v2688
        %2859 = vmatpush.msra.mxu0 %v2686
        %2860 = vmatmul.f32.gmra.mxu0 %v2816
        %v2861 = vpop.f32.mrf.mxu0
        %v2862 = vadd.f32 0.0, %v2861
        %2863 = vmatmul.f32.gmra.mxu0 %v2819
        %v2864 = vpop.f32.mrf.mxu0
        %v2865 = vadd.f32 0.0, %v2864
        %2866 = vdwg.mxu0
        %s2867 = scalar_lea.vmem [#allocation14], 512
        %v2868 = vld [vmem:[%s2867] sm:$0xff]
        %v2869 = vld [vmem:[%s2867 + $0x8] sm:$0xff]
        %v2870 = vld [vmem:[%s2867 + $0x10] sm:$0xff]
        %v2871 = vld [vmem:[%s2867 + $0x18] sm:$0xff]
        %v2872 = vld [vmem:[%s2867 + $0x20] sm:$0xff]
        %v2873 = vld [vmem:[%s2867 + $0x28] sm:$0xff]
        %v2874 = vld [vmem:[%s2867 + $0x30] sm:$0xff]
        %v2875 = vld [vmem:[%s2867 + $0x38] sm:$0xff]
        %v2876 = vld [vmem:[%s2867 + $0x40] sm:$0xff]
        %v2877 = vld [vmem:[%s2867 + $0x48] sm:$0xff]
        %v2878 = vld [vmem:[%s2867 + $0x50] sm:$0xff]
        %v2879 = vld [vmem:[%s2867 + $0x58] sm:$0xff]
        %v2880 = vld [vmem:[%s2867 + $0x60] sm:$0xff]
        %v2881 = vld [vmem:[%s2867 + $0x68] sm:$0xff]
        %v2882 = vld [vmem:[%s2867 + $0x70] sm:$0xff]
        %v2883 = vld [vmem:[%s2867 + $0x78] sm:$0xff]
        %v2884 = vld [vmem:[%s2867 + $0x80] sm:$0xff]
        %v2885 = vld [vmem:[%s2867 + $0x88] sm:$0xff]
        %v2886 = vld [vmem:[%s2867 + $0x90] sm:$0xff]
        %v2887 = vld [vmem:[%s2867 + $0x98] sm:$0xff]
        %v2888 = vld [vmem:[%s2867 + $0xa0] sm:$0xff]
        %v2889 = vld [vmem:[%s2867 + $0xa8] sm:$0xff]
        %v2890 = vld [vmem:[%s2867 + $0xb0] sm:$0xff]
        %v2891 = vld [vmem:[%s2867 + $0xb8] sm:$0xff]
        %v2892 = vld [vmem:[%s2867 + $0xc0] sm:$0xff]
        %v2893 = vld [vmem:[%s2867 + $0xc8] sm:$0xff]
        %v2894 = vld [vmem:[%s2867 + $0xd0] sm:$0xff]
        %v2895 = vld [vmem:[%s2867 + $0xd8] sm:$0xff]
        %v2896 = vld [vmem:[%s2867 + $0xe0] sm:$0xff]
        %v2897 = vld [vmem:[%s2867 + $0xe8] sm:$0xff]
        %v2898 = vld [vmem:[%s2867 + $0xf0] sm:$0xff]
        %v2899 = vld [vmem:[%s2867 + $0xf8] sm:$0xff]
        %v2900 = vld [vmem:[%s2867 + $0x100] sm:$0xff]
        %v2901 = vld [vmem:[%s2867 + $0x108] sm:$0xff]
        %v2902 = vld [vmem:[%s2867 + $0x110] sm:$0xff]
        %v2903 = vld [vmem:[%s2867 + $0x118] sm:$0xff]
        %v2904 = vld [vmem:[%s2867 + $0x120] sm:$0xff]
        %v2905 = vld [vmem:[%s2867 + $0x128] sm:$0xff]
        %v2906 = vld [vmem:[%s2867 + $0x130] sm:$0xff]
        %v2907 = vld [vmem:[%s2867 + $0x138] sm:$0xff]
        %v2908 = vld [vmem:[%s2867 + $0x140] sm:$0xff]
        %v2909 = vld [vmem:[%s2867 + $0x148] sm:$0xff]
        %v2910 = vld [vmem:[%s2867 + $0x150] sm:$0xff]
        %v2911 = vld [vmem:[%s2867 + $0x158] sm:$0xff]
        %v2912 = vld [vmem:[%s2867 + $0x160] sm:$0xff]
        %v2913 = vld [vmem:[%s2867 + $0x168] sm:$0xff]
        %v2914 = vld [vmem:[%s2867 + $0x170] sm:$0xff]
        %v2915 = vld [vmem:[%s2867 + $0x178] sm:$0xff]
        %v2916 = vld [vmem:[%s2867 + $0x180] sm:$0xff]
        %v2917 = vld [vmem:[%s2867 + $0x188] sm:$0xff]
        %v2918 = vld [vmem:[%s2867 + $0x190] sm:$0xff]
        %v2919 = vld [vmem:[%s2867 + $0x198] sm:$0xff]
        %v2920 = vld [vmem:[%s2867 + $0x1a0] sm:$0xff]
        %v2921 = vld [vmem:[%s2867 + $0x1a8] sm:$0xff]
        %v2922 = vld [vmem:[%s2867 + $0x1b0] sm:$0xff]
        %v2923 = vld [vmem:[%s2867 + $0x1b8] sm:$0xff]
        %v2924 = vld [vmem:[%s2867 + $0x1c0] sm:$0xff]
        %v2925 = vld [vmem:[%s2867 + $0x1c8] sm:$0xff]
        %v2926 = vld [vmem:[%s2867 + $0x1d0] sm:$0xff]
        %v2927 = vld [vmem:[%s2867 + $0x1d8] sm:$0xff]
        %v2928 = vld [vmem:[%s2867 + $0x1e0] sm:$0xff]
        %v2929 = vld [vmem:[%s2867 + $0x1e8] sm:$0xff]
        %v2930 = vld [vmem:[%s2867 + $0x1f0] sm:$0xff]
        %v2931 = vld [vmem:[%s2867 + $0x1f8] sm:$0xff]
        %2932 = vmatpush.msra.mxu0 %v2898
        %2933 = vmatpush.msra.mxu0 %v2896
        %2934 = vmatpush.msra.mxu0 %v2894
        %2935 = vmatpush.msra.mxu0 %v2892
        %2936 = vmatpush.msra.mxu0 %v2890
        %2937 = vmatpush.msra.mxu0 %v2888
        %2938 = vmatpush.msra.mxu0 %v2886
        %2939 = vmatpush.msra.mxu0 %v2884
        %2940 = vmatpush.msra.mxu0 %v2882
        %2941 = vmatpush.msra.mxu0 %v2880
        %2942 = vmatpush.msra.mxu0 %v2878
        %2943 = vmatpush.msra.mxu0 %v2876
        %2944 = vmatpush.msra.mxu0 %v2874
        %2945 = vmatpush.msra.mxu0 %v2872
        %2946 = vmatpush.msra.mxu0 %v2870
        %2947 = vmatpush.msra.mxu0 %v2868
        %2948 = vmatmul.f32.gmra.mxu0 %v2839
        %v2949 = vpop.f32.mrf.mxu0
        %v2950 = vadd.f32 0.0, %v2949
        %2951 = vmatmul.f32.gmra.mxu0 %v2842
        %v2952 = vpop.f32.mrf.mxu0
        %v2953 = vadd.f32 0.0, %v2952
        %2954 = vdwg.mxu0
        %2955 = vmatpush.msra.mxu0 %v2930
        %2956 = vmatpush.msra.mxu0 %v2928
        %2957 = vmatpush.msra.mxu0 %v2926
        %2958 = vmatpush.msra.mxu0 %v2924
        %2959 = vmatpush.msra.mxu0 %v2922
        %2960 = vmatpush.msra.mxu0 %v2920
        %2961 = vmatpush.msra.mxu0 %v2918
        %2962 = vmatpush.msra.mxu0 %v2916
        %2963 = vmatpush.msra.mxu0 %v2914
        %2964 = vmatpush.msra.mxu0 %v2912
        %2965 = vmatpush.msra.mxu0 %v2910
        %2966 = vmatpush.msra.mxu0 %v2908
        %2967 = vmatpush.msra.mxu0 %v2906
        %2968 = vmatpush.msra.mxu0 %v2904
        %2969 = vmatpush.msra.mxu0 %v2902
        %2970 = vmatpush.msra.mxu0 %v2900
        %2971 = vmatmul.f32.gmra.mxu0 %v2862
        %v2972 = vpop.f32.mrf.mxu0
        %v2973 = vadd.f32 %v2950, %v2972
        %2974 = vmatmul.f32.gmra.mxu0 %v2865
        %v2975 = vpop.f32.mrf.mxu0
        %v2976 = vadd.f32 %v2953, %v2975
        %2977 = vdwg.mxu0
        %2978 = vmatpush.msra.mxu0 %v2899
        %2979 = vmatpush.msra.mxu0 %v2897
        %2980 = vmatpush.msra.mxu0 %v2895
        %2981 = vmatpush.msra.mxu0 %v2893
        %2982 = vmatpush.msra.mxu0 %v2891
        %2983 = vmatpush.msra.mxu0 %v2889
        %2984 = vmatpush.msra.mxu0 %v2887
        %2985 = vmatpush.msra.mxu0 %v2885
        %2986 = vmatpush.msra.mxu0 %v2883
        %2987 = vmatpush.msra.mxu0 %v2881
        %2988 = vmatpush.msra.mxu0 %v2879
        %2989 = vmatpush.msra.mxu0 %v2877
        %2990 = vmatpush.msra.mxu0 %v2875
        %2991 = vmatpush.msra.mxu0 %v2873
        %2992 = vmatpush.msra.mxu0 %v2871
        %2993 = vmatpush.msra.mxu0 %v2869
        %2994 = vmatmul.f32.gmra.mxu0 %v2839
        %v2995 = vpop.f32.mrf.mxu0
        %v2996 = vadd.f32 0.0, %v2995
        %2997 = vmatmul.f32.gmra.mxu0 %v2842
        %v2998 = vpop.f32.mrf.mxu0
        %v2999 = vadd.f32 0.0, %v2998
        %3000 = vdwg.mxu0
        %3001 = vmatpush.msra.mxu0 %v2931
        %3002 = vmatpush.msra.mxu0 %v2929
        %3003 = vmatpush.msra.mxu0 %v2927
        %3004 = vmatpush.msra.mxu0 %v2925
        %3005 = vmatpush.msra.mxu0 %v2923
        %3006 = vmatpush.msra.mxu0 %v2921
        %3007 = vmatpush.msra.mxu0 %v2919
        %3008 = vmatpush.msra.mxu0 %v2917
        %3009 = vmatpush.msra.mxu0 %v2915
        %3010 = vmatpush.msra.mxu0 %v2913
        %3011 = vmatpush.msra.mxu0 %v2911
        %3012 = vmatpush.msra.mxu0 %v2909
        %3013 = vmatpush.msra.mxu0 %v2907
        %3014 = vmatpush.msra.mxu0 %v2905
        %3015 = vmatpush.msra.mxu0 %v2903
        %3016 = vmatpush.msra.mxu0 %v2901
        %3017 = vmatmul.f32.gmra.mxu0 %v2862
        %v3018 = vpop.f32.mrf.mxu0
        %v3019 = vadd.f32 %v2996, %v3018
        %3020 = vmatmul.f32.gmra.mxu0 %v2865
        %v3021 = vpop.f32.mrf.mxu0
        %v3022 = vadd.f32 %v2999, %v3021
        %3023 = vdwg.mxu0
        %3024 = vmatpush.msra.mxu0 %v2778
        %3025 = vmatpush.msra.mxu0 %v2776
        %3026 = vmatpush.msra.mxu0 %v2774
        %3027 = vmatpush.msra.mxu0 %v2772
        %3028 = vmatpush.msra.mxu0 %v2770
        %3029 = vmatpush.msra.mxu0 %v2768
        %3030 = vmatpush.msra.mxu0 %v2766
        %3031 = vmatpush.msra.mxu0 %v2764
        %3032 = vmatpush.msra.mxu0 %v2762
        %3033 = vmatpush.msra.mxu0 %v2760
        %3034 = vmatpush.msra.mxu0 %v2758
        %3035 = vmatpush.msra.mxu0 %v2756
        %3036 = vmatpush.msra.mxu0 %v2754
        %3037 = vmatpush.msra.mxu0 %v2752
        %3038 = vmatpush.msra.mxu0 %v2750
        %3039 = vmatpush.msra.mxu0 %v2748
        %3040 = vmatmul.f32.gmra.mxu0 %v2720
        %v3041 = vpop.f32.mrf.mxu0
        %v3042 = vadd.f32 %v2973, %v3041
        %3043 = vmatmul.f32.gmra.mxu0 %v2723
        %v3044 = vpop.f32.mrf.mxu0
        %v3045 = vadd.f32 %v2976, %v3044
        %3046 = vdwg.mxu0
        %3047 = vmatpush.msra.mxu0 %v2810
        %3048 = vmatpush.msra.mxu0 %v2808
        %3049 = vmatpush.msra.mxu0 %v2806
        %3050 = vmatpush.msra.mxu0 %v2804
        %3051 = vmatpush.msra.mxu0 %v2802
        %3052 = vmatpush.msra.mxu0 %v2800
        %3053 = vmatpush.msra.mxu0 %v2798
        %3054 = vmatpush.msra.mxu0 %v2796
        %3055 = vmatpush.msra.mxu0 %v2794
        %3056 = vmatpush.msra.mxu0 %v2792
        %3057 = vmatpush.msra.mxu0 %v2790
        %3058 = vmatpush.msra.mxu0 %v2788
        %3059 = vmatpush.msra.mxu0 %v2786
        %3060 = vmatpush.msra.mxu0 %v2784
        %3061 = vmatpush.msra.mxu0 %v2782
        %3062 = vmatpush.msra.mxu0 %v2780
        %3063 = vmatmul.f32.gmra.mxu0 %v2743
        %v3064 = vpop.f32.mrf.mxu0
        %v3065 = vadd.f32 %v3042, %v3064
        %3066 = vmatmul.f32.gmra.mxu0 %v2746
        %v3067 = vpop.f32.mrf.mxu0
        %v3068 = vadd.f32 %v3045, %v3067
        %3069 = vdwg.mxu0
        %3070 = vmatpush.msra.mxu0 %v2779
        %3071 = vmatpush.msra.mxu0 %v2777
        %3072 = vmatpush.msra.mxu0 %v2775
        %3073 = vmatpush.msra.mxu0 %v2773
        %3074 = vmatpush.msra.mxu0 %v2771
        %3075 = vmatpush.msra.mxu0 %v2769
        %3076 = vmatpush.msra.mxu0 %v2767
        %3077 = vmatpush.msra.mxu0 %v2765
        %3078 = vmatpush.msra.mxu0 %v2763
        %3079 = vmatpush.msra.mxu0 %v2761
        %3080 = vmatpush.msra.mxu0 %v2759
        %3081 = vmatpush.msra.mxu0 %v2757
        %3082 = vmatpush.msra.mxu0 %v2755
        %3083 = vmatpush.msra.mxu0 %v2753
        %3084 = vmatpush.msra.mxu0 %v2751
        %3085 = vmatpush.msra.mxu0 %v2749
        %3086 = vmatmul.f32.gmra.mxu0 %v2720
        %v3087 = vpop.f32.mrf.mxu0
        %v3088 = vadd.f32 %v3019, %v3087
        %3089 = vmatmul.f32.gmra.mxu0 %v2723
        %v3090 = vpop.f32.mrf.mxu0
        %v3091 = vadd.f32 %v3022, %v3090
        %3092 = vdwg.mxu0
        %3093 = vmatpush.msra.mxu0 %v2811
        %3094 = vmatpush.msra.mxu0 %v2809
        %3095 = vmatpush.msra.mxu0 %v2807
        %3096 = vmatpush.msra.mxu0 %v2805
        %3097 = vmatpush.msra.mxu0 %v2803
        %3098 = vmatpush.msra.mxu0 %v2801
        %3099 = vmatpush.msra.mxu0 %v2799
        %3100 = vmatpush.msra.mxu0 %v2797
        %3101 = vmatpush.msra.mxu0 %v2795
        %3102 = vmatpush.msra.mxu0 %v2793
        %3103 = vmatpush.msra.mxu0 %v2791
        %3104 = vmatpush.msra.mxu0 %v2789
        %3105 = vmatpush.msra.mxu0 %v2787
        %3106 = vmatpush.msra.mxu0 %v2785
        %3107 = vmatpush.msra.mxu0 %v2783
        %3108 = vmatpush.msra.mxu0 %v2781
        %3109 = vmatmul.f32.gmra.mxu0 %v2743
        %v3110 = vpop.f32.mrf.mxu0
        %v3111 = vadd.f32 %v3088, %v3110
        %3112 = vmatmul.f32.gmra.mxu0 %v2746
        %v3113 = vpop.f32.mrf.mxu0
        %v3114 = vadd.f32 %v3091, %v3113
        %3115 = vdwg.mxu0
        %s3116 = scalar_lea.vmem [#allocation13], 32
        %v3117 = vld [vmem:[%s3116] sm:$0xff]
        %v3118 = vld [vmem:[%s3116 + $0x8] sm:$0xff]
        %v3120 = vsel %vm2695, %v3117, 0
        %v3123 = vsel %vm2695, %v3118, 0
        %3125 = vmatpush.msra.mxu0 0.0
        %3126 = vmatpush.msra.mxu0 0.0
        %3127 = vmatpush.msra.mxu0 0.0
        %3128 = vmatpush.msra.mxu0 0.0
        %3129 = vmatpush.msra.mxu0 0.0
        %3130 = vmatpush.msra.mxu0 0.0
        %3131 = vmatpush.msra.mxu0 0.0
        %3132 = vmatpush.msra.mxu0 0.0
        %3133 = vmatpush.msra.mxu0 0.0
        %3134 = vmatpush.msra.mxu0 0.0
        %3135 = vmatpush.msra.mxu0 0.0
        %3136 = vmatpush.msra.mxu0 0.0
        %3137 = vmatpush.msra.mxu0 %v2691
        %3138 = vmatpush.msra.mxu0 %v2689
        %3139 = vmatpush.msra.mxu0 %v2687
        %3140 = vmatpush.msra.mxu0 %v2685
        %3141 = vmatmul.f32.gmra.mxu0 %v3120
        %v3142 = vpop.f32.mrf.mxu0
        %v3143 = vadd.f32 0.0, %v3142
        %3144 = vmatmul.f32.gmra.mxu0 %v3123
        %v3145 = vpop.f32.mrf.mxu0
        %v3146 = vadd.f32 0.0, %v3145
        %3147 = vdwg.mxu0
        %3148 = vmatpush.msra.mxu0 0.0
        %3149 = vmatpush.msra.mxu0 0.0
        %3150 = vmatpush.msra.mxu0 0.0
        %3151 = vmatpush.msra.mxu0 0.0
        %3152 = vmatpush.msra.mxu0 0.0
        %3153 = vmatpush.msra.mxu0 0.0
        %3154 = vmatpush.msra.mxu0 0.0
        %3155 = vmatpush.msra.mxu0 0.0
        %3156 = vmatpush.msra.mxu0 0.0
        %3157 = vmatpush.msra.mxu0 0.0
        %3158 = vmatpush.msra.mxu0 0.0
        %3159 = vmatpush.msra.mxu0 0.0
        %3160 = vmatpush.msra.mxu0 %v2692
        %3161 = vmatpush.msra.mxu0 %v2690
        %3162 = vmatpush.msra.mxu0 %v2688
        %3163 = vmatpush.msra.mxu0 %v2686
        %3164 = vmatmul.f32.gmra.mxu0 %v3120
        %v3165 = vpop.f32.mrf.mxu0
        %v3166 = vadd.f32 0.0, %v3165
        %3167 = vmatmul.f32.gmra.mxu0 %v3123
        %v3168 = vpop.f32.mrf.mxu0
        %v3169 = vadd.f32 0.0, %v3168
        %3170 = vdwg.mxu0
        %s3171 = scalar_lea.vmem [#allocation14], 1024
        %v3172 = vld [vmem:[%s3171] sm:$0xff]
        %v3173 = vld [vmem:[%s3171 + $0x8] sm:$0xff]
        %v3174 = vld [vmem:[%s3171 + $0x10] sm:$0xff]
        %v3175 = vld [vmem:[%s3171 + $0x18] sm:$0xff]
        %v3176 = vld [vmem:[%s3171 + $0x20] sm:$0xff]
        %v3177 = vld [vmem:[%s3171 + $0x28] sm:$0xff]
        %v3178 = vld [vmem:[%s3171 + $0x30] sm:$0xff]
        %v3179 = vld [vmem:[%s3171 + $0x38] sm:$0xff]
        %v3180 = vld [vmem:[%s3171 + $0x40] sm:$0xff]
        %v3181 = vld [vmem:[%s3171 + $0x48] sm:$0xff]
        %v3182 = vld [vmem:[%s3171 + $0x50] sm:$0xff]
        %v3183 = vld [vmem:[%s3171 + $0x58] sm:$0xff]
        %v3184 = vld [vmem:[%s3171 + $0x60] sm:$0xff]
        %v3185 = vld [vmem:[%s3171 + $0x68] sm:$0xff]
        %v3186 = vld [vmem:[%s3171 + $0x70] sm:$0xff]
        %v3187 = vld [vmem:[%s3171 + $0x78] sm:$0xff]
        %v3188 = vld [vmem:[%s3171 + $0x80] sm:$0xff]
        %v3189 = vld [vmem:[%s3171 + $0x88] sm:$0xff]
        %v3190 = vld [vmem:[%s3171 + $0x90] sm:$0xff]
        %v3191 = vld [vmem:[%s3171 + $0x98] sm:$0xff]
        %v3192 = vld [vmem:[%s3171 + $0xa0] sm:$0xff]
        %v3193 = vld [vmem:[%s3171 + $0xa8] sm:$0xff]
        %v3194 = vld [vmem:[%s3171 + $0xb0] sm:$0xff]
        %v3195 = vld [vmem:[%s3171 + $0xb8] sm:$0xff]
        %v3196 = vld [vmem:[%s3171 + $0xc0] sm:$0xff]
        %v3197 = vld [vmem:[%s3171 + $0xc8] sm:$0xff]
        %v3198 = vld [vmem:[%s3171 + $0xd0] sm:$0xff]
        %v3199 = vld [vmem:[%s3171 + $0xd8] sm:$0xff]
        %v3200 = vld [vmem:[%s3171 + $0xe0] sm:$0xff]
        %v3201 = vld [vmem:[%s3171 + $0xe8] sm:$0xff]
        %v3202 = vld [vmem:[%s3171 + $0xf0] sm:$0xff]
        %v3203 = vld [vmem:[%s3171 + $0xf8] sm:$0xff]
        %v3204 = vld [vmem:[%s3171 + $0x100] sm:$0xff]
        %v3205 = vld [vmem:[%s3171 + $0x108] sm:$0xff]
        %v3206 = vld [vmem:[%s3171 + $0x110] sm:$0xff]
        %v3207 = vld [vmem:[%s3171 + $0x118] sm:$0xff]
        %v3208 = vld [vmem:[%s3171 + $0x120] sm:$0xff]
        %v3209 = vld [vmem:[%s3171 + $0x128] sm:$0xff]
        %v3210 = vld [vmem:[%s3171 + $0x130] sm:$0xff]
        %v3211 = vld [vmem:[%s3171 + $0x138] sm:$0xff]
        %v3212 = vld [vmem:[%s3171 + $0x140] sm:$0xff]
        %v3213 = vld [vmem:[%s3171 + $0x148] sm:$0xff]
        %v3214 = vld [vmem:[%s3171 + $0x150] sm:$0xff]
        %v3215 = vld [vmem:[%s3171 + $0x158] sm:$0xff]
        %v3216 = vld [vmem:[%s3171 + $0x160] sm:$0xff]
        %v3217 = vld [vmem:[%s3171 + $0x168] sm:$0xff]
        %v3218 = vld [vmem:[%s3171 + $0x170] sm:$0xff]
        %v3219 = vld [vmem:[%s3171 + $0x178] sm:$0xff]
        %v3220 = vld [vmem:[%s3171 + $0x180] sm:$0xff]
        %v3221 = vld [vmem:[%s3171 + $0x188] sm:$0xff]
        %v3222 = vld [vmem:[%s3171 + $0x190] sm:$0xff]
        %v3223 = vld [vmem:[%s3171 + $0x198] sm:$0xff]
        %v3224 = vld [vmem:[%s3171 + $0x1a0] sm:$0xff]
        %v3225 = vld [vmem:[%s3171 + $0x1a8] sm:$0xff]
        %v3226 = vld [vmem:[%s3171 + $0x1b0] sm:$0xff]
        %v3227 = vld [vmem:[%s3171 + $0x1b8] sm:$0xff]
        %v3228 = vld [vmem:[%s3171 + $0x1c0] sm:$0xff]
        %v3229 = vld [vmem:[%s3171 + $0x1c8] sm:$0xff]
        %v3230 = vld [vmem:[%s3171 + $0x1d0] sm:$0xff]
        %v3231 = vld [vmem:[%s3171 + $0x1d8] sm:$0xff]
        %v3232 = vld [vmem:[%s3171 + $0x1e0] sm:$0xff]
        %v3233 = vld [vmem:[%s3171 + $0x1e8] sm:$0xff]
        %v3234 = vld [vmem:[%s3171 + $0x1f0] sm:$0xff]
        %v3235 = vld [vmem:[%s3171 + $0x1f8] sm:$0xff]
        %3236 = vmatpush.msra.mxu0 %v3202
        %3237 = vmatpush.msra.mxu0 %v3200
        %3238 = vmatpush.msra.mxu0 %v3198
        %3239 = vmatpush.msra.mxu0 %v3196
        %3240 = vmatpush.msra.mxu0 %v3194
        %3241 = vmatpush.msra.mxu0 %v3192
        %3242 = vmatpush.msra.mxu0 %v3190
        %3243 = vmatpush.msra.mxu0 %v3188
        %3244 = vmatpush.msra.mxu0 %v3186
        %3245 = vmatpush.msra.mxu0 %v3184
        %3246 = vmatpush.msra.mxu0 %v3182
        %3247 = vmatpush.msra.mxu0 %v3180
        %3248 = vmatpush.msra.mxu0 %v3178
        %3249 = vmatpush.msra.mxu0 %v3176
        %3250 = vmatpush.msra.mxu0 %v3174
        %3251 = vmatpush.msra.mxu0 %v3172
        %3252 = vmatmul.f32.gmra.mxu0 %v3143
        %v3253 = vpop.f32.mrf.mxu0
        %v3254 = vadd.f32 0.0, %v3253
        %3255 = vmatmul.f32.gmra.mxu0 %v3146
        %v3256 = vpop.f32.mrf.mxu0
        %v3257 = vadd.f32 0.0, %v3256
        %3258 = vdwg.mxu0
        %3259 = vmatpush.msra.mxu0 %v3234
        %3260 = vmatpush.msra.mxu0 %v3232
        %3261 = vmatpush.msra.mxu0 %v3230
        %3262 = vmatpush.msra.mxu0 %v3228
        %3263 = vmatpush.msra.mxu0 %v3226
        %3264 = vmatpush.msra.mxu0 %v3224
        %3265 = vmatpush.msra.mxu0 %v3222
        %3266 = vmatpush.msra.mxu0 %v3220
        %3267 = vmatpush.msra.mxu0 %v3218
        %3268 = vmatpush.msra.mxu0 %v3216
        %3269 = vmatpush.msra.mxu0 %v3214
        %3270 = vmatpush.msra.mxu0 %v3212
        %3271 = vmatpush.msra.mxu0 %v3210
        %3272 = vmatpush.msra.mxu0 %v3208
        %3273 = vmatpush.msra.mxu0 %v3206
        %3274 = vmatpush.msra.mxu0 %v3204
        %3275 = vmatmul.f32.gmra.mxu0 %v3166
        %v3276 = vpop.f32.mrf.mxu0
        %v3277 = vadd.f32 %v3254, %v3276
        %3278 = vmatmul.f32.gmra.mxu0 %v3169
        %v3279 = vpop.f32.mrf.mxu0
        %v3280 = vadd.f32 %v3257, %v3279
        %3281 = vdwg.mxu0
        %3282 = vmatpush.msra.mxu0 %v3203
        %3283 = vmatpush.msra.mxu0 %v3201
        %3284 = vmatpush.msra.mxu0 %v3199
        %3285 = vmatpush.msra.mxu0 %v3197
        %3286 = vmatpush.msra.mxu0 %v3195
        %3287 = vmatpush.msra.mxu0 %v3193
        %3288 = vmatpush.msra.mxu0 %v3191
        %3289 = vmatpush.msra.mxu0 %v3189
        %3290 = vmatpush.msra.mxu0 %v3187
        %3291 = vmatpush.msra.mxu0 %v3185
        %3292 = vmatpush.msra.mxu0 %v3183
        %3293 = vmatpush.msra.mxu0 %v3181
        %3294 = vmatpush.msra.mxu0 %v3179
        %3295 = vmatpush.msra.mxu0 %v3177
        %3296 = vmatpush.msra.mxu0 %v3175
        %3297 = vmatpush.msra.mxu0 %v3173
        %3298 = vmatmul.f32.gmra.mxu0 %v3143
        %v3299 = vpop.f32.mrf.mxu0
        %v3300 = vadd.f32 0.0, %v3299
        %3301 = vmatmul.f32.gmra.mxu0 %v3146
        %v3302 = vpop.f32.mrf.mxu0
        %v3303 = vadd.f32 0.0, %v3302
        %3304 = vdwg.mxu0
        %3305 = vmatpush.msra.mxu0 %v3235
        %3306 = vmatpush.msra.mxu0 %v3233
        %3307 = vmatpush.msra.mxu0 %v3231
        %3308 = vmatpush.msra.mxu0 %v3229
        %3309 = vmatpush.msra.mxu0 %v3227
        %3310 = vmatpush.msra.mxu0 %v3225
        %3311 = vmatpush.msra.mxu0 %v3223
        %3312 = vmatpush.msra.mxu0 %v3221
        %3313 = vmatpush.msra.mxu0 %v3219
        %3314 = vmatpush.msra.mxu0 %v3217
        %3315 = vmatpush.msra.mxu0 %v3215
        %3316 = vmatpush.msra.mxu0 %v3213
        %3317 = vmatpush.msra.mxu0 %v3211
        %3318 = vmatpush.msra.mxu0 %v3209
        %3319 = vmatpush.msra.mxu0 %v3207
        %3320 = vmatpush.msra.mxu0 %v3205
        %3321 = vmatmul.f32.gmra.mxu0 %v3166
        %v3322 = vpop.f32.mrf.mxu0
        %v3323 = vadd.f32 %v3300, %v3322
        %3324 = vmatmul.f32.gmra.mxu0 %v3169
        %v3325 = vpop.f32.mrf.mxu0
        %v3326 = vadd.f32 %v3303, %v3325
        %3327 = vdwg.mxu0
        %v3328 = vadd.f32 %v3065, %v3277
        %v3329 = vadd.f32 %v3111, %v3323
        %v3330 = vadd.f32 %v3068, %v3280
        %v3331 = vadd.f32 %v3114, %v3326
        %v3332 = vld [vmem:[#allocation16] sm:$0x3]
        %v3334 = vperm.slane %v3332, 0
        %v3335 = vperm.slane %v3332, 1
        %v3338 = vadd.f32 %v3328, %v3334
        %v3339 = vadd.f32 %v3329, %v3335
        %v3340 = vadd.f32 %v3330, %v3334
        %v3341 = vadd.f32 %v3331, %v3335
        %v3342 = vmax.f32 %v3338, 0.0
        %v3343 = vmax.f32 %v3339, 0.0
        %v3344 = vmax.f32 %v3340, 0.0
        %v3345 = vmax.f32 %v3341, 0.0
        %v3346 = vld [vmem:[#allocation17] sm:$0xff]
        %vm3347 = vcmask 130048
        %v3349 = vsel %vm3347, %v3346, 0
        %3351 = vmatpush.msra.mxu0 0.0
        %3352 = vmatpush.msra.mxu0 0.0
        %3353 = vmatpush.msra.mxu0 0.0
        %3354 = vmatpush.msra.mxu0 0.0
        %3355 = vmatpush.msra.mxu0 0.0
        %3356 = vmatpush.msra.mxu0 0.0
        %3357 = vmatpush.msra.mxu0 0.0
        %3358 = vmatpush.msra.mxu0 0.0
        %3359 = vmatpush.msra.mxu0 0.0
        %3360 = vmatpush.msra.mxu0 0.0
        %3361 = vmatpush.msra.mxu0 0.0
        %3362 = vmatpush.msra.mxu0 0.0
        %3363 = vmatpush.msra.mxu0 0.0
        %3364 = vmatpush.msra.mxu0 0.0
        %3365 = vmatpush.msra.mxu0 %v3344
        %3366 = vmatpush.msra.mxu0 %v3342
        %3367 = vmatmul.f32.gmra.mxu0 %v3349
        %v3368 = vpop.f32.mrf.mxu0
        %v3369 = vadd.f32 0.0, %v3368
        %3370 = vdwg.mxu0
        %3371 = vmatpush.msra.mxu0 0.0
        %3372 = vmatpush.msra.mxu0 0.0
        %3373 = vmatpush.msra.mxu0 0.0
        %3374 = vmatpush.msra.mxu0 0.0
        %3375 = vmatpush.msra.mxu0 0.0
        %3376 = vmatpush.msra.mxu0 0.0
        %3377 = vmatpush.msra.mxu0 0.0
        %3378 = vmatpush.msra.mxu0 0.0
        %3379 = vmatpush.msra.mxu0 0.0
        %3380 = vmatpush.msra.mxu0 0.0
        %3381 = vmatpush.msra.mxu0 0.0
        %3382 = vmatpush.msra.mxu0 0.0
        %3383 = vmatpush.msra.mxu0 0.0
        %3384 = vmatpush.msra.mxu0 0.0
        %3385 = vmatpush.msra.mxu0 %v3345
        %3386 = vmatpush.msra.mxu0 %v3343
        %3387 = vmatmul.f32.gmra.mxu0 %v3349
        %v3388 = vpop.f32.mrf.mxu0
        %v3389 = vadd.f32 0.0, %v3388
        %3390 = vdwg.mxu0
        %v3391 = vld [vmem:[%s11] sm:$0xff]
        %v3392 = vld [vmem:[%s11 + $0x8] sm:$0xff]
        %v3393 = vld [vmem:[%s11 + $0x10] sm:$0xff]
        %v3394 = vld [vmem:[%s11 + $0x18] sm:$0xff]
        %v3395 = vld [vmem:[%s11 + $0x20] sm:$0xff]
        %v3396 = vld [vmem:[%s11 + $0x28] sm:$0xff]
        %v3397 = vld [vmem:[%s11 + $0x30] sm:$0xff]
        %v3398 = vld [vmem:[%s11 + $0x38] sm:$0xff]
        %v3399 = vld [vmem:[%s11 + $0x40] sm:$0xff]
        %v3400 = vld [vmem:[%s11 + $0x48] sm:$0xff]
        %v3401 = vld [vmem:[%s11 + $0x50] sm:$0xff]
        %v3402 = vld [vmem:[%s11 + $0x58] sm:$0xff]
        %v3403 = vld [vmem:[%s11 + $0x60] sm:$0xff]
        %v3404 = vld [vmem:[%s11 + $0x68] sm:$0xff]
        %v3405 = vld [vmem:[%s11 + $0x70] sm:$0xff]
        %v3406 = vld [vmem:[%s11 + $0x78] sm:$0xff]
        %v3407 = vld [vmem:[%s11 + $0x80] sm:$0xff]
        %v3408 = vld [vmem:[%s11 + $0x88] sm:$0xff]
        %v3409 = vld [vmem:[%s11 + $0x90] sm:$0xff]
        %v3410 = vld [vmem:[%s11 + $0x98] sm:$0xff]
        %v3411 = vld [vmem:[%s11 + $0xa0] sm:$0xff]
        %v3412 = vld [vmem:[%s11 + $0xa8] sm:$0xff]
        %v3413 = vld [vmem:[%s11 + $0xb0] sm:$0xff]
        %v3414 = vld [vmem:[%s11 + $0xb8] sm:$0xff]
        %v3415 = vld [vmem:[%s11 + $0xc0] sm:$0xff]
        %v3416 = vld [vmem:[%s11 + $0xc8] sm:$0xff]
        %v3417 = vld [vmem:[%s11 + $0xd0] sm:$0xff]
        %v3418 = vld [vmem:[%s11 + $0xd8] sm:$0xff]
        %v3419 = vld [vmem:[%s11 + $0xe0] sm:$0xff]
        %v3420 = vld [vmem:[%s11 + $0xe8] sm:$0xff]
        %v3421 = vld [vmem:[%s11 + $0xf0] sm:$0xff]
        %v3422 = vld [vmem:[%s11 + $0xf8] sm:$0xff]
        %v3423 = vld [vmem:[%s11 + $0x100] sm:$0xff]
        %v3424 = vld [vmem:[%s11 + $0x108] sm:$0xff]
        %v3425 = vld [vmem:[%s11 + $0x110] sm:$0xff]
        %v3426 = vld [vmem:[%s11 + $0x118] sm:$0xff]
        %v3427 = vld [vmem:[%s11 + $0x120] sm:$0xff]
        %v3428 = vld [vmem:[%s11 + $0x128] sm:$0xff]
        %v3429 = vld [vmem:[%s11 + $0x130] sm:$0xff]
        %v3430 = vld [vmem:[%s11 + $0x138] sm:$0xff]
        %v3431 = vld [vmem:[%s11 + $0x140] sm:$0xff]
        %v3432 = vld [vmem:[%s11 + $0x148] sm:$0xff]
        %v3433 = vld [vmem:[%s11 + $0x150] sm:$0xff]
        %v3434 = vld [vmem:[%s11 + $0x158] sm:$0xff]
        %v3435 = vld [vmem:[%s11 + $0x160] sm:$0xff]
        %v3436 = vld [vmem:[%s11 + $0x168] sm:$0xff]
        %v3437 = vld [vmem:[%s11 + $0x170] sm:$0xff]
        %v3438 = vld [vmem:[%s11 + $0x178] sm:$0xff]
        %v3439 = vld [vmem:[%s11 + $0x180] sm:$0xff]
        %v3440 = vld [vmem:[%s11 + $0x188] sm:$0xff]
        %v3441 = vld [vmem:[%s11 + $0x190] sm:$0xff]
        %v3442 = vld [vmem:[%s11 + $0x198] sm:$0xff]
        %v3443 = vld [vmem:[%s11 + $0x1a0] sm:$0xff]
        %v3444 = vld [vmem:[%s11 + $0x1a8] sm:$0xff]
        %v3445 = vld [vmem:[%s11 + $0x1b0] sm:$0xff]
        %v3446 = vld [vmem:[%s11 + $0x1b8] sm:$0xff]
        %v3447 = vld [vmem:[%s11 + $0x1c0] sm:$0xff]
        %v3448 = vld [vmem:[%s11 + $0x1c8] sm:$0xff]
        %v3449 = vld [vmem:[%s11 + $0x1d0] sm:$0xff]
        %v3450 = vld [vmem:[%s11 + $0x1d8] sm:$0xff]
        %v3451 = vld [vmem:[%s11 + $0x1e0] sm:$0xff]
        %v3452 = vld [vmem:[%s11 + $0x1e8] sm:$0xff]
        %v3453 = vld [vmem:[%s11 + $0x1f0] sm:$0xff]
        %v3454 = vld [vmem:[%s11 + $0x1f8] sm:$0xff]
        %s3455 = scalar_lea.vmem [#allocation17], 8
        %v3456 = vld [vmem:[%s3455] sm:$0xff]
        %v3458 = vsel %vm3347, %v3456, 0
        %3460 = vmatpush.msra.mxu0 0.0
        %3461 = vmatpush.msra.mxu0 0.0
        %3462 = vmatpush.msra.mxu0 0.0
        %3463 = vmatpush.msra.mxu0 0.0
        %3464 = vmatpush.msra.mxu0 0.0
        %3465 = vmatpush.msra.mxu0 0.0
        %3466 = vmatpush.msra.mxu0 0.0
        %3467 = vmatpush.msra.mxu0 0.0
        %3468 = vmatpush.msra.mxu0 0.0
        %3469 = vmatpush.msra.mxu0 0.0
        %3470 = vmatpush.msra.mxu0 0.0
        %3471 = vmatpush.msra.mxu0 0.0
        %3472 = vmatpush.msra.mxu0 0.0
        %3473 = vmatpush.msra.mxu0 0.0
        %3474 = vmatpush.msra.mxu0 %v3344
        %3475 = vmatpush.msra.mxu0 %v3342
        %3476 = vmatmul.f32.gmra.mxu0 %v3458
        %v3477 = vpop.f32.mrf.mxu0
        %v3478 = vadd.f32 0.0, %v3477
        %3479 = vdwg.mxu0
        %3480 = vmatpush.msra.mxu0 0.0
        %3481 = vmatpush.msra.mxu0 0.0
        %3482 = vmatpush.msra.mxu0 0.0
        %3483 = vmatpush.msra.mxu0 0.0
        %3484 = vmatpush.msra.mxu0 0.0
        %3485 = vmatpush.msra.mxu0 0.0
        %3486 = vmatpush.msra.mxu0 0.0
        %3487 = vmatpush.msra.mxu0 0.0
        %3488 = vmatpush.msra.mxu0 0.0
        %3489 = vmatpush.msra.mxu0 0.0
        %3490 = vmatpush.msra.mxu0 0.0
        %3491 = vmatpush.msra.mxu0 0.0
        %3492 = vmatpush.msra.mxu0 0.0
        %3493 = vmatpush.msra.mxu0 0.0
        %3494 = vmatpush.msra.mxu0 %v3345
        %3495 = vmatpush.msra.mxu0 %v3343
        %3496 = vmatmul.f32.gmra.mxu0 %v3458
        %v3497 = vpop.f32.mrf.mxu0
        %v3498 = vadd.f32 0.0, %v3497
        %3499 = vdwg.mxu0
        %s3500 = scalar_lea.vmem %s11, 512
        %v3501 = vld [vmem:[%s3500] sm:$0xff]
        %v3502 = vld [vmem:[%s3500 + $0x8] sm:$0xff]
        %v3503 = vld [vmem:[%s3500 + $0x10] sm:$0xff]
        %v3504 = vld [vmem:[%s3500 + $0x18] sm:$0xff]
        %v3505 = vld [vmem:[%s3500 + $0x20] sm:$0xff]
        %v3506 = vld [vmem:[%s3500 + $0x28] sm:$0xff]
        %v3507 = vld [vmem:[%s3500 + $0x30] sm:$0xff]
        %v3508 = vld [vmem:[%s3500 + $0x38] sm:$0xff]
        %v3509 = vld [vmem:[%s3500 + $0x40] sm:$0xff]
        %v3510 = vld [vmem:[%s3500 + $0x48] sm:$0xff]
        %v3511 = vld [vmem:[%s3500 + $0x50] sm:$0xff]
        %v3512 = vld [vmem:[%s3500 + $0x58] sm:$0xff]
        %v3513 = vld [vmem:[%s3500 + $0x60] sm:$0xff]
        %v3514 = vld [vmem:[%s3500 + $0x68] sm:$0xff]
        %v3515 = vld [vmem:[%s3500 + $0x70] sm:$0xff]
        %v3516 = vld [vmem:[%s3500 + $0x78] sm:$0xff]
        %v3517 = vld [vmem:[%s3500 + $0x80] sm:$0xff]
        %v3518 = vld [vmem:[%s3500 + $0x88] sm:$0xff]
        %v3519 = vld [vmem:[%s3500 + $0x90] sm:$0xff]
        %v3520 = vld [vmem:[%s3500 + $0x98] sm:$0xff]
        %v3521 = vld [vmem:[%s3500 + $0xa0] sm:$0xff]
        %v3522 = vld [vmem:[%s3500 + $0xa8] sm:$0xff]
        %v3523 = vld [vmem:[%s3500 + $0xb0] sm:$0xff]
        %v3524 = vld [vmem:[%s3500 + $0xb8] sm:$0xff]
        %v3525 = vld [vmem:[%s3500 + $0xc0] sm:$0xff]
        %v3526 = vld [vmem:[%s3500 + $0xc8] sm:$0xff]
        %v3527 = vld [vmem:[%s3500 + $0xd0] sm:$0xff]
        %v3528 = vld [vmem:[%s3500 + $0xd8] sm:$0xff]
        %v3529 = vld [vmem:[%s3500 + $0xe0] sm:$0xff]
        %v3530 = vld [vmem:[%s3500 + $0xe8] sm:$0xff]
        %v3531 = vld [vmem:[%s3500 + $0xf0] sm:$0xff]
        %v3532 = vld [vmem:[%s3500 + $0xf8] sm:$0xff]
        %v3533 = vld [vmem:[%s3500 + $0x100] sm:$0xff]
        %v3534 = vld [vmem:[%s3500 + $0x108] sm:$0xff]
        %v3535 = vld [vmem:[%s3500 + $0x110] sm:$0xff]
        %v3536 = vld [vmem:[%s3500 + $0x118] sm:$0xff]
        %v3537 = vld [vmem:[%s3500 + $0x120] sm:$0xff]
        %v3538 = vld [vmem:[%s3500 + $0x128] sm:$0xff]
        %v3539 = vld [vmem:[%s3500 + $0x130] sm:$0xff]
        %v3540 = vld [vmem:[%s3500 + $0x138] sm:$0xff]
        %v3541 = vld [vmem:[%s3500 + $0x140] sm:$0xff]
        %v3542 = vld [vmem:[%s3500 + $0x148] sm:$0xff]
        %v3543 = vld [vmem:[%s3500 + $0x150] sm:$0xff]
        %v3544 = vld [vmem:[%s3500 + $0x158] sm:$0xff]
        %v3545 = vld [vmem:[%s3500 + $0x160] sm:$0xff]
        %v3546 = vld [vmem:[%s3500 + $0x168] sm:$0xff]
        %v3547 = vld [vmem:[%s3500 + $0x170] sm:$0xff]
        %v3548 = vld [vmem:[%s3500 + $0x178] sm:$0xff]
        %v3549 = vld [vmem:[%s3500 + $0x180] sm:$0xff]
        %v3550 = vld [vmem:[%s3500 + $0x188] sm:$0xff]
        %v3551 = vld [vmem:[%s3500 + $0x190] sm:$0xff]
        %v3552 = vld [vmem:[%s3500 + $0x198] sm:$0xff]
        %v3553 = vld [vmem:[%s3500 + $0x1a0] sm:$0xff]
        %v3554 = vld [vmem:[%s3500 + $0x1a8] sm:$0xff]
        %v3555 = vld [vmem:[%s3500 + $0x1b0] sm:$0xff]
        %v3556 = vld [vmem:[%s3500 + $0x1b8] sm:$0xff]
        %v3557 = vld [vmem:[%s3500 + $0x1c0] sm:$0xff]
        %v3558 = vld [vmem:[%s3500 + $0x1c8] sm:$0xff]
        %v3559 = vld [vmem:[%s3500 + $0x1d0] sm:$0xff]
        %v3560 = vld [vmem:[%s3500 + $0x1d8] sm:$0xff]
        %v3561 = vld [vmem:[%s3500 + $0x1e0] sm:$0xff]
        %v3562 = vld [vmem:[%s3500 + $0x1e8] sm:$0xff]
        %v3563 = vld [vmem:[%s3500 + $0x1f0] sm:$0xff]
        %v3564 = vld [vmem:[%s3500 + $0x1f8] sm:$0xff]
        %3565 = vmatpush.msra.mxu0 %v3531
        %3566 = vmatpush.msra.mxu0 %v3529
        %3567 = vmatpush.msra.mxu0 %v3527
        %3568 = vmatpush.msra.mxu0 %v3525
        %3569 = vmatpush.msra.mxu0 %v3523
        %3570 = vmatpush.msra.mxu0 %v3521
        %3571 = vmatpush.msra.mxu0 %v3519
        %3572 = vmatpush.msra.mxu0 %v3517
        %3573 = vmatpush.msra.mxu0 %v3515
        %3574 = vmatpush.msra.mxu0 %v3513
        %3575 = vmatpush.msra.mxu0 %v3511
        %3576 = vmatpush.msra.mxu0 %v3509
        %3577 = vmatpush.msra.mxu0 %v3507
        %3578 = vmatpush.msra.mxu0 %v3505
        %3579 = vmatpush.msra.mxu0 %v3503
        %3580 = vmatpush.msra.mxu0 %v3501
        %3581 = vmatmul.f32.gmra.mxu0 %v3478
        %v3582 = vpop.f32.mrf.mxu0
        %v3583 = vadd.f32 0.0, %v3582
        %3584 = vdwg.mxu0
        %3585 = vmatpush.msra.mxu0 %v3563
        %3586 = vmatpush.msra.mxu0 %v3561
        %3587 = vmatpush.msra.mxu0 %v3559
        %3588 = vmatpush.msra.mxu0 %v3557
        %3589 = vmatpush.msra.mxu0 %v3555
        %3590 = vmatpush.msra.mxu0 %v3553
        %3591 = vmatpush.msra.mxu0 %v3551
        %3592 = vmatpush.msra.mxu0 %v3549
        %3593 = vmatpush.msra.mxu0 %v3547
        %3594 = vmatpush.msra.mxu0 %v3545
        %3595 = vmatpush.msra.mxu0 %v3543
        %3596 = vmatpush.msra.mxu0 %v3541
        %3597 = vmatpush.msra.mxu0 %v3539
        %3598 = vmatpush.msra.mxu0 %v3537
        %3599 = vmatpush.msra.mxu0 %v3535
        %3600 = vmatpush.msra.mxu0 %v3533
        %3601 = vmatmul.f32.gmra.mxu0 %v3498
        %v3602 = vpop.f32.mrf.mxu0
        %v3603 = vadd.f32 %v3583, %v3602
        %3604 = vdwg.mxu0
        %3605 = vmatpush.msra.mxu0 %v3532
        %3606 = vmatpush.msra.mxu0 %v3530
        %3607 = vmatpush.msra.mxu0 %v3528
        %3608 = vmatpush.msra.mxu0 %v3526
        %3609 = vmatpush.msra.mxu0 %v3524
        %3610 = vmatpush.msra.mxu0 %v3522
        %3611 = vmatpush.msra.mxu0 %v3520
        %3612 = vmatpush.msra.mxu0 %v3518
        %3613 = vmatpush.msra.mxu0 %v3516
        %3614 = vmatpush.msra.mxu0 %v3514
        %3615 = vmatpush.msra.mxu0 %v3512
        %3616 = vmatpush.msra.mxu0 %v3510
        %3617 = vmatpush.msra.mxu0 %v3508
        %3618 = vmatpush.msra.mxu0 %v3506
        %3619 = vmatpush.msra.mxu0 %v3504
        %3620 = vmatpush.msra.mxu0 %v3502
        %3621 = vmatmul.f32.gmra.mxu0 %v3478
        %v3622 = vpop.f32.mrf.mxu0
        %v3623 = vadd.f32 0.0, %v3622
        %3624 = vdwg.mxu0
        %3625 = vmatpush.msra.mxu0 %v3564
        %3626 = vmatpush.msra.mxu0 %v3562
        %3627 = vmatpush.msra.mxu0 %v3560
        %3628 = vmatpush.msra.mxu0 %v3558
        %3629 = vmatpush.msra.mxu0 %v3556
        %3630 = vmatpush.msra.mxu0 %v3554
        %3631 = vmatpush.msra.mxu0 %v3552
        %3632 = vmatpush.msra.mxu0 %v3550
        %3633 = vmatpush.msra.mxu0 %v3548
        %3634 = vmatpush.msra.mxu0 %v3546
        %3635 = vmatpush.msra.mxu0 %v3544
        %3636 = vmatpush.msra.mxu0 %v3542
        %3637 = vmatpush.msra.mxu0 %v3540
        %3638 = vmatpush.msra.mxu0 %v3538
        %3639 = vmatpush.msra.mxu0 %v3536
        %3640 = vmatpush.msra.mxu0 %v3534
        %3641 = vmatmul.f32.gmra.mxu0 %v3498
        %v3642 = vpop.f32.mrf.mxu0
        %v3643 = vadd.f32 %v3623, %v3642
        %3644 = vdwg.mxu0
        %3645 = vmatpush.msra.mxu0 %v3421
        %3646 = vmatpush.msra.mxu0 %v3419
        %3647 = vmatpush.msra.mxu0 %v3417
        %3648 = vmatpush.msra.mxu0 %v3415
        %3649 = vmatpush.msra.mxu0 %v3413
        %3650 = vmatpush.msra.mxu0 %v3411
        %3651 = vmatpush.msra.mxu0 %v3409
        %3652 = vmatpush.msra.mxu0 %v3407
        %3653 = vmatpush.msra.mxu0 %v3405
        %3654 = vmatpush.msra.mxu0 %v3403
        %3655 = vmatpush.msra.mxu0 %v3401
        %3656 = vmatpush.msra.mxu0 %v3399
        %3657 = vmatpush.msra.mxu0 %v3397
        %3658 = vmatpush.msra.mxu0 %v3395
        %3659 = vmatpush.msra.mxu0 %v3393
        %3660 = vmatpush.msra.mxu0 %v3391
        %3661 = vmatmul.f32.gmra.mxu0 %v3369
        %v3662 = vpop.f32.mrf.mxu0
        %v3663 = vadd.f32 %v3603, %v3662
        %3664 = vdwg.mxu0
        %3665 = vmatpush.msra.mxu0 %v3453
        %3666 = vmatpush.msra.mxu0 %v3451
        %3667 = vmatpush.msra.mxu0 %v3449
        %3668 = vmatpush.msra.mxu0 %v3447
        %3669 = vmatpush.msra.mxu0 %v3445
        %3670 = vmatpush.msra.mxu0 %v3443
        %3671 = vmatpush.msra.mxu0 %v3441
        %3672 = vmatpush.msra.mxu0 %v3439
        %3673 = vmatpush.msra.mxu0 %v3437
        %3674 = vmatpush.msra.mxu0 %v3435
        %3675 = vmatpush.msra.mxu0 %v3433
        %3676 = vmatpush.msra.mxu0 %v3431
        %3677 = vmatpush.msra.mxu0 %v3429
        %3678 = vmatpush.msra.mxu0 %v3427
        %3679 = vmatpush.msra.mxu0 %v3425
        %3680 = vmatpush.msra.mxu0 %v3423
        %3681 = vmatmul.f32.gmra.mxu0 %v3389
        %v3682 = vpop.f32.mrf.mxu0
        %v3683 = vadd.f32 %v3663, %v3682
        %3684 = vdwg.mxu0
        %3685 = vmatpush.msra.mxu0 %v3422
        %3686 = vmatpush.msra.mxu0 %v3420
        %3687 = vmatpush.msra.mxu0 %v3418
        %3688 = vmatpush.msra.mxu0 %v3416
        %3689 = vmatpush.msra.mxu0 %v3414
        %3690 = vmatpush.msra.mxu0 %v3412
        %3691 = vmatpush.msra.mxu0 %v3410
        %3692 = vmatpush.msra.mxu0 %v3408
        %3693 = vmatpush.msra.mxu0 %v3406
        %3694 = vmatpush.msra.mxu0 %v3404
        %3695 = vmatpush.msra.mxu0 %v3402
        %3696 = vmatpush.msra.mxu0 %v3400
        %3697 = vmatpush.msra.mxu0 %v3398
        %3698 = vmatpush.msra.mxu0 %v3396
        %3699 = vmatpush.msra.mxu0 %v3394
        %3700 = vmatpush.msra.mxu0 %v3392
        %3701 = vmatmul.f32.gmra.mxu0 %v3369
        %v3702 = vpop.f32.mrf.mxu0
        %v3703 = vadd.f32 %v3643, %v3702
        %3704 = vdwg.mxu0
        %3705 = vmatpush.msra.mxu0 %v3454
        %3706 = vmatpush.msra.mxu0 %v3452
        %3707 = vmatpush.msra.mxu0 %v3450
        %3708 = vmatpush.msra.mxu0 %v3448
        %3709 = vmatpush.msra.mxu0 %v3446
        %3710 = vmatpush.msra.mxu0 %v3444
        %3711 = vmatpush.msra.mxu0 %v3442
        %3712 = vmatpush.msra.mxu0 %v3440
        %3713 = vmatpush.msra.mxu0 %v3438
        %3714 = vmatpush.msra.mxu0 %v3436
        %3715 = vmatpush.msra.mxu0 %v3434
        %3716 = vmatpush.msra.mxu0 %v3432
        %3717 = vmatpush.msra.mxu0 %v3430
        %3718 = vmatpush.msra.mxu0 %v3428
        %3719 = vmatpush.msra.mxu0 %v3426
        %3720 = vmatpush.msra.mxu0 %v3424
        %3721 = vmatmul.f32.gmra.mxu0 %v3389
        %v3722 = vpop.f32.mrf.mxu0
        %v3723 = vadd.f32 %v3703, %v3722
        %3724 = vdwg.mxu0
        %s3725 = scalar_lea.vmem [#allocation17], 16
        %v3726 = vld [vmem:[%s3725] sm:$0xff]
        %v3728 = vsel %vm3347, %v3726, 0
        %3730 = vmatpush.msra.mxu0 0.0
        %3731 = vmatpush.msra.mxu0 0.0
        %3732 = vmatpush.msra.mxu0 0.0
        %3733 = vmatpush.msra.mxu0 0.0
        %3734 = vmatpush.msra.mxu0 0.0
        %3735 = vmatpush.msra.mxu0 0.0
        %3736 = vmatpush.msra.mxu0 0.0
        %3737 = vmatpush.msra.mxu0 0.0
        %3738 = vmatpush.msra.mxu0 0.0
        %3739 = vmatpush.msra.mxu0 0.0
        %3740 = vmatpush.msra.mxu0 0.0
        %3741 = vmatpush.msra.mxu0 0.0
        %3742 = vmatpush.msra.mxu0 0.0
        %3743 = vmatpush.msra.mxu0 0.0
        %3744 = vmatpush.msra.mxu0 %v3344
        %3745 = vmatpush.msra.mxu0 %v3342
        %3746 = vmatmul.f32.gmra.mxu0 %v3728
        %v3747 = vpop.f32.mrf.mxu0
        %v3748 = vadd.f32 0.0, %v3747
        %3749 = vdwg.mxu0
        %3750 = vmatpush.msra.mxu0 0.0
        %3751 = vmatpush.msra.mxu0 0.0
        %3752 = vmatpush.msra.mxu0 0.0
        %3753 = vmatpush.msra.mxu0 0.0
        %3754 = vmatpush.msra.mxu0 0.0
        %3755 = vmatpush.msra.mxu0 0.0
        %3756 = vmatpush.msra.mxu0 0.0
        %3757 = vmatpush.msra.mxu0 0.0
        %3758 = vmatpush.msra.mxu0 0.0
        %3759 = vmatpush.msra.mxu0 0.0
        %3760 = vmatpush.msra.mxu0 0.0
        %3761 = vmatpush.msra.mxu0 0.0
        %3762 = vmatpush.msra.mxu0 0.0
        %3763 = vmatpush.msra.mxu0 0.0
        %3764 = vmatpush.msra.mxu0 %v3345
        %3765 = vmatpush.msra.mxu0 %v3343
        %3766 = vmatmul.f32.gmra.mxu0 %v3728
        %v3767 = vpop.f32.mrf.mxu0
        %v3768 = vadd.f32 0.0, %v3767
        %3769 = vdwg.mxu0
        %s3770 = scalar_lea.vmem %s11, 1024
        %v3771 = vld [vmem:[%s3770] sm:$0xff]
        %v3772 = vld [vmem:[%s3770 + $0x8] sm:$0xff]
        %v3773 = vld [vmem:[%s3770 + $0x10] sm:$0xff]
        %v3774 = vld [vmem:[%s3770 + $0x18] sm:$0xff]
        %v3775 = vld [vmem:[%s3770 + $0x20] sm:$0xff]
        %v3776 = vld [vmem:[%s3770 + $0x28] sm:$0xff]
        %v3777 = vld [vmem:[%s3770 + $0x30] sm:$0xff]
        %v3778 = vld [vmem:[%s3770 + $0x38] sm:$0xff]
        %v3779 = vld [vmem:[%s3770 + $0x40] sm:$0xff]
        %v3780 = vld [vmem:[%s3770 + $0x48] sm:$0xff]
        %v3781 = vld [vmem:[%s3770 + $0x50] sm:$0xff]
        %v3782 = vld [vmem:[%s3770 + $0x58] sm:$0xff]
        %v3783 = vld [vmem:[%s3770 + $0x60] sm:$0xff]
        %v3784 = vld [vmem:[%s3770 + $0x68] sm:$0xff]
        %v3785 = vld [vmem:[%s3770 + $0x70] sm:$0xff]
        %v3786 = vld [vmem:[%s3770 + $0x78] sm:$0xff]
        %v3787 = vld [vmem:[%s3770 + $0x80] sm:$0xff]
        %v3788 = vld [vmem:[%s3770 + $0x88] sm:$0xff]
        %v3789 = vld [vmem:[%s3770 + $0x90] sm:$0xff]
        %v3790 = vld [vmem:[%s3770 + $0x98] sm:$0xff]
        %v3791 = vld [vmem:[%s3770 + $0xa0] sm:$0xff]
        %v3792 = vld [vmem:[%s3770 + $0xa8] sm:$0xff]
        %v3793 = vld [vmem:[%s3770 + $0xb0] sm:$0xff]
        %v3794 = vld [vmem:[%s3770 + $0xb8] sm:$0xff]
        %v3795 = vld [vmem:[%s3770 + $0xc0] sm:$0xff]
        %v3796 = vld [vmem:[%s3770 + $0xc8] sm:$0xff]
        %v3797 = vld [vmem:[%s3770 + $0xd0] sm:$0xff]
        %v3798 = vld [vmem:[%s3770 + $0xd8] sm:$0xff]
        %v3799 = vld [vmem:[%s3770 + $0xe0] sm:$0xff]
        %v3800 = vld [vmem:[%s3770 + $0xe8] sm:$0xff]
        %v3801 = vld [vmem:[%s3770 + $0xf0] sm:$0xff]
        %v3802 = vld [vmem:[%s3770 + $0xf8] sm:$0xff]
        %v3803 = vld [vmem:[%s3770 + $0x100] sm:$0xff]
        %v3804 = vld [vmem:[%s3770 + $0x108] sm:$0xff]
        %v3805 = vld [vmem:[%s3770 + $0x110] sm:$0xff]
        %v3806 = vld [vmem:[%s3770 + $0x118] sm:$0xff]
        %v3807 = vld [vmem:[%s3770 + $0x120] sm:$0xff]
        %v3808 = vld [vmem:[%s3770 + $0x128] sm:$0xff]
        %v3809 = vld [vmem:[%s3770 + $0x130] sm:$0xff]
        %v3810 = vld [vmem:[%s3770 + $0x138] sm:$0xff]
        %v3811 = vld [vmem:[%s3770 + $0x140] sm:$0xff]
        %v3812 = vld [vmem:[%s3770 + $0x148] sm:$0xff]
        %v3813 = vld [vmem:[%s3770 + $0x150] sm:$0xff]
        %v3814 = vld [vmem:[%s3770 + $0x158] sm:$0xff]
        %v3815 = vld [vmem:[%s3770 + $0x160] sm:$0xff]
        %v3816 = vld [vmem:[%s3770 + $0x168] sm:$0xff]
        %v3817 = vld [vmem:[%s3770 + $0x170] sm:$0xff]
        %v3818 = vld [vmem:[%s3770 + $0x178] sm:$0xff]
        %v3819 = vld [vmem:[%s3770 + $0x180] sm:$0xff]
        %v3820 = vld [vmem:[%s3770 + $0x188] sm:$0xff]
        %v3821 = vld [vmem:[%s3770 + $0x190] sm:$0xff]
        %v3822 = vld [vmem:[%s3770 + $0x198] sm:$0xff]
        %v3823 = vld [vmem:[%s3770 + $0x1a0] sm:$0xff]
        %v3824 = vld [vmem:[%s3770 + $0x1a8] sm:$0xff]
        %v3825 = vld [vmem:[%s3770 + $0x1b0] sm:$0xff]
        %v3826 = vld [vmem:[%s3770 + $0x1b8] sm:$0xff]
        %v3827 = vld [vmem:[%s3770 + $0x1c0] sm:$0xff]
        %v3828 = vld [vmem:[%s3770 + $0x1c8] sm:$0xff]
        %v3829 = vld [vmem:[%s3770 + $0x1d0] sm:$0xff]
        %v3830 = vld [vmem:[%s3770 + $0x1d8] sm:$0xff]
        %v3831 = vld [vmem:[%s3770 + $0x1e0] sm:$0xff]
        %v3832 = vld [vmem:[%s3770 + $0x1e8] sm:$0xff]
        %v3833 = vld [vmem:[%s3770 + $0x1f0] sm:$0xff]
        %v3834 = vld [vmem:[%s3770 + $0x1f8] sm:$0xff]
        %3835 = vmatpush.msra.mxu0 %v3801
        %3836 = vmatpush.msra.mxu0 %v3799
        %3837 = vmatpush.msra.mxu0 %v3797
        %3838 = vmatpush.msra.mxu0 %v3795
        %3839 = vmatpush.msra.mxu0 %v3793
        %3840 = vmatpush.msra.mxu0 %v3791
        %3841 = vmatpush.msra.mxu0 %v3789
        %3842 = vmatpush.msra.mxu0 %v3787
        %3843 = vmatpush.msra.mxu0 %v3785
        %3844 = vmatpush.msra.mxu0 %v3783
        %3845 = vmatpush.msra.mxu0 %v3781
        %3846 = vmatpush.msra.mxu0 %v3779
        %3847 = vmatpush.msra.mxu0 %v3777
        %3848 = vmatpush.msra.mxu0 %v3775
        %3849 = vmatpush.msra.mxu0 %v3773
        %3850 = vmatpush.msra.mxu0 %v3771
        %3851 = vmatmul.f32.gmra.mxu0 %v3748
        %v3852 = vpop.f32.mrf.mxu0
        %v3853 = vadd.f32 0.0, %v3852
        %3854 = vdwg.mxu0
        %3855 = vmatpush.msra.mxu0 %v3833
        %3856 = vmatpush.msra.mxu0 %v3831
        %3857 = vmatpush.msra.mxu0 %v3829
        %3858 = vmatpush.msra.mxu0 %v3827
        %3859 = vmatpush.msra.mxu0 %v3825
        %3860 = vmatpush.msra.mxu0 %v3823
        %3861 = vmatpush.msra.mxu0 %v3821
        %3862 = vmatpush.msra.mxu0 %v3819
        %3863 = vmatpush.msra.mxu0 %v3817
        %3864 = vmatpush.msra.mxu0 %v3815
        %3865 = vmatpush.msra.mxu0 %v3813
        %3866 = vmatpush.msra.mxu0 %v3811
        %3867 = vmatpush.msra.mxu0 %v3809
        %3868 = vmatpush.msra.mxu0 %v3807
        %3869 = vmatpush.msra.mxu0 %v3805
        %3870 = vmatpush.msra.mxu0 %v3803
        %3871 = vmatmul.f32.gmra.mxu0 %v3768
        %v3872 = vpop.f32.mrf.mxu0
        %v3873 = vadd.f32 %v3853, %v3872
        %3874 = vdwg.mxu0
        %3875 = vmatpush.msra.mxu0 %v3802
        %3876 = vmatpush.msra.mxu0 %v3800
        %3877 = vmatpush.msra.mxu0 %v3798
        %3878 = vmatpush.msra.mxu0 %v3796
        %3879 = vmatpush.msra.mxu0 %v3794
        %3880 = vmatpush.msra.mxu0 %v3792
        %3881 = vmatpush.msra.mxu0 %v3790
        %3882 = vmatpush.msra.mxu0 %v3788
        %3883 = vmatpush.msra.mxu0 %v3786
        %3884 = vmatpush.msra.mxu0 %v3784
        %3885 = vmatpush.msra.mxu0 %v3782
        %3886 = vmatpush.msra.mxu0 %v3780
        %3887 = vmatpush.msra.mxu0 %v3778
        %3888 = vmatpush.msra.mxu0 %v3776
        %3889 = vmatpush.msra.mxu0 %v3774
        %3890 = vmatpush.msra.mxu0 %v3772
        %3891 = vmatmul.f32.gmra.mxu0 %v3748
        %v3892 = vpop.f32.mrf.mxu0
        %v3893 = vadd.f32 0.0, %v3892
        %3894 = vdwg.mxu0
        %3895 = vmatpush.msra.mxu0 %v3834
        %3896 = vmatpush.msra.mxu0 %v3832
        %3897 = vmatpush.msra.mxu0 %v3830
        %3898 = vmatpush.msra.mxu0 %v3828
        %3899 = vmatpush.msra.mxu0 %v3826
        %3900 = vmatpush.msra.mxu0 %v3824
        %3901 = vmatpush.msra.mxu0 %v3822
        %3902 = vmatpush.msra.mxu0 %v3820
        %3903 = vmatpush.msra.mxu0 %v3818
        %3904 = vmatpush.msra.mxu0 %v3816
        %3905 = vmatpush.msra.mxu0 %v3814
        %3906 = vmatpush.msra.mxu0 %v3812
        %3907 = vmatpush.msra.mxu0 %v3810
        %3908 = vmatpush.msra.mxu0 %v3808
        %3909 = vmatpush.msra.mxu0 %v3806
        %3910 = vmatpush.msra.mxu0 %v3804
        %3911 = vmatmul.f32.gmra.mxu0 %v3768
        %v3912 = vpop.f32.mrf.mxu0
        %v3913 = vadd.f32 %v3893, %v3912
        %3914 = vdwg.mxu0
        %v3915 = vadd.f32 %v3683, %v3873
        %v3916 = vadd.f32 %v3723, %v3913
        %v3917 = vld [vmem:[#allocation19] sm:$0x3]
        %v3919 = vperm.slane %v3917, 0
        %v3920 = vperm.slane %v3917, 1
        %v3923 = vadd.f32 %v3915, %v3919
        %v3924 = vadd.f32 %v3916, %v3920
        %v3925 = vmax.f32 %v3923, 0.0
        %v3926 = vmax.f32 %v3924, 0.0
        %v3927 = vld [vmem:[#allocation20] sm:$0xf]
        %vm3928 = vcmask 64512
        %v3930 = vsel %vm3928, %v3927, 0
        %3932 = vmatpush.msra.mxu0 0.0
        %3933 = vmatpush.msra.mxu0 0.0
        %3934 = vmatpush.msra.mxu0 0.0
        %3935 = vmatpush.msra.mxu0 0.0
        %3936 = vmatpush.msra.mxu0 0.0
        %3937 = vmatpush.msra.mxu0 0.0
        %3938 = vmatpush.msra.mxu0 0.0
        %3939 = vmatpush.msra.mxu0 0.0
        %3940 = vmatpush.msra.mxu0 0.0
        %3941 = vmatpush.msra.mxu0 0.0
        %3942 = vmatpush.msra.mxu0 0.0
        %3943 = vmatpush.msra.mxu0 0.0
        %3944 = vmatpush.msra.mxu0 0.0
        %3945 = vmatpush.msra.mxu0 0.0
        %3946 = vmatpush.msra.mxu0 0.0
        %3947 = vmatpush.msra.mxu0 %v3925
        %3948 = vmatmul.f32.gmra.mxu0 %v3930
        %v3949 = vpop.f32.mrf.mxu0
        %v3950 = vadd.f32 0.0, %v3949
        %3951 = vdwg.mxu0
        %3952 = vmatpush.msra.mxu0 0.0
        %3953 = vmatpush.msra.mxu0 0.0
        %3954 = vmatpush.msra.mxu0 0.0
        %3955 = vmatpush.msra.mxu0 0.0
        %3956 = vmatpush.msra.mxu0 0.0
        %3957 = vmatpush.msra.mxu0 0.0
        %3958 = vmatpush.msra.mxu0 0.0
        %3959 = vmatpush.msra.mxu0 0.0
        %3960 = vmatpush.msra.mxu0 0.0
        %3961 = vmatpush.msra.mxu0 0.0
        %3962 = vmatpush.msra.mxu0 0.0
        %3963 = vmatpush.msra.mxu0 0.0
        %3964 = vmatpush.msra.mxu0 0.0
        %3965 = vmatpush.msra.mxu0 0.0
        %3966 = vmatpush.msra.mxu0 0.0
        %3967 = vmatpush.msra.mxu0 %v3926
        %3968 = vmatmul.f32.gmra.mxu0 %v3930
        %v3969 = vpop.f32.mrf.mxu0
        %v3970 = vadd.f32 0.0, %v3969
        %3971 = vdwg.mxu0
        %v3972 = vld [vmem:[%s14] sm:$0xff]
        %v3973 = vld [vmem:[%s14 + $0x8] sm:$0xff]
        %v3974 = vld [vmem:[%s14 + $0x10] sm:$0xff]
        %v3975 = vld [vmem:[%s14 + $0x18] sm:$0xff]
        %v3976 = vld [vmem:[%s14 + $0x20] sm:$0xff]
        %v3977 = vld [vmem:[%s14 + $0x28] sm:$0xff]
        %v3978 = vld [vmem:[%s14 + $0x30] sm:$0xff]
        %v3979 = vld [vmem:[%s14 + $0x38] sm:$0xff]
        %v3980 = vld [vmem:[%s14 + $0x40] sm:$0xff]
        %v3981 = vld [vmem:[%s14 + $0x48] sm:$0xff]
        %v3982 = vld [vmem:[%s14 + $0x50] sm:$0xff]
        %v3983 = vld [vmem:[%s14 + $0x58] sm:$0xff]
        %v3984 = vld [vmem:[%s14 + $0x60] sm:$0xff]
        %v3985 = vld [vmem:[%s14 + $0x68] sm:$0xff]
        %v3986 = vld [vmem:[%s14 + $0x70] sm:$0xff]
        %v3987 = vld [vmem:[%s14 + $0x78] sm:$0xff]
        %v3988 = vld [vmem:[%s14 + $0x80] sm:$0xff]
        %v3989 = vld [vmem:[%s14 + $0x88] sm:$0xff]
        %v3990 = vld [vmem:[%s14 + $0x90] sm:$0xff]
        %v3991 = vld [vmem:[%s14 + $0x98] sm:$0xff]
        %v3992 = vld [vmem:[%s14 + $0xa0] sm:$0xff]
        %v3993 = vld [vmem:[%s14 + $0xa8] sm:$0xff]
        %v3994 = vld [vmem:[%s14 + $0xb0] sm:$0xff]
        %v3995 = vld [vmem:[%s14 + $0xb8] sm:$0xff]
        %v3996 = vld [vmem:[%s14 + $0xc0] sm:$0xff]
        %v3997 = vld [vmem:[%s14 + $0xc8] sm:$0xff]
        %v3998 = vld [vmem:[%s14 + $0xd0] sm:$0xff]
        %v3999 = vld [vmem:[%s14 + $0xd8] sm:$0xff]
        %v4000 = vld [vmem:[%s14 + $0xe0] sm:$0xff]
        %v4001 = vld [vmem:[%s14 + $0xe8] sm:$0xff]
        %v4002 = vld [vmem:[%s14 + $0xf0] sm:$0xff]
        %v4003 = vld [vmem:[%s14 + $0xf8] sm:$0xff]
        %v4004 = vld [vmem:[%s14 + $0x100] sm:$0xff]
        %v4005 = vld [vmem:[%s14 + $0x108] sm:$0xff]
        %v4006 = vld [vmem:[%s14 + $0x110] sm:$0xff]
        %v4007 = vld [vmem:[%s14 + $0x118] sm:$0xff]
        %v4008 = vld [vmem:[%s14 + $0x120] sm:$0xff]
        %v4009 = vld [vmem:[%s14 + $0x128] sm:$0xff]
        %v4010 = vld [vmem:[%s14 + $0x130] sm:$0xff]
        %v4011 = vld [vmem:[%s14 + $0x138] sm:$0xff]
        %v4012 = vld [vmem:[%s14 + $0x140] sm:$0xff]
        %v4013 = vld [vmem:[%s14 + $0x148] sm:$0xff]
        %v4014 = vld [vmem:[%s14 + $0x150] sm:$0xff]
        %v4015 = vld [vmem:[%s14 + $0x158] sm:$0xff]
        %v4016 = vld [vmem:[%s14 + $0x160] sm:$0xff]
        %v4017 = vld [vmem:[%s14 + $0x168] sm:$0xff]
        %v4018 = vld [vmem:[%s14 + $0x170] sm:$0xff]
        %v4019 = vld [vmem:[%s14 + $0x178] sm:$0xff]
        %v4020 = vld [vmem:[%s14 + $0x180] sm:$0xff]
        %v4021 = vld [vmem:[%s14 + $0x188] sm:$0xff]
        %v4022 = vld [vmem:[%s14 + $0x190] sm:$0xff]
        %v4023 = vld [vmem:[%s14 + $0x198] sm:$0xff]
        %v4024 = vld [vmem:[%s14 + $0x1a0] sm:$0xff]
        %v4025 = vld [vmem:[%s14 + $0x1a8] sm:$0xff]
        %v4026 = vld [vmem:[%s14 + $0x1b0] sm:$0xff]
        %v4027 = vld [vmem:[%s14 + $0x1b8] sm:$0xff]
        %v4028 = vld [vmem:[%s14 + $0x1c0] sm:$0xff]
        %v4029 = vld [vmem:[%s14 + $0x1c8] sm:$0xff]
        %v4030 = vld [vmem:[%s14 + $0x1d0] sm:$0xff]
        %v4031 = vld [vmem:[%s14 + $0x1d8] sm:$0xff]
        %v4032 = vld [vmem:[%s14 + $0x1e0] sm:$0xff]
        %v4033 = vld [vmem:[%s14 + $0x1e8] sm:$0xff]
        %v4034 = vld [vmem:[%s14 + $0x1f0] sm:$0xff]
        %v4035 = vld [vmem:[%s14 + $0x1f8] sm:$0xff]
        %s4036 = scalar_lea.vmem [#allocation20], 4
        %v4037 = vld [vmem:[%s4036] sm:$0xf]
        %v4039 = vsel %vm3928, %v4037, 0
        %4041 = vmatpush.msra.mxu0 0.0
        %4042 = vmatpush.msra.mxu0 0.0
        %4043 = vmatpush.msra.mxu0 0.0
        %4044 = vmatpush.msra.mxu0 0.0
        %4045 = vmatpush.msra.mxu0 0.0
        %4046 = vmatpush.msra.mxu0 0.0
        %4047 = vmatpush.msra.mxu0 0.0
        %4048 = vmatpush.msra.mxu0 0.0
        %4049 = vmatpush.msra.mxu0 0.0
        %4050 = vmatpush.msra.mxu0 0.0
        %4051 = vmatpush.msra.mxu0 0.0
        %4052 = vmatpush.msra.mxu0 0.0
        %4053 = vmatpush.msra.mxu0 0.0
        %4054 = vmatpush.msra.mxu0 0.0
        %4055 = vmatpush.msra.mxu0 0.0
        %4056 = vmatpush.msra.mxu0 %v3925
        %4057 = vmatmul.f32.gmra.mxu0 %v4039
        %v4058 = vpop.f32.mrf.mxu0
        %v4059 = vadd.f32 0.0, %v4058
        %4060 = vdwg.mxu0
        %4061 = vmatpush.msra.mxu0 0.0
        %4062 = vmatpush.msra.mxu0 0.0
        %4063 = vmatpush.msra.mxu0 0.0
        %4064 = vmatpush.msra.mxu0 0.0
        %4065 = vmatpush.msra.mxu0 0.0
        %4066 = vmatpush.msra.mxu0 0.0
        %4067 = vmatpush.msra.mxu0 0.0
        %4068 = vmatpush.msra.mxu0 0.0
        %4069 = vmatpush.msra.mxu0 0.0
        %4070 = vmatpush.msra.mxu0 0.0
        %4071 = vmatpush.msra.mxu0 0.0
        %4072 = vmatpush.msra.mxu0 0.0
        %4073 = vmatpush.msra.mxu0 0.0
        %4074 = vmatpush.msra.mxu0 0.0
        %4075 = vmatpush.msra.mxu0 0.0
        %4076 = vmatpush.msra.mxu0 %v3926
        %4077 = vmatmul.f32.gmra.mxu0 %v4039
        %v4078 = vpop.f32.mrf.mxu0
        %v4079 = vadd.f32 0.0, %v4078
        %4080 = vdwg.mxu0
        %s4081 = scalar_lea.vmem %s14, 512
        %v4082 = vld [vmem:[%s4081] sm:$0xff]
        %v4083 = vld [vmem:[%s4081 + $0x8] sm:$0xff]
        %v4084 = vld [vmem:[%s4081 + $0x10] sm:$0xff]
        %v4085 = vld [vmem:[%s4081 + $0x18] sm:$0xff]
        %v4086 = vld [vmem:[%s4081 + $0x20] sm:$0xff]
        %v4087 = vld [vmem:[%s4081 + $0x28] sm:$0xff]
        %v4088 = vld [vmem:[%s4081 + $0x30] sm:$0xff]
        %v4089 = vld [vmem:[%s4081 + $0x38] sm:$0xff]
        %v4090 = vld [vmem:[%s4081 + $0x40] sm:$0xff]
        %v4091 = vld [vmem:[%s4081 + $0x48] sm:$0xff]
        %v4092 = vld [vmem:[%s4081 + $0x50] sm:$0xff]
        %v4093 = vld [vmem:[%s4081 + $0x58] sm:$0xff]
        %v4094 = vld [vmem:[%s4081 + $0x60] sm:$0xff]
        %v4095 = vld [vmem:[%s4081 + $0x68] sm:$0xff]
        %v4096 = vld [vmem:[%s4081 + $0x70] sm:$0xff]
        %v4097 = vld [vmem:[%s4081 + $0x78] sm:$0xff]
        %v4098 = vld [vmem:[%s4081 + $0x80] sm:$0xff]
        %v4099 = vld [vmem:[%s4081 + $0x88] sm:$0xff]
        %v4100 = vld [vmem:[%s4081 + $0x90] sm:$0xff]
        %v4101 = vld [vmem:[%s4081 + $0x98] sm:$0xff]
        %v4102 = vld [vmem:[%s4081 + $0xa0] sm:$0xff]
        %v4103 = vld [vmem:[%s4081 + $0xa8] sm:$0xff]
        %v4104 = vld [vmem:[%s4081 + $0xb0] sm:$0xff]
        %v4105 = vld [vmem:[%s4081 + $0xb8] sm:$0xff]
        %v4106 = vld [vmem:[%s4081 + $0xc0] sm:$0xff]
        %v4107 = vld [vmem:[%s4081 + $0xc8] sm:$0xff]
        %v4108 = vld [vmem:[%s4081 + $0xd0] sm:$0xff]
        %v4109 = vld [vmem:[%s4081 + $0xd8] sm:$0xff]
        %v4110 = vld [vmem:[%s4081 + $0xe0] sm:$0xff]
        %v4111 = vld [vmem:[%s4081 + $0xe8] sm:$0xff]
        %v4112 = vld [vmem:[%s4081 + $0xf0] sm:$0xff]
        %v4113 = vld [vmem:[%s4081 + $0xf8] sm:$0xff]
        %v4114 = vld [vmem:[%s4081 + $0x100] sm:$0xff]
        %v4115 = vld [vmem:[%s4081 + $0x108] sm:$0xff]
        %v4116 = vld [vmem:[%s4081 + $0x110] sm:$0xff]
        %v4117 = vld [vmem:[%s4081 + $0x118] sm:$0xff]
        %v4118 = vld [vmem:[%s4081 + $0x120] sm:$0xff]
        %v4119 = vld [vmem:[%s4081 + $0x128] sm:$0xff]
        %v4120 = vld [vmem:[%s4081 + $0x130] sm:$0xff]
        %v4121 = vld [vmem:[%s4081 + $0x138] sm:$0xff]
        %v4122 = vld [vmem:[%s4081 + $0x140] sm:$0xff]
        %v4123 = vld [vmem:[%s4081 + $0x148] sm:$0xff]
        %v4124 = vld [vmem:[%s4081 + $0x150] sm:$0xff]
        %v4125 = vld [vmem:[%s4081 + $0x158] sm:$0xff]
        %v4126 = vld [vmem:[%s4081 + $0x160] sm:$0xff]
        %v4127 = vld [vmem:[%s4081 + $0x168] sm:$0xff]
        %v4128 = vld [vmem:[%s4081 + $0x170] sm:$0xff]
        %v4129 = vld [vmem:[%s4081 + $0x178] sm:$0xff]
        %v4130 = vld [vmem:[%s4081 + $0x180] sm:$0xff]
        %v4131 = vld [vmem:[%s4081 + $0x188] sm:$0xff]
        %v4132 = vld [vmem:[%s4081 + $0x190] sm:$0xff]
        %v4133 = vld [vmem:[%s4081 + $0x198] sm:$0xff]
        %v4134 = vld [vmem:[%s4081 + $0x1a0] sm:$0xff]
        %v4135 = vld [vmem:[%s4081 + $0x1a8] sm:$0xff]
        %v4136 = vld [vmem:[%s4081 + $0x1b0] sm:$0xff]
        %v4137 = vld [vmem:[%s4081 + $0x1b8] sm:$0xff]
        %v4138 = vld [vmem:[%s4081 + $0x1c0] sm:$0xff]
        %v4139 = vld [vmem:[%s4081 + $0x1c8] sm:$0xff]
        %v4140 = vld [vmem:[%s4081 + $0x1d0] sm:$0xff]
        %v4141 = vld [vmem:[%s4081 + $0x1d8] sm:$0xff]
        %v4142 = vld [vmem:[%s4081 + $0x1e0] sm:$0xff]
        %v4143 = vld [vmem:[%s4081 + $0x1e8] sm:$0xff]
        %v4144 = vld [vmem:[%s4081 + $0x1f0] sm:$0xff]
        %v4145 = vld [vmem:[%s4081 + $0x1f8] sm:$0xff]
        %4146 = vmatpush.msra.mxu0 %v4112
        %4147 = vmatpush.msra.mxu0 %v4110
        %4148 = vmatpush.msra.mxu0 %v4108
        %4149 = vmatpush.msra.mxu0 %v4106
        %4150 = vmatpush.msra.mxu0 %v4104
        %4151 = vmatpush.msra.mxu0 %v4102
        %4152 = vmatpush.msra.mxu0 %v4100
        %4153 = vmatpush.msra.mxu0 %v4098
        %4154 = vmatpush.msra.mxu0 %v4096
        %4155 = vmatpush.msra.mxu0 %v4094
        %4156 = vmatpush.msra.mxu0 %v4092
        %4157 = vmatpush.msra.mxu0 %v4090
        %4158 = vmatpush.msra.mxu0 %v4088
        %4159 = vmatpush.msra.mxu0 %v4086
        %4160 = vmatpush.msra.mxu0 %v4084
        %4161 = vmatpush.msra.mxu0 %v4082
        %4162 = vmatmul.f32.gmra.mxu0 %v4059
        %v4163 = vpop.f32.mrf.mxu0
        %v4164 = vadd.f32 0.0, %v4163
        %4165 = vdwg.mxu0
        %4166 = vmatpush.msra.mxu0 %v4144
        %4167 = vmatpush.msra.mxu0 %v4142
        %4168 = vmatpush.msra.mxu0 %v4140
        %4169 = vmatpush.msra.mxu0 %v4138
        %4170 = vmatpush.msra.mxu0 %v4136
        %4171 = vmatpush.msra.mxu0 %v4134
        %4172 = vmatpush.msra.mxu0 %v4132
        %4173 = vmatpush.msra.mxu0 %v4130
        %4174 = vmatpush.msra.mxu0 %v4128
        %4175 = vmatpush.msra.mxu0 %v4126
        %4176 = vmatpush.msra.mxu0 %v4124
        %4177 = vmatpush.msra.mxu0 %v4122
        %4178 = vmatpush.msra.mxu0 %v4120
        %4179 = vmatpush.msra.mxu0 %v4118
        %4180 = vmatpush.msra.mxu0 %v4116
        %4181 = vmatpush.msra.mxu0 %v4114
        %4182 = vmatmul.f32.gmra.mxu0 %v4079
        %v4183 = vpop.f32.mrf.mxu0
        %v4184 = vadd.f32 %v4164, %v4183
        %4185 = vdwg.mxu0
        %4186 = vmatpush.msra.mxu0 %v4113
        %4187 = vmatpush.msra.mxu0 %v4111
        %4188 = vmatpush.msra.mxu0 %v4109
        %4189 = vmatpush.msra.mxu0 %v4107
        %4190 = vmatpush.msra.mxu0 %v4105
        %4191 = vmatpush.msra.mxu0 %v4103
        %4192 = vmatpush.msra.mxu0 %v4101
        %4193 = vmatpush.msra.mxu0 %v4099
        %4194 = vmatpush.msra.mxu0 %v4097
        %4195 = vmatpush.msra.mxu0 %v4095
        %4196 = vmatpush.msra.mxu0 %v4093
        %4197 = vmatpush.msra.mxu0 %v4091
        %4198 = vmatpush.msra.mxu0 %v4089
        %4199 = vmatpush.msra.mxu0 %v4087
        %4200 = vmatpush.msra.mxu0 %v4085
        %4201 = vmatpush.msra.mxu0 %v4083
        %4202 = vmatmul.f32.gmra.mxu0 %v4059
        %v4203 = vpop.f32.mrf.mxu0
        %v4204 = vadd.f32 0.0, %v4203
        %4205 = vdwg.mxu0
        %4206 = vmatpush.msra.mxu0 %v4145
        %4207 = vmatpush.msra.mxu0 %v4143
        %4208 = vmatpush.msra.mxu0 %v4141
        %4209 = vmatpush.msra.mxu0 %v4139
        %4210 = vmatpush.msra.mxu0 %v4137
        %4211 = vmatpush.msra.mxu0 %v4135
        %4212 = vmatpush.msra.mxu0 %v4133
        %4213 = vmatpush.msra.mxu0 %v4131
        %4214 = vmatpush.msra.mxu0 %v4129
        %4215 = vmatpush.msra.mxu0 %v4127
        %4216 = vmatpush.msra.mxu0 %v4125
        %4217 = vmatpush.msra.mxu0 %v4123
        %4218 = vmatpush.msra.mxu0 %v4121
        %4219 = vmatpush.msra.mxu0 %v4119
        %4220 = vmatpush.msra.mxu0 %v4117
        %4221 = vmatpush.msra.mxu0 %v4115
        %4222 = vmatmul.f32.gmra.mxu0 %v4079
        %v4223 = vpop.f32.mrf.mxu0
        %v4224 = vadd.f32 %v4204, %v4223
        %4225 = vdwg.mxu0
        %4226 = vmatpush.msra.mxu0 %v4002
        %4227 = vmatpush.msra.mxu0 %v4000
        %4228 = vmatpush.msra.mxu0 %v3998
        %4229 = vmatpush.msra.mxu0 %v3996
        %4230 = vmatpush.msra.mxu0 %v3994
        %4231 = vmatpush.msra.mxu0 %v3992
        %4232 = vmatpush.msra.mxu0 %v3990
        %4233 = vmatpush.msra.mxu0 %v3988
        %4234 = vmatpush.msra.mxu0 %v3986
        %4235 = vmatpush.msra.mxu0 %v3984
        %4236 = vmatpush.msra.mxu0 %v3982
        %4237 = vmatpush.msra.mxu0 %v3980
        %4238 = vmatpush.msra.mxu0 %v3978
        %4239 = vmatpush.msra.mxu0 %v3976
        %4240 = vmatpush.msra.mxu0 %v3974
        %4241 = vmatpush.msra.mxu0 %v3972
        %4242 = vmatmul.f32.gmra.mxu0 %v3950
        %v4243 = vpop.f32.mrf.mxu0
        %v4244 = vadd.f32 %v4184, %v4243
        %4245 = vdwg.mxu0
        %4246 = vmatpush.msra.mxu0 %v4034
        %4247 = vmatpush.msra.mxu0 %v4032
        %4248 = vmatpush.msra.mxu0 %v4030
        %4249 = vmatpush.msra.mxu0 %v4028
        %4250 = vmatpush.msra.mxu0 %v4026
        %4251 = vmatpush.msra.mxu0 %v4024
        %4252 = vmatpush.msra.mxu0 %v4022
        %4253 = vmatpush.msra.mxu0 %v4020
        %4254 = vmatpush.msra.mxu0 %v4018
        %4255 = vmatpush.msra.mxu0 %v4016
        %4256 = vmatpush.msra.mxu0 %v4014
        %4257 = vmatpush.msra.mxu0 %v4012
        %4258 = vmatpush.msra.mxu0 %v4010
        %4259 = vmatpush.msra.mxu0 %v4008
        %4260 = vmatpush.msra.mxu0 %v4006
        %4261 = vmatpush.msra.mxu0 %v4004
        %4262 = vmatmul.f32.gmra.mxu0 %v3970
        %v4263 = vpop.f32.mrf.mxu0
        %v4264 = vadd.f32 %v4244, %v4263
        %4265 = vdwg.mxu0
        %4266 = vmatpush.msra.mxu0 %v4003
        %4267 = vmatpush.msra.mxu0 %v4001
        %4268 = vmatpush.msra.mxu0 %v3999
        %4269 = vmatpush.msra.mxu0 %v3997
        %4270 = vmatpush.msra.mxu0 %v3995
        %4271 = vmatpush.msra.mxu0 %v3993
        %4272 = vmatpush.msra.mxu0 %v3991
        %4273 = vmatpush.msra.mxu0 %v3989
        %4274 = vmatpush.msra.mxu0 %v3987
        %4275 = vmatpush.msra.mxu0 %v3985
        %4276 = vmatpush.msra.mxu0 %v3983
        %4277 = vmatpush.msra.mxu0 %v3981
        %4278 = vmatpush.msra.mxu0 %v3979
        %4279 = vmatpush.msra.mxu0 %v3977
        %4280 = vmatpush.msra.mxu0 %v3975
        %4281 = vmatpush.msra.mxu0 %v3973
        %4282 = vmatmul.f32.gmra.mxu0 %v3950
        %v4283 = vpop.f32.mrf.mxu0
        %v4284 = vadd.f32 %v4224, %v4283
        %4285 = vdwg.mxu0
        %4286 = vmatpush.msra.mxu0 %v4035
        %4287 = vmatpush.msra.mxu0 %v4033
        %4288 = vmatpush.msra.mxu0 %v4031
        %4289 = vmatpush.msra.mxu0 %v4029
        %4290 = vmatpush.msra.mxu0 %v4027
        %4291 = vmatpush.msra.mxu0 %v4025
        %4292 = vmatpush.msra.mxu0 %v4023
        %4293 = vmatpush.msra.mxu0 %v4021
        %4294 = vmatpush.msra.mxu0 %v4019
        %4295 = vmatpush.msra.mxu0 %v4017
        %4296 = vmatpush.msra.mxu0 %v4015
        %4297 = vmatpush.msra.mxu0 %v4013
        %4298 = vmatpush.msra.mxu0 %v4011
        %4299 = vmatpush.msra.mxu0 %v4009
        %4300 = vmatpush.msra.mxu0 %v4007
        %4301 = vmatpush.msra.mxu0 %v4005
        %4302 = vmatmul.f32.gmra.mxu0 %v3970
        %v4303 = vpop.f32.mrf.mxu0
        %v4304 = vadd.f32 %v4284, %v4303
        %4305 = vdwg.mxu0
        %s4306 = scalar_lea.vmem [#allocation20], 8
        %v4307 = vld [vmem:[%s4306] sm:$0xf]
        %v4309 = vsel %vm3928, %v4307, 0
        %4311 = vmatpush.msra.mxu0 0.0
        %4312 = vmatpush.msra.mxu0 0.0
        %4313 = vmatpush.msra.mxu0 0.0
        %4314 = vmatpush.msra.mxu0 0.0
        %4315 = vmatpush.msra.mxu0 0.0
        %4316 = vmatpush.msra.mxu0 0.0
        %4317 = vmatpush.msra.mxu0 0.0
        %4318 = vmatpush.msra.mxu0 0.0
        %4319 = vmatpush.msra.mxu0 0.0
        %4320 = vmatpush.msra.mxu0 0.0
        %4321 = vmatpush.msra.mxu0 0.0
        %4322 = vmatpush.msra.mxu0 0.0
        %4323 = vmatpush.msra.mxu0 0.0
        %4324 = vmatpush.msra.mxu0 0.0
        %4325 = vmatpush.msra.mxu0 0.0
        %4326 = vmatpush.msra.mxu0 %v3925
        %4327 = vmatmul.f32.gmra.mxu0 %v4309
        %v4328 = vpop.f32.mrf.mxu0
        %v4329 = vadd.f32 0.0, %v4328
        %4330 = vdwg.mxu0
        %4331 = vmatpush.msra.mxu0 0.0
        %4332 = vmatpush.msra.mxu0 0.0
        %4333 = vmatpush.msra.mxu0 0.0
        %4334 = vmatpush.msra.mxu0 0.0
        %4335 = vmatpush.msra.mxu0 0.0
        %4336 = vmatpush.msra.mxu0 0.0
        %4337 = vmatpush.msra.mxu0 0.0
        %4338 = vmatpush.msra.mxu0 0.0
        %4339 = vmatpush.msra.mxu0 0.0
        %4340 = vmatpush.msra.mxu0 0.0
        %4341 = vmatpush.msra.mxu0 0.0
        %4342 = vmatpush.msra.mxu0 0.0
        %4343 = vmatpush.msra.mxu0 0.0
        %4344 = vmatpush.msra.mxu0 0.0
        %4345 = vmatpush.msra.mxu0 0.0
        %4346 = vmatpush.msra.mxu0 %v3926
        %4347 = vmatmul.f32.gmra.mxu0 %v4309
        %v4348 = vpop.f32.mrf.mxu0
        %v4349 = vadd.f32 0.0, %v4348
        %4350 = vdwg.mxu0
        %s4351 = scalar_lea.vmem %s14, 1024
        %v4352 = vld [vmem:[%s4351] sm:$0xff]
        %v4353 = vld [vmem:[%s4351 + $0x8] sm:$0xff]
        %v4354 = vld [vmem:[%s4351 + $0x10] sm:$0xff]
        %v4355 = vld [vmem:[%s4351 + $0x18] sm:$0xff]
        %v4356 = vld [vmem:[%s4351 + $0x20] sm:$0xff]
        %v4357 = vld [vmem:[%s4351 + $0x28] sm:$0xff]
        %v4358 = vld [vmem:[%s4351 + $0x30] sm:$0xff]
        %v4359 = vld [vmem:[%s4351 + $0x38] sm:$0xff]
        %v4360 = vld [vmem:[%s4351 + $0x40] sm:$0xff]
        %v4361 = vld [vmem:[%s4351 + $0x48] sm:$0xff]
        %v4362 = vld [vmem:[%s4351 + $0x50] sm:$0xff]
        %v4363 = vld [vmem:[%s4351 + $0x58] sm:$0xff]
        %v4364 = vld [vmem:[%s4351 + $0x60] sm:$0xff]
        %v4365 = vld [vmem:[%s4351 + $0x68] sm:$0xff]
        %v4366 = vld [vmem:[%s4351 + $0x70] sm:$0xff]
        %v4367 = vld [vmem:[%s4351 + $0x78] sm:$0xff]
        %v4368 = vld [vmem:[%s4351 + $0x80] sm:$0xff]
        %v4369 = vld [vmem:[%s4351 + $0x88] sm:$0xff]
        %v4370 = vld [vmem:[%s4351 + $0x90] sm:$0xff]
        %v4371 = vld [vmem:[%s4351 + $0x98] sm:$0xff]
        %v4372 = vld [vmem:[%s4351 + $0xa0] sm:$0xff]
        %v4373 = vld [vmem:[%s4351 + $0xa8] sm:$0xff]
        %v4374 = vld [vmem:[%s4351 + $0xb0] sm:$0xff]
        %v4375 = vld [vmem:[%s4351 + $0xb8] sm:$0xff]
        %v4376 = vld [vmem:[%s4351 + $0xc0] sm:$0xff]
        %v4377 = vld [vmem:[%s4351 + $0xc8] sm:$0xff]
        %v4378 = vld [vmem:[%s4351 + $0xd0] sm:$0xff]
        %v4379 = vld [vmem:[%s4351 + $0xd8] sm:$0xff]
        %v4380 = vld [vmem:[%s4351 + $0xe0] sm:$0xff]
        %v4381 = vld [vmem:[%s4351 + $0xe8] sm:$0xff]
        %v4382 = vld [vmem:[%s4351 + $0xf0] sm:$0xff]
        %v4383 = vld [vmem:[%s4351 + $0xf8] sm:$0xff]
        %v4384 = vld [vmem:[%s4351 + $0x100] sm:$0xff]
        %v4385 = vld [vmem:[%s4351 + $0x108] sm:$0xff]
        %v4386 = vld [vmem:[%s4351 + $0x110] sm:$0xff]
        %v4387 = vld [vmem:[%s4351 + $0x118] sm:$0xff]
        %v4388 = vld [vmem:[%s4351 + $0x120] sm:$0xff]
        %v4389 = vld [vmem:[%s4351 + $0x128] sm:$0xff]
        %v4390 = vld [vmem:[%s4351 + $0x130] sm:$0xff]
        %v4391 = vld [vmem:[%s4351 + $0x138] sm:$0xff]
        %v4392 = vld [vmem:[%s4351 + $0x140] sm:$0xff]
        %v4393 = vld [vmem:[%s4351 + $0x148] sm:$0xff]
        %v4394 = vld [vmem:[%s4351 + $0x150] sm:$0xff]
        %v4395 = vld [vmem:[%s4351 + $0x158] sm:$0xff]
        %v4396 = vld [vmem:[%s4351 + $0x160] sm:$0xff]
        %v4397 = vld [vmem:[%s4351 + $0x168] sm:$0xff]
        %v4398 = vld [vmem:[%s4351 + $0x170] sm:$0xff]
        %v4399 = vld [vmem:[%s4351 + $0x178] sm:$0xff]
        %v4400 = vld [vmem:[%s4351 + $0x180] sm:$0xff]
        %v4401 = vld [vmem:[%s4351 + $0x188] sm:$0xff]
        %v4402 = vld [vmem:[%s4351 + $0x190] sm:$0xff]
        %v4403 = vld [vmem:[%s4351 + $0x198] sm:$0xff]
        %v4404 = vld [vmem:[%s4351 + $0x1a0] sm:$0xff]
        %v4405 = vld [vmem:[%s4351 + $0x1a8] sm:$0xff]
        %v4406 = vld [vmem:[%s4351 + $0x1b0] sm:$0xff]
        %v4407 = vld [vmem:[%s4351 + $0x1b8] sm:$0xff]
        %v4408 = vld [vmem:[%s4351 + $0x1c0] sm:$0xff]
        %v4409 = vld [vmem:[%s4351 + $0x1c8] sm:$0xff]
        %v4410 = vld [vmem:[%s4351 + $0x1d0] sm:$0xff]
        %v4411 = vld [vmem:[%s4351 + $0x1d8] sm:$0xff]
        %v4412 = vld [vmem:[%s4351 + $0x1e0] sm:$0xff]
        %v4413 = vld [vmem:[%s4351 + $0x1e8] sm:$0xff]
        %v4414 = vld [vmem:[%s4351 + $0x1f0] sm:$0xff]
        %v4415 = vld [vmem:[%s4351 + $0x1f8] sm:$0xff]
        %4416 = vmatpush.msra.mxu0 %v4382
        %4417 = vmatpush.msra.mxu0 %v4380
        %4418 = vmatpush.msra.mxu0 %v4378
        %4419 = vmatpush.msra.mxu0 %v4376
        %4420 = vmatpush.msra.mxu0 %v4374
        %4421 = vmatpush.msra.mxu0 %v4372
        %4422 = vmatpush.msra.mxu0 %v4370
        %4423 = vmatpush.msra.mxu0 %v4368
        %4424 = vmatpush.msra.mxu0 %v4366
        %4425 = vmatpush.msra.mxu0 %v4364
        %4426 = vmatpush.msra.mxu0 %v4362
        %4427 = vmatpush.msra.mxu0 %v4360
        %4428 = vmatpush.msra.mxu0 %v4358
        %4429 = vmatpush.msra.mxu0 %v4356
        %4430 = vmatpush.msra.mxu0 %v4354
        %4431 = vmatpush.msra.mxu0 %v4352
        %4432 = vmatmul.f32.gmra.mxu0 %v4329
        %v4433 = vpop.f32.mrf.mxu0
        %v4434 = vadd.f32 0.0, %v4433
        %4435 = vdwg.mxu0
        %4436 = vmatpush.msra.mxu0 %v4414
        %4437 = vmatpush.msra.mxu0 %v4412
        %4438 = vmatpush.msra.mxu0 %v4410
        %4439 = vmatpush.msra.mxu0 %v4408
        %4440 = vmatpush.msra.mxu0 %v4406
        %4441 = vmatpush.msra.mxu0 %v4404
        %4442 = vmatpush.msra.mxu0 %v4402
        %4443 = vmatpush.msra.mxu0 %v4400
        %4444 = vmatpush.msra.mxu0 %v4398
        %4445 = vmatpush.msra.mxu0 %v4396
        %4446 = vmatpush.msra.mxu0 %v4394
        %4447 = vmatpush.msra.mxu0 %v4392
        %4448 = vmatpush.msra.mxu0 %v4390
        %4449 = vmatpush.msra.mxu0 %v4388
        %4450 = vmatpush.msra.mxu0 %v4386
        %4451 = vmatpush.msra.mxu0 %v4384
        %4452 = vmatmul.f32.gmra.mxu0 %v4349
        %v4453 = vpop.f32.mrf.mxu0
        %v4454 = vadd.f32 %v4434, %v4453
        %4455 = vdwg.mxu0
        %4456 = vmatpush.msra.mxu0 %v4383
        %4457 = vmatpush.msra.mxu0 %v4381
        %4458 = vmatpush.msra.mxu0 %v4379
        %4459 = vmatpush.msra.mxu0 %v4377
        %4460 = vmatpush.msra.mxu0 %v4375
        %4461 = vmatpush.msra.mxu0 %v4373
        %4462 = vmatpush.msra.mxu0 %v4371
        %4463 = vmatpush.msra.mxu0 %v4369
        %4464 = vmatpush.msra.mxu0 %v4367
        %4465 = vmatpush.msra.mxu0 %v4365
        %4466 = vmatpush.msra.mxu0 %v4363
        %4467 = vmatpush.msra.mxu0 %v4361
        %4468 = vmatpush.msra.mxu0 %v4359
        %4469 = vmatpush.msra.mxu0 %v4357
        %4470 = vmatpush.msra.mxu0 %v4355
        %4471 = vmatpush.msra.mxu0 %v4353
        %4472 = vmatmul.f32.gmra.mxu0 %v4329
        %v4473 = vpop.f32.mrf.mxu0
        %v4474 = vadd.f32 0.0, %v4473
        %4475 = vdwg.mxu0
        %4476 = vmatpush.msra.mxu0 %v4415
        %4477 = vmatpush.msra.mxu0 %v4413
        %4478 = vmatpush.msra.mxu0 %v4411
        %4479 = vmatpush.msra.mxu0 %v4409
        %4480 = vmatpush.msra.mxu0 %v4407
        %4481 = vmatpush.msra.mxu0 %v4405
        %4482 = vmatpush.msra.mxu0 %v4403
        %4483 = vmatpush.msra.mxu0 %v4401
        %4484 = vmatpush.msra.mxu0 %v4399
        %4485 = vmatpush.msra.mxu0 %v4397
        %4486 = vmatpush.msra.mxu0 %v4395
        %4487 = vmatpush.msra.mxu0 %v4393
        %4488 = vmatpush.msra.mxu0 %v4391
        %4489 = vmatpush.msra.mxu0 %v4389
        %4490 = vmatpush.msra.mxu0 %v4387
        %4491 = vmatpush.msra.mxu0 %v4385
        %4492 = vmatmul.f32.gmra.mxu0 %v4349
        %v4493 = vpop.f32.mrf.mxu0
        %v4494 = vadd.f32 %v4474, %v4493
        %4495 = vdwg.mxu0
        %v4496 = vadd.f32 %v4264, %v4454
        %v4497 = vadd.f32 %v4304, %v4494
        %v4498 = vld [vmem:[#allocation22] sm:$0x3]
        %v4500 = vperm.slane %v4498, 0
        %v4501 = vperm.slane %v4498, 1
        %v4504 = vadd.f32 %v4496, %v4500
        %v4505 = vadd.f32 %v4497, %v4501
        %v4506 = vmax.f32 %v4504, 0.0
        %v4507 = vmax.f32 %v4505, 0.0
        %v4508 = vld [vmem:[#allocation23] sm:$0x3]
        %vm4509 = vcmask 31744
        %v4511 = vsel %vm4509, %v4508, 0
        %vm4513 = vcmask 1043456
        %v4515 = vsel %vm4513, %v4506, 0
        %v4518 = vsel %vm4513, %v4507, 0
        %4520 = vmatpush.msra.mxu0 0.0
        %4521 = vmatpush.msra.mxu0 0.0
        %4522 = vmatpush.msra.mxu0 0.0
        %4523 = vmatpush.msra.mxu0 0.0
        %4524 = vmatpush.msra.mxu0 0.0
        %4525 = vmatpush.msra.mxu0 0.0
        %4526 = vmatpush.msra.mxu0 0.0
        %4527 = vmatpush.msra.mxu0 0.0
        %4528 = vmatpush.msra.mxu0 0.0
        %4529 = vmatpush.msra.mxu0 0.0
        %4530 = vmatpush.msra.mxu0 0.0
        %4531 = vmatpush.msra.mxu0 0.0
        %4532 = vmatpush.msra.mxu0 0.0
        %4533 = vmatpush.msra.mxu0 0.0
        %4534 = vmatpush.msra.mxu0 0.0
        %4535 = vmatpush.msra.mxu0 %v4515
        %4536 = vmatmul.f32.gmra.mxu0 %v4511
        %v4537 = vpop.f32.mrf.mxu0
        %v4538 = vadd.f32 0.0, %v4537
        %4539 = vdwg.mxu0
        %4540 = vmatpush.msra.mxu0 0.0
        %4541 = vmatpush.msra.mxu0 0.0
        %4542 = vmatpush.msra.mxu0 0.0
        %4543 = vmatpush.msra.mxu0 0.0
        %4544 = vmatpush.msra.mxu0 0.0
        %4545 = vmatpush.msra.mxu0 0.0
        %4546 = vmatpush.msra.mxu0 0.0
        %4547 = vmatpush.msra.mxu0 0.0
        %4548 = vmatpush.msra.mxu0 0.0
        %4549 = vmatpush.msra.mxu0 0.0
        %4550 = vmatpush.msra.mxu0 0.0
        %4551 = vmatpush.msra.mxu0 0.0
        %4552 = vmatpush.msra.mxu0 0.0
        %4553 = vmatpush.msra.mxu0 0.0
        %4554 = vmatpush.msra.mxu0 0.0
        %4555 = vmatpush.msra.mxu0 %v4518
        %4556 = vmatmul.f32.gmra.mxu0 %v4511
        %v4557 = vpop.f32.mrf.mxu0
        %v4558 = vadd.f32 0.0, %v4557
        %4559 = vdwg.mxu0
        %v4560 = vld [vmem:[%s17] sm:$0xff]
        %v4561 = vld [vmem:[%s17 + $0x8] sm:$0xff]
        %v4562 = vld [vmem:[%s17 + $0x10] sm:$0xff]
        %v4563 = vld [vmem:[%s17 + $0x18] sm:$0xff]
        %v4564 = vld [vmem:[%s17 + $0x20] sm:$0xff]
        %v4565 = vld [vmem:[%s17 + $0x28] sm:$0xff]
        %v4566 = vld [vmem:[%s17 + $0x30] sm:$0xff]
        %v4567 = vld [vmem:[%s17 + $0x38] sm:$0xff]
        %v4568 = vld [vmem:[%s17 + $0x40] sm:$0xff]
        %v4569 = vld [vmem:[%s17 + $0x48] sm:$0xff]
        %v4570 = vld [vmem:[%s17 + $0x50] sm:$0xff]
        %v4571 = vld [vmem:[%s17 + $0x58] sm:$0xff]
        %v4572 = vld [vmem:[%s17 + $0x60] sm:$0xff]
        %v4573 = vld [vmem:[%s17 + $0x68] sm:$0xff]
        %v4574 = vld [vmem:[%s17 + $0x70] sm:$0xff]
        %v4575 = vld [vmem:[%s17 + $0x78] sm:$0xff]
        %v4576 = vld [vmem:[%s17 + $0x80] sm:$0xff]
        %v4577 = vld [vmem:[%s17 + $0x88] sm:$0xff]
        %v4578 = vld [vmem:[%s17 + $0x90] sm:$0xff]
        %v4579 = vld [vmem:[%s17 + $0x98] sm:$0xff]
        %v4580 = vld [vmem:[%s17 + $0xa0] sm:$0xff]
        %v4581 = vld [vmem:[%s17 + $0xa8] sm:$0xff]
        %v4582 = vld [vmem:[%s17 + $0xb0] sm:$0xff]
        %v4583 = vld [vmem:[%s17 + $0xb8] sm:$0xff]
        %v4584 = vld [vmem:[%s17 + $0xc0] sm:$0xff]
        %v4585 = vld [vmem:[%s17 + $0xc8] sm:$0xff]
        %v4586 = vld [vmem:[%s17 + $0xd0] sm:$0xff]
        %v4587 = vld [vmem:[%s17 + $0xd8] sm:$0xff]
        %v4588 = vld [vmem:[%s17 + $0xe0] sm:$0xff]
        %v4589 = vld [vmem:[%s17 + $0xe8] sm:$0xff]
        %v4590 = vld [vmem:[%s17 + $0xf0] sm:$0xff]
        %v4591 = vld [vmem:[%s17 + $0xf8] sm:$0xff]
        %v4592 = vld [vmem:[#allocation2] sm:$0x1]
        %v4594 = vperm.slane %v4592, 0
        %4596 = vmatpush.msra.mxu0 %v4575
        %4597 = vmatpush.msra.mxu0 %v4574
        %4598 = vmatpush.msra.mxu0 %v4573
        %4599 = vmatpush.msra.mxu0 %v4572
        %4600 = vmatpush.msra.mxu0 %v4571
        %4601 = vmatpush.msra.mxu0 %v4570
        %4602 = vmatpush.msra.mxu0 %v4569
        %4603 = vmatpush.msra.mxu0 %v4568
        %4604 = vmatpush.msra.mxu0 %v4567
        %4605 = vmatpush.msra.mxu0 %v4566
        %4606 = vmatpush.msra.mxu0 %v4565
        %4607 = vmatpush.msra.mxu0 %v4564
        %4608 = vmatpush.msra.mxu0 %v4563
        %4609 = vmatpush.msra.mxu0 %v4562
        %4610 = vmatpush.msra.mxu0 %v4561
        %4611 = vmatpush.msra.mxu0 %v4560
        %4612 = vmatmul.f32.gmra.mxu0 %v4538
        %v4613 = vpop.f32.mrf.mxu0
        %v4614 = vadd.f32 %v4594, %v4613
        %4615 = vdwg.mxu0
        %4616 = vmatpush.msra.mxu0 %v4591
        %4617 = vmatpush.msra.mxu0 %v4590
        %4618 = vmatpush.msra.mxu0 %v4589
        %4619 = vmatpush.msra.mxu0 %v4588
        %4620 = vmatpush.msra.mxu0 %v4587
        %4621 = vmatpush.msra.mxu0 %v4586
        %4622 = vmatpush.msra.mxu0 %v4585
        %4623 = vmatpush.msra.mxu0 %v4584
        %4624 = vmatpush.msra.mxu0 %v4583
        %4625 = vmatpush.msra.mxu0 %v4582
        %4626 = vmatpush.msra.mxu0 %v4581
        %4627 = vmatpush.msra.mxu0 %v4580
        %4628 = vmatpush.msra.mxu0 %v4579
        %4629 = vmatpush.msra.mxu0 %v4578
        %4630 = vmatpush.msra.mxu0 %v4577
        %4631 = vmatpush.msra.mxu0 %v4576
        %4632 = vmatmul.f32.gmra.mxu0 %v4558
        %v4633 = vpop.f32.mrf.mxu0
        %v4634 = vadd.f32 %v4614, %v4633
        %4635 = vdwg.mxu0
        %vm4636 = vcmask 1024
        %4637 = vst.msk [vmem:[%s827] sm:$0x3] %vm4636, %v4634
        %p4638 = scmp.lt.s32.totalorder %s40, 1
        %s4639 = scalar_select %p4638, %s40, 1
        %s4640 = smul.addr %s4639, 2
        %s4641 = scalar_lea.vmem %s19, %s4640
        // Predicated region
        $region153: #{forward.1} parent=95 // pred_check
          %p4642 = pneg %p462
        $region154: #{forward.1} parent=95 // pred_check_branch
          %4644 = sbr.rel (%p4642) target = $region156
        $region155: #{forward.1} parent=95 // pred_region
          _
        $region156: #{forward.1} parent=95 // pred_fallthru
          _
      $region96: #{forward.1} parent=5 // pred_fallthru
        _
      %p4645 = scmp.le.s32.totalorder 2, %s35
      // Predicated region
      $region157: #{forward.1} parent=5 // pred_check
        %p4646 = pneg %p4645
      $region158: #{forward.1} parent=5 // pred_check_branch
        %4648 = sbr.rel (%p4646) target = $region160
      $region159: #{forward.1} parent=5 // pred_region
        %s4649 = ssub.s32 %s35, 2
        // Predicated region
        $region161: #{forward.1} parent=159 // pred_check
          %p4650 = pneg %p468
        $region162: #{forward.1} parent=159 // pred_check_branch
          %4652 = sbr.rel (%p4650) target = $region164
        $region163: #{forward.1} parent=159 // pred_region
          %p4653 = scmp.lt.s32.totalorder %s41, 1
          %s4654 = scalar_select %p4653, %s41, 1
          %s4655 = smul.addr %s4654, 2
          %s4656 = scalar_lea.vmem %s19, %s4655
        $region164: #{forward.1} parent=159 // pred_fallthru
          _
      $region160: #{forward.1} parent=5 // pred_fallthru
        _
    $region6: #{forward.1} parent=1 // loop_footer
      %s39 = sadd.s32 1, %s35
    $region7: #{forward.1} parent=1 // loop_footer_branch
      %34 = sbr.rel target = $region3
    $region8: #{forward.1} parent=1 // loop_exit
      _
    %4657 = vsyncpa [#allocation4], 1
    %s4658 = scalar_lea.sflag [#allocation4], 1
    %4659 = vsyncpa %s4658, 1
    %4660 = vsyncpa [#allocation6], 1
    %4661 = vsyncpa [#allocation9], 1
    %4662 = vsyncpa [#allocation12], 1
    %4663 = vsyncpa [#allocation15], 1
    %4664 = vsyncpa [#allocation18], 1
    %4665 = vsyncpa [#allocation21], 1
    %4666 = vsyncpa [#allocation24], 1

</llo_original>
